<compile_context>
chip_gen: v7x
topology: tpu7x:2x2x1
jax: 0.10.0
libtpu: 0.0.40
codegen_flags: <defaults>
</compile_context>

<pallas_src>
import numpy as np
import jax
import jax.numpy as jnp
from jax import lax
from jax.experimental import pallas as pl
from jax.experimental.pallas import tpu as pltpu


# Fixed architecture (the module's argparse defaults): conv 1->10 k5, pool 2,
# conv 10->20 k5, pool 2, fc 320->10, input 28x28.
HIN, WIN = 28, 28
HINP = 32                                  # conv1 input H padded to a sublane multiple
C1, K = 10, 5
H1, W1S = HIN - K + 1, WIN - K + 1         # 24, 24
HP1, WP1 = H1 // 2, W1S // 2               # 12, 12
C2 = 20
H2, W2S = HP1 - K + 1, WP1 - K + 1         # 8, 8
HP2, WP2 = H2 // 2, W2S // 2               # 4, 4
NCLS = 10


# --------------------------------- kernel ------------------------------------

def net_kernel(x_ref, band1_ref, bias1_ref, band2_ref, bias2_ref,
               wfc_ref, bfc_ref, out_ref):
    TB = out_ref.shape[2]                  # samples per block; lanes carry (w, b), b fast
    f32 = jnp.float32
    bf16 = jnp.bfloat16
    x2 = x_ref[0]                          # (32, 28*TB) bf16

    # ---- conv1: single im2row MXU dot, contraction K*HINP = 160 --------------
    xs = jnp.concatenate(
        [x2[:, kw * TB:(kw + W1S) * TB] for kw in range(K)], axis=0)   # (160, 24*TB)
    h1 = jnp.dot(band1_ref[...], xs, preferred_element_type=f32)       # (240, 24*TB)
    h1 = h1 + bias1_ref[...]               # rows = (cout, ho)

    # ---- maxpool1 2x2 + ReLU (no selection matmuls) ---------------------------
    # W pair-max per pooled column, lane-concat into one (240, 12*TB) tensor.
    wm1 = jnp.concatenate(
        [jnp.maximum(h1[:, (2 * j) * TB:(2 * j + 1) * TB],
                     h1[:, (2 * j + 1) * TB:(2 * j + 2) * TB]) for j in range(WP1)],
        axis=1)                            # (240, 12*TB)
    # H pair-max via sublane roll (roll(rows-1) == jnp.roll shift=-1): even rows
    # hold max(h, h+1); odd/wrap rows are garbage but hit zero columns of band2'.
    hm1 = jnp.maximum(wm1, pltpu.roll(wm1, shift=wm1.shape[0] - 1, axis=0))
    p1 = jnp.maximum(hm1, 0.0).astype(bf16)                            # (240, 12*TB)

    # ---- conv2: 5 wide chained dots over sliding lane windows (depth 240) -----
    h2 = jnp.dot(band2_ref[0], p1[:, 0:W2S * TB], preferred_element_type=f32)
    for kw in range(1, K):
        h2 = h2 + jnp.dot(band2_ref[kw], p1[:, kw * TB:(kw + W2S) * TB],
                          preferred_element_type=f32)
    h2 = h2 + bias2_ref[...]               # (160, 8*TB), rows = (cout, ho)

    # ---- maxpool2 2x2 + ReLU, sublane-stacked over pooled W -------------------
    wm2 = jnp.concatenate(
        [jnp.maximum(h2[:, (2 * j) * TB:(2 * j + 1) * TB],
                     h2[:, (2 * j + 1) * TB:(2 * j + 2) * TB]) for j in range(WP2)],
        axis=0)                            # (640, TB), rows = (w, c, h)
    hm2 = jnp.maximum(wm2, pltpu.roll(wm2, shift=wm2.shape[0] - 1, axis=0))
    p2 = jnp.maximum(hm2, 0.0).astype(bf16)                            # (640, TB)

    # ---- fc: one dot over the full (w, c, h) stack; lane-dense (10, TB) out ----
    out_ref[0] = jnp.dot(wfc_ref[...], p2, preferred_element_type=f32) + bfc_ref[...]


# ---------------------- wrapper-side weight pre-formatting --------------------

def _band_matrices(w, hout, hin):
    """w: (Cout, Cin, K, K) -> (K, Cout*hout, Cin*hin) banded-along-H matrices,
    one per kw; rows ordered (cout, ho), cols ordered (cin, h)."""
    cout, cin, k, _ = w.shape
    kh = jnp.arange(hin)[None, :] - jnp.arange(hout)[:, None]           # (hout, hin)
    mask = (kh >= 0) & (kh < k)
    khc = jnp.clip(kh, 0, k - 1)
    b = w[:, :, khc, :]                                  # (cout, cin, hout, hin, k)
    b = b * mask[None, None, :, :, None].astype(w.dtype)
    b = jnp.transpose(b, (4, 0, 2, 1, 3))                # (k, cout, hout, cin, hin)
    return b.reshape(k, cout * hout, cin * hin)


# -------------------------------- wrapper -------------------------------------

def net_forward(x, w1, b1, w2, b2, wf, bf, *, block_n=128):
    """x: (N, 1, 28, 28) float32 NCHW; weights in PyTorch layouts.

    block_n: samples per grid step (lanes carry (w, batch)).  128 fits the
    default scoped VMEM on all chips; 256 amortizes per-step overhead on
    v5e/v6e; keep NB >= 2 on v7x so the "parallel" axis feeds both TensorCores.
    Matmul operands are bf16 (f32 accumulation) — inference-grade precision.
    """
    N = x.shape[0]
    assert x.shape[1:] == (1, HIN, WIN)
    TB = int(block_n)
    NB = -(-N // TB)
    NP = NB * TB

    # --- layout plumbing: pad batch->NP and H->32, fuse (w, b) on lanes, bf16 --
    x0 = jnp.pad(x[:, 0], ((0, NP - N), (0, HINP - HIN), (0, 0)))       # (NP, 32, 28)
    xk = (x0.reshape(NB, TB, HINP, WIN).transpose(0, 2, 3, 1)
            .reshape(NB, HINP, WIN * TB).astype(jnp.bfloat16))

    # --- conv1 banded weights stacked along the (kw, hin) contraction ----------
    band1 = _band_matrices(w1, H1, HINP)                                # (5, 240, 32)
    band1s = (jnp.transpose(band1, (1, 0, 2))
                .reshape(C1 * H1, K * HINP).astype(jnp.bfloat16))       # (240, 160)

    # --- conv2 banded weights with the pool1 even-row compaction folded in -----
    band2 = _band_matrices(w2, H2, HP1)                                 # (5, 160, 120)
    band2f = (jnp.zeros((K, C2 * H2, C1 * H1), w2.dtype)
                .at[:, :, ::2].set(band2).astype(jnp.bfloat16))         # (5, 160, 240)

    # --- fc weights in torch (C,H,W) order, pool2 compaction folded, w-stacked --
    wfc_w = (wf.reshape(NCLS, C2, HP2, WP2).transpose(3, 0, 1, 2)
               .reshape(WP2, NCLS, C2 * HP2))                           # (4, 10, 80)
    wfc2 = jnp.zeros((WP2, NCLS, C2 * H2), wf.dtype).at[:, :, ::2].set(wfc_w)
    wfc_all = (jnp.transpose(wfc2, (1, 0, 2))
                 .reshape(NCLS, WP2 * C2 * H2).astype(jnp.bfloat16))    # (10, 640)

    bias1 = jnp.repeat(b1, H1).reshape(C1 * H1, 1)                      # (240, 1) f32
    bias2 = jnp.repeat(b2, H2).reshape(C2 * H2, 1)                      # (160, 1) f32
    bfc = bf.reshape(NCLS, 1)

    grid_spec = pltpu.PrefetchScalarGridSpec(
        num_scalar_prefetch=0,
        grid=(NB,),
        in_specs=[
            pl.BlockSpec((1, HINP, WIN * TB), lambda i: (i, 0, 0)),     # x block
            pl.BlockSpec((C1 * H1, K * HINP), lambda i: (0, 0)),        # band1s
            pl.BlockSpec((C1 * H1, 1), lambda i: (0, 0)),               # bias1
            pl.BlockSpec((K, C2 * H2, C1 * H1), lambda i: (0, 0, 0)),   # band2'
            pl.BlockSpec((C2 * H2, 1), lambda i: (0, 0)),               # bias2
            pl.BlockSpec((NCLS, WP2 * C2 * H2), lambda i: (0, 0)),      # fc w (folded)
            pl.BlockSpec((NCLS, 1), lambda i: (0, 0)),                  # fc b
        ],
        out_specs=pl.BlockSpec((1, NCLS, TB), lambda i: (i, 0, 0)),     # per-block
    )
    out = pl.pallas_call(
        net_kernel,
        out_shape=jax.ShapeDtypeStruct((NB, NCLS, TB), jnp.float32),
        grid_spec=grid_spec,
        compiler_params=pltpu.CompilerParams(
            dimension_semantics=("parallel",)),
    )(xk, band1s, bias1, band2f, bias2, wfc_all, bfc)

    # (NB, 10, TB) -> (N, 10)   (lane-dense in-kernel, transpose back here)
    return out.transpose(0, 2, 1).reshape(NP, NCLS)[:N]


# ------------------------- pure-JAX reference ---------------------------------

def ref_forward(x, w1, b1, w2, b2, wf, bf):
    dn = ("NCHW", "OIHW", "NCHW")
    h = lax.conv_general_dilated(x, w1, (1, 1), "VALID", dimension_numbers=dn,
                                 precision=lax.Precision.HIGHEST)
    h = h + b1.reshape(1, -1, 1, 1)
    h = lax.reduce_window(h, -jnp.inf, lax.max, (1, 1, 2, 2), (1, 1, 2, 2), "VALID")
    h = jnp.maximum(h, 0.0)
    h = lax.conv_general_dilated(h, w2, (1, 1), "VALID", dimension_numbers=dn,
                                 precision=lax.Precision.HIGHEST)
    h = h + b2.reshape(1, -1, 1, 1)
    h = lax.reduce_window(h, -jnp.inf, lax.max, (1, 1, 2, 2), (1, 1, 2, 2), "VALID")
    h = jnp.maximum(h, 0.0)
    h = h.reshape(x.shape[0], -1)
    return jnp.dot(h, wf.T, precision=lax.Precision.HIGHEST) + bf


# ---------------------------------- main ---------------------------------------

if __name__ == "__main__":
    key = jax.random.PRNGKey(0)
    ks = jax.random.split(key, 7)
    N = 6                                     # small test batch (exercises padding)
    x = jax.random.normal(ks[0], (N, 1, 28, 28), jnp.float32)

    def uinit(k, shape, fan_in):
        bound = 1.0 / float(np.sqrt(fan_in))
        return jax.random.uniform(k, shape, jnp.float32, -bound, bound)

    # PyTorch-like deterministic init (shapes from the module defaults)
    w1 = uinit(ks[1], (10, 1, 5, 5), 1 * 5 * 5)
    b1 = uinit(ks[2], (10,), 1 * 5 * 5)
    w2 = uinit(ks[3], (20, 10, 5, 5), 10 * 5 * 5)
    b2 = uinit(ks[4], (20,), 10 * 5 * 5)
    wf = uinit(ks[5], (10, 320), 320)
    bf = uinit(ks[6], (10,), 320)

    fwd = jax.jit(lambda *a: net_forward(*a, block_n=4))   # 2 grid steps for the test
    out = jax.block_until_ready(fwd(x, w1, b1, w2, b2, wf, bf))

    ref = ref_forward(x, w1, b1, w2, b2, wf, bf)
    assert out.shape == (N, 10) and out.dtype == jnp.float32
    # bf16 MXU operands (f32 accumulation): inference-grade precision vs. the
    # HIGHEST-precision f32 reference, hence the 2e-2 tolerance.
    np.testing.assert_allclose(np.asarray(out), np.asarray(ref),
                               rtol=2e-2, atol=2e-2)
    print("KERNEL_OK")
</pallas_src>

<mosaic_0001>
module attributes {stable_mosaic.version = 11 : i64} {
  func.func @net_kernel(%arg0: i32, %arg1: memref<1x32x112xbf16, #tpu.memory_space<vmem>>, %arg2: memref<240x160xbf16, #tpu.memory_space<vmem>>, %arg3: memref<240x1xf32, #tpu.memory_space<vmem>>, %arg4: memref<5x160x240xbf16, #tpu.memory_space<vmem>>, %arg5: memref<160x1xf32, #tpu.memory_space<vmem>>, %arg6: memref<10x640xbf16, #tpu.memory_space<vmem>>, %arg7: memref<10x1xf32, #tpu.memory_space<vmem>>, %arg8: memref<1x10x4xf32, #tpu.memory_space<vmem>>) attributes {dimension_semantics = [#tpu.dimension_semantics<parallel>], iteration_bounds = array<i64: 2>, scalar_prefetch = 0 : i64, scratch_operands = 0 : i64, tpu.core_type = #tpu.core_type<tc>, window_params = [{transform_indices = @transform_0, window_bounds = array<i64: 1, 32, 112>}, {pipeline_mode = #tpu.pipeline_mode<synchronous>, transform_indices = @transform_1, window_bounds = array<i64: 240, 160>}, {pipeline_mode = #tpu.pipeline_mode<synchronous>, transform_indices = @transform_2, window_bounds = array<i64: 240, 1>}, {pipeline_mode = #tpu.pipeline_mode<synchronous>, transform_indices = @transform_3, window_bounds = array<i64: 5, 160, 240>}, {pipeline_mode = #tpu.pipeline_mode<synchronous>, transform_indices = @transform_4, window_bounds = array<i64: 160, 1>}, {pipeline_mode = #tpu.pipeline_mode<synchronous>, transform_indices = @transform_5, window_bounds = array<i64: 10, 640>}, {pipeline_mode = #tpu.pipeline_mode<synchronous>, transform_indices = @transform_6, window_bounds = array<i64: 10, 1>}, {transform_indices = @transform_7, window_bounds = array<i64: 1, 10, 4>}]} {
    %c0 = arith.constant 0 : index
    %c0_0 = arith.constant 0 : index
    %c0_1 = arith.constant 0 : index
    %0 = vector.load %arg1[%c0, %c0_0, %c0_1] : memref<1x32x112xbf16, #tpu.memory_space<vmem>>, vector<1x32x112xbf16>
    %1 = vector.shape_cast %0 : vector<1x32x112xbf16> to vector<32x112xbf16>
    %2 = vector.extract_strided_slice %1 {offsets = [0, 0], sizes = [32, 96], strides = [1, 1]} : vector<32x112xbf16> to vector<32x96xbf16>
    %3 = vector.extract_strided_slice %1 {offsets = [0, 4], sizes = [32, 96], strides = [1, 1]} : vector<32x112xbf16> to vector<32x96xbf16>
    %4 = vector.extract_strided_slice %1 {offsets = [0, 8], sizes = [32, 96], strides = [1, 1]} : vector<32x112xbf16> to vector<32x96xbf16>
    %5 = vector.extract_strided_slice %1 {offsets = [0, 12], sizes = [32, 96], strides = [1, 1]} : vector<32x112xbf16> to vector<32x96xbf16>
    %6 = vector.extract_strided_slice %1 {offsets = [0, 16], sizes = [32, 96], strides = [1, 1]} : vector<32x112xbf16> to vector<32x96xbf16>
    %7 = tpu.concatenate %2, %3, %4, %5, %6 in 0 : vector<32x96xbf16>, vector<32x96xbf16>, vector<32x96xbf16>, vector<32x96xbf16>, vector<32x96xbf16> -> vector<160x96xbf16>
    %c0_2 = arith.constant 0 : index
    %c0_3 = arith.constant 0 : index
    %8 = vector.load %arg2[%c0_2, %c0_3] : memref<240x160xbf16, #tpu.memory_space<vmem>>, vector<240x160xbf16>
    %cst = arith.constant dense<0.000000e+00> : vector<240x96xf32>
    %9 = tpu.matmul %8, %7, %cst {dimension_numbers = #tpu.dot_dimension_numbers<[1], [0], [0], [1], [0, 0, 1, 1], [], []>} : vector<240x160xbf16>, vector<160x96xbf16>, vector<240x96xf32> -> vector<240x96xf32>
    %c0_4 = arith.constant 0 : index
    %c0_5 = arith.constant 0 : index
    %10 = vector.load %arg3[%c0_4, %c0_5] : memref<240x1xf32, #tpu.memory_space<vmem>>, vector<240x1xf32>
    %11 = vector.broadcast %10 : vector<240x1xf32> to vector<240x96xf32>
    %12 = arith.addf %9, %11 : vector<240x96xf32>
    %13 = vector.extract_strided_slice %12 {offsets = [0, 0], sizes = [240, 4], strides = [1, 1]} : vector<240x96xf32> to vector<240x4xf32>
    %14 = vector.extract_strided_slice %12 {offsets = [0, 4], sizes = [240, 4], strides = [1, 1]} : vector<240x96xf32> to vector<240x4xf32>
    %15 = arith.maximumf %13, %14 : vector<240x4xf32>
    %16 = vector.extract_strided_slice %12 {offsets = [0, 8], sizes = [240, 4], strides = [1, 1]} : vector<240x96xf32> to vector<240x4xf32>
    %17 = vector.extract_strided_slice %12 {offsets = [0, 12], sizes = [240, 4], strides = [1, 1]} : vector<240x96xf32> to vector<240x4xf32>
    %18 = arith.maximumf %16, %17 : vector<240x4xf32>
    %19 = vector.extract_strided_slice %12 {offsets = [0, 16], sizes = [240, 4], strides = [1, 1]} : vector<240x96xf32> to vector<240x4xf32>
    %20 = vector.extract_strided_slice %12 {offsets = [0, 20], sizes = [240, 4], strides = [1, 1]} : vector<240x96xf32> to vector<240x4xf32>
    %21 = arith.maximumf %19, %20 : vector<240x4xf32>
    %22 = vector.extract_strided_slice %12 {offsets = [0, 24], sizes = [240, 4], strides = [1, 1]} : vector<240x96xf32> to vector<240x4xf32>
    %23 = vector.extract_strided_slice %12 {offsets = [0, 28], sizes = [240, 4], strides = [1, 1]} : vector<240x96xf32> to vector<240x4xf32>
    %24 = arith.maximumf %22, %23 : vector<240x4xf32>
    %25 = vector.extract_strided_slice %12 {offsets = [0, 32], sizes = [240, 4], strides = [1, 1]} : vector<240x96xf32> to vector<240x4xf32>
    %26 = vector.extract_strided_slice %12 {offsets = [0, 36], sizes = [240, 4], strides = [1, 1]} : vector<240x96xf32> to vector<240x4xf32>
    %27 = arith.maximumf %25, %26 : vector<240x4xf32>
    %28 = vector.extract_strided_slice %12 {offsets = [0, 40], sizes = [240, 4], strides = [1, 1]} : vector<240x96xf32> to vector<240x4xf32>
    %29 = vector.extract_strided_slice %12 {offsets = [0, 44], sizes = [240, 4], strides = [1, 1]} : vector<240x96xf32> to vector<240x4xf32>
    %30 = arith.maximumf %28, %29 : vector<240x4xf32>
    %31 = vector.extract_strided_slice %12 {offsets = [0, 48], sizes = [240, 4], strides = [1, 1]} : vector<240x96xf32> to vector<240x4xf32>
    %32 = vector.extract_strided_slice %12 {offsets = [0, 52], sizes = [240, 4], strides = [1, 1]} : vector<240x96xf32> to vector<240x4xf32>
    %33 = arith.maximumf %31, %32 : vector<240x4xf32>
    %34 = vector.extract_strided_slice %12 {offsets = [0, 56], sizes = [240, 4], strides = [1, 1]} : vector<240x96xf32> to vector<240x4xf32>
    %35 = vector.extract_strided_slice %12 {offsets = [0, 60], sizes = [240, 4], strides = [1, 1]} : vector<240x96xf32> to vector<240x4xf32>
    %36 = arith.maximumf %34, %35 : vector<240x4xf32>
    %37 = vector.extract_strided_slice %12 {offsets = [0, 64], sizes = [240, 4], strides = [1, 1]} : vector<240x96xf32> to vector<240x4xf32>
    %38 = vector.extract_strided_slice %12 {offsets = [0, 68], sizes = [240, 4], strides = [1, 1]} : vector<240x96xf32> to vector<240x4xf32>
    %39 = arith.maximumf %37, %38 : vector<240x4xf32>
    %40 = vector.extract_strided_slice %12 {offsets = [0, 72], sizes = [240, 4], strides = [1, 1]} : vector<240x96xf32> to vector<240x4xf32>
    %41 = vector.extract_strided_slice %12 {offsets = [0, 76], sizes = [240, 4], strides = [1, 1]} : vector<240x96xf32> to vector<240x4xf32>
    %42 = arith.maximumf %40, %41 : vector<240x4xf32>
    %43 = vector.extract_strided_slice %12 {offsets = [0, 80], sizes = [240, 4], strides = [1, 1]} : vector<240x96xf32> to vector<240x4xf32>
    %44 = vector.extract_strided_slice %12 {offsets = [0, 84], sizes = [240, 4], strides = [1, 1]} : vector<240x96xf32> to vector<240x4xf32>
    %45 = arith.maximumf %43, %44 : vector<240x4xf32>
    %46 = vector.extract_strided_slice %12 {offsets = [0, 88], sizes = [240, 4], strides = [1, 1]} : vector<240x96xf32> to vector<240x4xf32>
    %47 = vector.extract_strided_slice %12 {offsets = [0, 92], sizes = [240, 4], strides = [1, 1]} : vector<240x96xf32> to vector<240x4xf32>
    %48 = arith.maximumf %46, %47 : vector<240x4xf32>
    %49 = tpu.concatenate %15, %18, %21, %24, %27, %30, %33, %36, %39, %42, %45, %48 in 1 : vector<240x4xf32>, vector<240x4xf32>, vector<240x4xf32>, vector<240x4xf32>, vector<240x4xf32>, vector<240x4xf32>, vector<240x4xf32>, vector<240x4xf32>, vector<240x4xf32>, vector<240x4xf32>, vector<240x4xf32>, vector<240x4xf32> -> vector<240x48xf32>
    %c239_i32 = arith.constant 239 : i32
    %50 = tpu.dynamic_rotate %49 by %c239_i32 dim 0 : vector<240x48xf32>, i32 -> vector<240x48xf32>
    %51 = arith.maximumf %49, %50 : vector<240x48xf32>
    %cst_6 = arith.constant 0.000000e+00 : f32
    %52 = vector.broadcast %cst_6 : f32 to vector<240x48xf32>
    %53 = arith.maximumf %51, %52 : vector<240x48xf32>
    %54 = arith.truncf %53 : vector<240x48xf32> to vector<240x48xbf16>
    %c0_7 = arith.constant 0 : index
    %c0_8 = arith.constant 0 : index
    %c0_9 = arith.constant 0 : index
    %55 = vector.load %arg4[%c0_7, %c0_8, %c0_9] : memref<5x160x240xbf16, #tpu.memory_space<vmem>>, vector<1x160x240xbf16>
    %56 = vector.shape_cast %55 : vector<1x160x240xbf16> to vector<160x240xbf16>
    %57 = vector.extract_strided_slice %54 {offsets = [0, 0], sizes = [240, 32], strides = [1, 1]} : vector<240x48xbf16> to vector<240x32xbf16>
    %cst_10 = arith.constant dense<0.000000e+00> : vector<160x32xf32>
    %58 = tpu.matmul %56, %57, %cst_10 {dimension_numbers = #tpu.dot_dimension_numbers<[1], [0], [0], [1], [0, 0, 1, 1], [], []>} : vector<160x240xbf16>, vector<240x32xbf16>, vector<160x32xf32> -> vector<160x32xf32>
    %c1 = arith.constant 1 : index
    %c0_11 = arith.constant 0 : index
    %c0_12 = arith.constant 0 : index
    %59 = vector.load %arg4[%c1, %c0_11, %c0_12] : memref<5x160x240xbf16, #tpu.memory_space<vmem>>, vector<1x160x240xbf16>
    %60 = vector.shape_cast %59 : vector<1x160x240xbf16> to vector<160x240xbf16>
    %61 = vector.extract_strided_slice %54 {offsets = [0, 4], sizes = [240, 32], strides = [1, 1]} : vector<240x48xbf16> to vector<240x32xbf16>
    %cst_13 = arith.constant dense<0.000000e+00> : vector<160x32xf32>
    %62 = tpu.matmul %60, %61, %cst_13 {dimension_numbers = #tpu.dot_dimension_numbers<[1], [0], [0], [1], [0, 0, 1, 1], [], []>} : vector<160x240xbf16>, vector<240x32xbf16>, vector<160x32xf32> -> vector<160x32xf32>
    %63 = arith.addf %58, %62 : vector<160x32xf32>
    %c2 = arith.constant 2 : index
    %c0_14 = arith.constant 0 : index
    %c0_15 = arith.constant 0 : index
    %64 = vector.load %arg4[%c2, %c0_14, %c0_15] : memref<5x160x240xbf16, #tpu.memory_space<vmem>>, vector<1x160x240xbf16>
    %65 = vector.shape_cast %64 : vector<1x160x240xbf16> to vector<160x240xbf16>
    %66 = vector.extract_strided_slice %54 {offsets = [0, 8], sizes = [240, 32], strides = [1, 1]} : vector<240x48xbf16> to vector<240x32xbf16>
    %cst_16 = arith.constant dense<0.000000e+00> : vector<160x32xf32>
    %67 = tpu.matmul %65, %66, %cst_16 {dimension_numbers = #tpu.dot_dimension_numbers<[1], [0], [0], [1], [0, 0, 1, 1], [], []>} : vector<160x240xbf16>, vector<240x32xbf16>, vector<160x32xf32> -> vector<160x32xf32>
    %68 = arith.addf %63, %67 : vector<160x32xf32>
    %c3 = arith.constant 3 : index
    %c0_17 = arith.constant 0 : index
    %c0_18 = arith.constant 0 : index
    %69 = vector.load %arg4[%c3, %c0_17, %c0_18] : memref<5x160x240xbf16, #tpu.memory_space<vmem>>, vector<1x160x240xbf16>
    %70 = vector.shape_cast %69 : vector<1x160x240xbf16> to vector<160x240xbf16>
    %71 = vector.extract_strided_slice %54 {offsets = [0, 12], sizes = [240, 32], strides = [1, 1]} : vector<240x48xbf16> to vector<240x32xbf16>
    %cst_19 = arith.constant dense<0.000000e+00> : vector<160x32xf32>
    %72 = tpu.matmul %70, %71, %cst_19 {dimension_numbers = #tpu.dot_dimension_numbers<[1], [0], [0], [1], [0, 0, 1, 1], [], []>} : vector<160x240xbf16>, vector<240x32xbf16>, vector<160x32xf32> -> vector<160x32xf32>
    %73 = arith.addf %68, %72 : vector<160x32xf32>
    %c4 = arith.constant 4 : index
    %c0_20 = arith.constant 0 : index
    %c0_21 = arith.constant 0 : index
    %74 = vector.load %arg4[%c4, %c0_20, %c0_21] : memref<5x160x240xbf16, #tpu.memory_space<vmem>>, vector<1x160x240xbf16>
    %75 = vector.shape_cast %74 : vector<1x160x240xbf16> to vector<160x240xbf16>
    %76 = vector.extract_strided_slice %54 {offsets = [0, 16], sizes = [240, 32], strides = [1, 1]} : vector<240x48xbf16> to vector<240x32xbf16>
    %cst_22 = arith.constant dense<0.000000e+00> : vector<160x32xf32>
    %77 = tpu.matmul %75, %76, %cst_22 {dimension_numbers = #tpu.dot_dimension_numbers<[1], [0], [0], [1], [0, 0, 1, 1], [], []>} : vector<160x240xbf16>, vector<240x32xbf16>, vector<160x32xf32> -> vector<160x32xf32>
    %78 = arith.addf %73, %77 : vector<160x32xf32>
    %c0_23 = arith.constant 0 : index
    %c0_24 = arith.constant 0 : index
    %79 = vector.load %arg5[%c0_23, %c0_24] : memref<160x1xf32, #tpu.memory_space<vmem>>, vector<160x1xf32>
    %80 = vector.broadcast %79 : vector<160x1xf32> to vector<160x32xf32>
    %81 = arith.addf %78, %80 : vector<160x32xf32>
    %82 = vector.extract_strided_slice %81 {offsets = [0, 0], sizes = [160, 4], strides = [1, 1]} : vector<160x32xf32> to vector<160x4xf32>
    %83 = vector.extract_strided_slice %81 {offsets = [0, 4], sizes = [160, 4], strides = [1, 1]} : vector<160x32xf32> to vector<160x4xf32>
    %84 = arith.maximumf %82, %83 : vector<160x4xf32>
    %85 = vector.extract_strided_slice %81 {offsets = [0, 8], sizes = [160, 4], strides = [1, 1]} : vector<160x32xf32> to vector<160x4xf32>
    %86 = vector.extract_strided_slice %81 {offsets = [0, 12], sizes = [160, 4], strides = [1, 1]} : vector<160x32xf32> to vector<160x4xf32>
    %87 = arith.maximumf %85, %86 : vector<160x4xf32>
    %88 = vector.extract_strided_slice %81 {offsets = [0, 16], sizes = [160, 4], strides = [1, 1]} : vector<160x32xf32> to vector<160x4xf32>
    %89 = vector.extract_strided_slice %81 {offsets = [0, 20], sizes = [160, 4], strides = [1, 1]} : vector<160x32xf32> to vector<160x4xf32>
    %90 = arith.maximumf %88, %89 : vector<160x4xf32>
    %91 = vector.extract_strided_slice %81 {offsets = [0, 24], sizes = [160, 4], strides = [1, 1]} : vector<160x32xf32> to vector<160x4xf32>
    %92 = vector.extract_strided_slice %81 {offsets = [0, 28], sizes = [160, 4], strides = [1, 1]} : vector<160x32xf32> to vector<160x4xf32>
    %93 = arith.maximumf %91, %92 : vector<160x4xf32>
    %94 = tpu.concatenate %84, %87, %90, %93 in 0 : vector<160x4xf32>, vector<160x4xf32>, vector<160x4xf32>, vector<160x4xf32> -> vector<640x4xf32>
    %c639_i32 = arith.constant 639 : i32
    %95 = tpu.dynamic_rotate %94 by %c639_i32 dim 0 : vector<640x4xf32>, i32 -> vector<640x4xf32>
    %96 = arith.maximumf %94, %95 : vector<640x4xf32>
    %cst_25 = arith.constant 0.000000e+00 : f32
    %97 = vector.broadcast %cst_25 : f32 to vector<640x4xf32>
    %98 = arith.maximumf %96, %97 : vector<640x4xf32>
    %99 = arith.truncf %98 : vector<640x4xf32> to vector<640x4xbf16>
    %c0_26 = arith.constant 0 : index
    %c0_27 = arith.constant 0 : index
    %100 = vector.load %arg6[%c0_26, %c0_27] : memref<10x640xbf16, #tpu.memory_space<vmem>>, vector<10x640xbf16>
    %cst_28 = arith.constant dense<0.000000e+00> : vector<10x4xf32>
    %101 = tpu.matmul %100, %99, %cst_28 {dimension_numbers = #tpu.dot_dimension_numbers<[1], [0], [0], [1], [0, 0, 1, 1], [], []>} : vector<10x640xbf16>, vector<640x4xbf16>, vector<10x4xf32> -> vector<10x4xf32>
    %c0_29 = arith.constant 0 : index
    %c0_30 = arith.constant 0 : index
    %102 = vector.load %arg7[%c0_29, %c0_30] : memref<10x1xf32, #tpu.memory_space<vmem>>, vector<10x1xf32>
    %103 = vector.broadcast %102 : vector<10x1xf32> to vector<10x4xf32>
    %104 = arith.addf %101, %103 : vector<10x4xf32>
    %c0_31 = arith.constant 0 : index
    %c0_32 = arith.constant 0 : index
    %c0_33 = arith.constant 0 : index
    %105 = vector.load %arg8[%c0_31, %c0_32, %c0_33] : memref<1x10x4xf32, #tpu.memory_space<vmem>>, vector<1x10x4xf32>
    %106 = vector.shape_cast %105 : vector<1x10x4xf32> to vector<10x4xf32>
    %107 = vector.shape_cast %104 : vector<10x4xf32> to vector<1x10x4xf32>
    tpu.vector_store %arg8[%c0_31, %c0_32, %c0_33], %107 {strides = array<i32>} : memref<1x10x4xf32, #tpu.memory_space<vmem>>, vector<1x10x4xf32>,
    return
  }
  func.func @transform_0(%arg0: i32) -> (i32, i32, i32) {
    %c0_i32 = arith.constant 0 : i32
    %c0_i32_0 = arith.constant 0 : i32
    %c0_i32_1 = arith.constant 0 : i32
    return %arg0, %c0_i32, %c0_i32_0 : i32, i32, i32
  }
  func.func @transform_1(%arg0: i32) -> (i32, i32) {
    %c0_i32 = arith.constant 0 : i32
    %c0_i32_0 = arith.constant 0 : i32
    %c0_i32_1 = arith.constant 0 : i32
    return %c0_i32, %c0_i32_0 : i32, i32
  }
  func.func @transform_2(%arg0: i32) -> (i32, i32) {
    %c0_i32 = arith.constant 0 : i32
    %c0_i32_0 = arith.constant 0 : i32
    %c0_i32_1 = arith.constant 0 : i32
    return %c0_i32, %c0_i32_0 : i32, i32
  }
  func.func @transform_3(%arg0: i32) -> (i32, i32, i32) {
    %c0_i32 = arith.constant 0 : i32
    %c0_i32_0 = arith.constant 0 : i32
    %c0_i32_1 = arith.constant 0 : i32
    %c0_i32_2 = arith.constant 0 : i32
    return %c0_i32, %c0_i32_0, %c0_i32_1 : i32, i32, i32
  }
  func.func @transform_4(%arg0: i32) -> (i32, i32) {
    %c0_i32 = arith.constant 0 : i32
    %c0_i32_0 = arith.constant 0 : i32
    %c0_i32_1 = arith.constant 0 : i32
    return %c0_i32, %c0_i32_0 : i32, i32
  }
  func.func @transform_5(%arg0: i32) -> (i32, i32) {
    %c0_i32 = arith.constant 0 : i32
    %c0_i32_0 = arith.constant 0 : i32
    %c0_i32_1 = arith.constant 0 : i32
    return %c0_i32, %c0_i32_0 : i32, i32
  }
  func.func @transform_6(%arg0: i32) -> (i32, i32) {
    %c0_i32 = arith.constant 0 : i32
    %c0_i32_0 = arith.constant 0 : i32
    %c0_i32_1 = arith.constant 0 : i32
    return %c0_i32, %c0_i32_0 : i32, i32
  }
  func.func @transform_7(%arg0: i32) -> (i32, i32, i32) {
    %c0_i32 = arith.constant 0 : i32
    %c0_i32_0 = arith.constant 0 : i32
    %c0_i32_1 = arith.constant 0 : i32
    return %arg0, %c0_i32, %c0_i32_0 : i32, i32, i32
  }
}

</mosaic_0001>

<llo_original>
// kernel: _lambda_.1
$region0: #{_lambda_.1}
  #allocation0 [shape = 'u32[]', space=smem, size = 0x4, offset = 0x4, fixed_abs, tag = 'smem constant byte address 0x4 - core index']
  #allocation1 [shape = 'u32[144,128]{1,0:T(1,128)}', space=vmem, size = 0x12000, scoped, tag = 'internal scratch']
  %s0 = inlined_call_operand.vmem [shape: bf16[2,32,112], index: 0, kind: input, shape index: {}]
  %s1 = inlined_call_operand.vmem [shape: bf16[240,160], index: 1, kind: input, shape index: {}]
  %s2 = inlined_call_operand.vmem [shape: f32[240,1], index: 2, kind: input, shape index: {}]
  %s3 = inlined_call_operand.vmem [shape: bf16[5,160,240], index: 3, kind: input, shape index: {}]
  %s4 = inlined_call_operand.vmem [shape: f32[160,1], index: 4, kind: input, shape index: {}]
  %s5 = inlined_call_operand.vmem [shape: bf16[10,640], index: 5, kind: input, shape index: {}]
  %s6 = inlined_call_operand.vmem [shape: f32[10,1], index: 6, kind: input, shape index: {}]
  %s7 = inlined_call_operand.vmem [shape: f32[2,10,4], index: 7, kind: output, shape index: {}]
  %s8 = sld [smem:[#allocation0]]
  $region61: #{_lambda_.1} parent=0
    _
  %s10 = ssub.s32 1, %s8
  %s11 = scalar_select 0, %s10, %s8
  loop: start=0, step=1, limit=4
  $region2: #{_lambda_.1} parent=0 // loop_pre_header
    _
  $region3: #{_lambda_.1} parent=0 // loop_header
    %s13 = sphi 0, %s17
    %p14 = scmp.ge.s32.totalorder %s13, 4
    %s23 = sphi 0, %s25
    %s26 = sphi 0, %s23
    %s27 = sphi 0, %s26
    %s43 = sphi 0, %s27
    %s47 = sphi 0, %s47
    %s49 = sphi 0, %s47
    %s50 = sphi 0, %s49
    %s64 = sphi 0, %s50
    %s68 = sphi 0, %s68
    %s70 = sphi 0, %s68
    %s71 = sphi 0, %s70
    %s85 = sphi 0, %s71
    %s89 = sphi 0, %s89
    %s91 = sphi 0, %s89
    %s92 = sphi 0, %s91
    %s106 = sphi 0, %s92
    %s110 = sphi 0, %s110
    %s112 = sphi 0, %s110
    %s113 = sphi 0, %s112
    %s127 = sphi 0, %s113
    %s131 = sphi 0, %s131
    %s133 = sphi 0, %s131
    %s134 = sphi 0, %s133
    %s148 = sphi 0, %s134
    %s152 = sphi 0, %s152
    %s154 = sphi 0, %s152
    %s155 = sphi 0, %s154
    %s169 = sphi 0, %s155
    %s175 = sphi 0, %s177
    %s178 = sphi 0, %s175
    %s179 = sphi 0, %s178
    %s195 = sphi 0, %s179
  $region4: #{_lambda_.1} parent=0 // loop_header_branch
    %16 = sbr.rel (%p14) target = $region8
  $region5: #{_lambda_.1} parent=0 // loop_body
    %s18 = ssub.s32 %s13, 1
    %s19 = ssub.s32 %s13, 2
    %s20 = sadd.s32 %s13, 1
    %s21 = ssub.s32 %s13, %s20
    %p22 = scmp.eq.s32.totalorder %s21, 0
    %s24 = sadd.s32 %s23, 1
    %s25 = scalar_select %p22, %s23, %s24
    %p28 = pneg %p22
    %p29 = scmp.eq.s32.totalorder %s13, 1
    %p30 = por %p28, %p29
    %p31 = scmp.ne.s32.totalorder %s23, %s26
    %p32 = scmp.eq.s32.totalorder %s13, 0
    %p33 = por %p31, %p32
    %p34 = scmp.ne.s32.totalorder %s23, %s26
    %p35 = scmp.eq.s32.totalorder %s18, 1
    %p36 = por %p34, %p35
    %p37 = scmp.ne.s32.totalorder %s26, %s27
    %p38 = scmp.eq.s32.totalorder %s18, 0
    %p39 = por %p37, %p38
    %p40 = scmp.ne.s32.totalorder %s26, %s27
    %p41 = scmp.eq.s32.totalorder %s19, 1
    %p42 = por %p40, %p41
    %p44 = scmp.ne.s32.totalorder %s27, %s43
    %p45 = scmp.eq.s32.totalorder %s19, 0
    %p46 = por %p44, %p45
    %s48 = sadd.s32 %s47, 1
    %p51 = scmp.eq.s32.totalorder %s13, 1
    %p52 = scmp.ne.s32.totalorder %s47, %s49
    %p53 = scmp.eq.s32.totalorder %s13, 0
    %p54 = por %p52, %p53
    %p55 = scmp.ne.s32.totalorder %s47, %s49
    %p56 = scmp.eq.s32.totalorder %s18, 1
    %p57 = por %p55, %p56
    %p58 = scmp.ne.s32.totalorder %s49, %s50
    %p59 = scmp.eq.s32.totalorder %s18, 0
    %p60 = por %p58, %p59
    %p61 = scmp.ne.s32.totalorder %s49, %s50
    %p62 = scmp.eq.s32.totalorder %s19, 1
    %p63 = por %p61, %p62
    %p65 = scmp.ne.s32.totalorder %s50, %s64
    %p66 = scmp.eq.s32.totalorder %s19, 0
    %p67 = por %p65, %p66
    %s69 = sadd.s32 %s68, 1
    %p72 = scmp.eq.s32.totalorder %s13, 1
    %p73 = scmp.ne.s32.totalorder %s68, %s70
    %p74 = scmp.eq.s32.totalorder %s13, 0
    %p75 = por %p73, %p74
    %p76 = scmp.ne.s32.totalorder %s68, %s70
    %p77 = scmp.eq.s32.totalorder %s18, 1
    %p78 = por %p76, %p77
    %p79 = scmp.ne.s32.totalorder %s70, %s71
    %p80 = scmp.eq.s32.totalorder %s18, 0
    %p81 = por %p79, %p80
    %p82 = scmp.ne.s32.totalorder %s70, %s71
    %p83 = scmp.eq.s32.totalorder %s19, 1
    %p84 = por %p82, %p83
    %p86 = scmp.ne.s32.totalorder %s71, %s85
    %p87 = scmp.eq.s32.totalorder %s19, 0
    %p88 = por %p86, %p87
    %s90 = sadd.s32 %s89, 1
    %p93 = scmp.eq.s32.totalorder %s13, 1
    %p94 = scmp.ne.s32.totalorder %s89, %s91
    %p95 = scmp.eq.s32.totalorder %s13, 0
    %p96 = por %p94, %p95
    %p97 = scmp.ne.s32.totalorder %s89, %s91
    %p98 = scmp.eq.s32.totalorder %s18, 1
    %p99 = por %p97, %p98
    %p100 = scmp.ne.s32.totalorder %s91, %s92
    %p101 = scmp.eq.s32.totalorder %s18, 0
    %p102 = por %p100, %p101
    %p103 = scmp.ne.s32.totalorder %s91, %s92
    %p104 = scmp.eq.s32.totalorder %s19, 1
    %p105 = por %p103, %p104
    %p107 = scmp.ne.s32.totalorder %s92, %s106
    %p108 = scmp.eq.s32.totalorder %s19, 0
    %p109 = por %p107, %p108
    %s111 = sadd.s32 %s110, 1
    %p114 = scmp.eq.s32.totalorder %s13, 1
    %p115 = scmp.ne.s32.totalorder %s110, %s112
    %p116 = scmp.eq.s32.totalorder %s13, 0
    %p117 = por %p115, %p116
    %p118 = scmp.ne.s32.totalorder %s110, %s112
    %p119 = scmp.eq.s32.totalorder %s18, 1
    %p120 = por %p118, %p119
    %p121 = scmp.ne.s32.totalorder %s112, %s113
    %p122 = scmp.eq.s32.totalorder %s18, 0
    %p123 = por %p121, %p122
    %p124 = scmp.ne.s32.totalorder %s112, %s113
    %p125 = scmp.eq.s32.totalorder %s19, 1
    %p126 = por %p124, %p125
    %p128 = scmp.ne.s32.totalorder %s113, %s127
    %p129 = scmp.eq.s32.totalorder %s19, 0
    %p130 = por %p128, %p129
    %s132 = sadd.s32 %s131, 1
    %p135 = scmp.eq.s32.totalorder %s13, 1
    %p136 = scmp.ne.s32.totalorder %s131, %s133
    %p137 = scmp.eq.s32.totalorder %s13, 0
    %p138 = por %p136, %p137
    %p139 = scmp.ne.s32.totalorder %s131, %s133
    %p140 = scmp.eq.s32.totalorder %s18, 1
    %p141 = por %p139, %p140
    %p142 = scmp.ne.s32.totalorder %s133, %s134
    %p143 = scmp.eq.s32.totalorder %s18, 0
    %p144 = por %p142, %p143
    %p145 = scmp.ne.s32.totalorder %s133, %s134
    %p146 = scmp.eq.s32.totalorder %s19, 1
    %p147 = por %p145, %p146
    %p149 = scmp.ne.s32.totalorder %s134, %s148
    %p150 = scmp.eq.s32.totalorder %s19, 0
    %p151 = por %p149, %p150
    %s153 = sadd.s32 %s152, 1
    %p156 = scmp.eq.s32.totalorder %s13, 1
    %p157 = scmp.ne.s32.totalorder %s152, %s154
    %p158 = scmp.eq.s32.totalorder %s13, 0
    %p159 = por %p157, %p158
    %p160 = scmp.ne.s32.totalorder %s152, %s154
    %p161 = scmp.eq.s32.totalorder %s18, 1
    %p162 = por %p160, %p161
    %p163 = scmp.ne.s32.totalorder %s154, %s155
    %p164 = scmp.eq.s32.totalorder %s18, 0
    %p165 = por %p163, %p164
    %p166 = scmp.ne.s32.totalorder %s154, %s155
    %p167 = scmp.eq.s32.totalorder %s19, 1
    %p168 = por %p166, %p167
    %p170 = scmp.ne.s32.totalorder %s155, %s169
    %p171 = scmp.eq.s32.totalorder %s19, 0
    %p172 = por %p170, %p171
    %s173 = ssub.s32 %s13, %s20
    %p174 = scmp.eq.s32.totalorder %s173, 0
    %s176 = sadd.s32 %s175, 1
    %s177 = scalar_select %p174, %s175, %s176
    %p180 = pneg %p174
    %p181 = scmp.eq.s32.totalorder %s13, 1
    %p182 = por %p180, %p181
    %p183 = scmp.ne.s32.totalorder %s175, %s178
    %p184 = scmp.eq.s32.totalorder %s13, 0
    %p185 = por %p183, %p184
    %p186 = scmp.ne.s32.totalorder %s175, %s178
    %p187 = scmp.eq.s32.totalorder %s18, 1
    %p188 = por %p186, %p187
    %p189 = scmp.ne.s32.totalorder %s178, %s179
    %p190 = scmp.eq.s32.totalorder %s18, 0
    %p191 = por %p189, %p190
    %p192 = scmp.ne.s32.totalorder %s178, %s179
    %p193 = scmp.eq.s32.totalorder %s19, 1
    %p194 = por %p192, %p193
    %p196 = scmp.ne.s32.totalorder %s179, %s195
    %p197 = scmp.eq.s32.totalorder %s19, 0
    %p198 = por %p196, %p197
    %p199 = scmp.le.s32.totalorder 1, %s13
    %p200 = scmp.lt.s32.totalorder %s13, 3
    %p201 = pnand %p199, %p200
    %p202 = pneg %p201
    // Predicated region
    $region9: #{_lambda_.1} parent=5 // pred_check
      _
    $region10: #{_lambda_.1} parent=5 // pred_check_branch
      %204 = sbr.rel (%p201) target = $region12
    $region11: #{_lambda_.1} parent=5 // pred_region
      %s205 = ssub.s32 %s13, 1
      // Predicated region
      $region13: #{_lambda_.1} parent=11 // pred_check
        %p206 = pneg %p60
      $region14: #{_lambda_.1} parent=11 // pred_check_branch
        %208 = sbr.rel (%p206) target = $region16
      $region15: #{_lambda_.1} parent=11 // pred_region
        _
      $region16: #{_lambda_.1} parent=11 // pred_fallthru
        _
      // Predicated region
      $region17: #{_lambda_.1} parent=11 // pred_check
        %p209 = pneg %p81
      $region18: #{_lambda_.1} parent=11 // pred_check_branch
        %211 = sbr.rel (%p209) target = $region20
      $region19: #{_lambda_.1} parent=11 // pred_region
        _
      $region20: #{_lambda_.1} parent=11 // pred_fallthru
        _
      // Predicated region
      $region21: #{_lambda_.1} parent=11 // pred_check
        %p212 = pneg %p102
      $region22: #{_lambda_.1} parent=11 // pred_check_branch
        %214 = sbr.rel (%p212) target = $region24
      $region23: #{_lambda_.1} parent=11 // pred_region
        _
      $region24: #{_lambda_.1} parent=11 // pred_fallthru
        _
      // Predicated region
      $region25: #{_lambda_.1} parent=11 // pred_check
        %p215 = pneg %p123
      $region26: #{_lambda_.1} parent=11 // pred_check_branch
        %217 = sbr.rel (%p215) target = $region28
      $region27: #{_lambda_.1} parent=11 // pred_region
        _
      $region28: #{_lambda_.1} parent=11 // pred_fallthru
        _
      // Predicated region
      $region29: #{_lambda_.1} parent=11 // pred_check
        %p218 = pneg %p144
      $region30: #{_lambda_.1} parent=11 // pred_check_branch
        %220 = sbr.rel (%p218) target = $region32
      $region31: #{_lambda_.1} parent=11 // pred_region
        _
      $region32: #{_lambda_.1} parent=11 // pred_fallthru
        _
      // Predicated region
      $region33: #{_lambda_.1} parent=11 // pred_check
        %p221 = pneg %p165
      $region34: #{_lambda_.1} parent=11 // pred_check_branch
        %223 = sbr.rel (%p221) target = $region36
      $region35: #{_lambda_.1} parent=11 // pred_region
        _
      $region36: #{_lambda_.1} parent=11 // pred_fallthru
        _
    $region12: #{_lambda_.1} parent=5 // pred_fallthru
      _
    %p224 = scmp.lt.s32.totalorder %s13, 2
    // Predicated region
    $region37: #{_lambda_.1} parent=5 // pred_check
      %p225 = pneg %p224
    $region38: #{_lambda_.1} parent=5 // pred_check_branch
      %227 = sbr.rel (%p225) target = $region40
    $region39: #{_lambda_.1} parent=5 // pred_region
      // Predicated region
      $region41: #{_lambda_.1} parent=39 // pred_check
        %p228 = pneg %p33
      $region42: #{_lambda_.1} parent=39 // pred_check_branch
        %230 = sbr.rel (%p228) target = $region44
      $region43: #{_lambda_.1} parent=39 // pred_region
        %p231 = scmp.lt.s32.totalorder %s13, 1
        %s232 = scalar_select %p231, %s13, 1
        %s233 = smul.addr %s232, 4
        %s234 = smul.addr %s233, 4
        %s235 = scalar_lea.vmem %s0, %s234
      $region44: #{_lambda_.1} parent=39 // pred_fallthru
        _
    $region40: #{_lambda_.1} parent=5 // pred_fallthru
      _
    %p236 = scmp.le.s32.totalorder 1, %s13
    %p237 = scmp.lt.s32.totalorder %s13, 3
    %p238 = pnand %p236, %p237
    %p239 = pneg %p238
    // Predicated region
    $region45: #{_lambda_.1} parent=5 // pred_check
      _
    $region46: #{_lambda_.1} parent=5 // pred_check_branch
      %241 = sbr.rel (%p238) target = $region48
    $region47: #{_lambda_.1} parent=5 // pred_region
      %s242 = ssub.s32 %s13, 1
      %p243 = scmp.lt.s32.totalorder %s18, 1
      %s244 = scalar_select %p243, %s18, 1
      %s245 = smul.addr %s244, 4
      %s246 = smul.addr %s245, 4
      %s247 = scalar_lea.vmem %s0, %s246
      %p248 = pneg %p39
      %p249 = pneg %p36
      %p250 = pneg %p60
      %p251 = pneg %p57
      %p252 = pneg %p81
      %p253 = pneg %p78
      %p254 = pneg %p102
      %p255 = pneg %p99
      %p256 = pneg %p123
      %p257 = pneg %p120
      %p258 = pneg %p144
      %p259 = pneg %p141
      %p260 = pneg %p165
      %p261 = pneg %p162
      %p262 = pneg %p191
      %p263 = pneg %p188
      %p264 = scmp.lt.s32.totalorder %s18, 1
      %s265 = scalar_select %p264, %s18, 1
      %s266 = smul.addr %s265, 2
      %s267 = smul.addr %s266, 8
      %s268 = scalar_lea.vmem %s7, %s267
      %p269 = scmp.lt.s32.totalorder %s18, 1
      %s270 = scalar_select %p269, %s18, 1
      %s271 = smul.addr %s270, 4
      %s272 = smul.addr %s271, 4
      %s273 = scalar_lea.vmem %s0, %s272
      %p274 = scmp.lt.s32.totalorder %s18, 1
      %s275 = scalar_select %p274, %s18, 1
      %s276 = smul.addr %s275, 2
      %s277 = smul.addr %s276, 8
      %s278 = scalar_lea.vmem %s7, %s277
      %v280 = vld [vmem:[%s273] sm:$0xf]
      %v281 = vld [vmem:[%s273 + $0x4] sm:$0xf]
      %v282 = vld [vmem:[%s273 + $0x8] sm:$0xf]
      %v283 = vld [vmem:[%s273 + $0xc] sm:$0xf]
      %v288 = vunpack.c.l.b16 %v280
      %v289 = vunpack.c.l.b16 %v281
      %v290 = vunpack.c.l.b16 %v282
      %v291 = vunpack.c.l.b16 %v283
      %v292 = vpack.c.b16 %v289, %v288
      %v293 = vpack.c.b16 %v291, %v290
      %296 = vrot.lane.b32.xlu0 %v292, 124
      %v297 = vpop.permute.xlu0 %296
      %298 = vrot.lane.b32.xlu0 %v293, 124
      %v299 = vpop.permute.xlu0 %298
      %302 = vrot.lane.b32.xlu0 %v292, 120
      %v303 = vpop.permute.xlu0 %302
      %304 = vrot.lane.b32.xlu0 %v293, 120
      %v305 = vpop.permute.xlu0 %304
      %308 = vrot.lane.b32.xlu0 %v292, 116
      %v309 = vpop.permute.xlu0 %308
      %310 = vrot.lane.b32.xlu0 %v293, 116
      %v311 = vpop.permute.xlu0 %310
      %314 = vrot.lane.b32.xlu0 %v292, 112
      %v315 = vpop.permute.xlu0 %314
      %316 = vrot.lane.b32.xlu0 %v293, 112
      %v317 = vpop.permute.xlu0 %316
      %v320 = vld [vmem:[%s1] sm:$0xff]
      %v321 = vld [vmem:[%s1 + $0x8] sm:$0xff]
      %v322 = vld [vmem:[%s1 + $0x10] sm:$0xff]
      %v323 = vld [vmem:[%s1 + $0x18] sm:$0xff]
      %v324 = vld [vmem:[%s1 + $0x20] sm:$0xff]
      %v325 = vld [vmem:[%s1 + $0x28] sm:$0xff]
      %v326 = vld [vmem:[%s1 + $0x30] sm:$0xff]
      %v327 = vld [vmem:[%s1 + $0x38] sm:$0xff]
      %v328 = vld [vmem:[%s1 + $0x40] sm:$0xff]
      %v329 = vld [vmem:[%s1 + $0x48] sm:$0xff]
      %v330 = vld [vmem:[%s1 + $0x50] sm:$0xff]
      %v331 = vld [vmem:[%s1 + $0x58] sm:$0xff]
      %v332 = vld [vmem:[%s1 + $0x60] sm:$0xff]
      %v333 = vld [vmem:[%s1 + $0x68] sm:$0xff]
      %v334 = vld [vmem:[%s1 + $0x70] sm:$0xff]
      %v335 = vld [vmem:[%s1 + $0x78] sm:$0xff]
      %v336 = vld [vmem:[%s1 + $0x80] sm:$0xff]
      %v337 = vld [vmem:[%s1 + $0x88] sm:$0xff]
      %v338 = vld [vmem:[%s1 + $0x90] sm:$0xff]
      %v339 = vld [vmem:[%s1 + $0x98] sm:$0xff]
      %v340 = vld [vmem:[%s1 + $0xa0] sm:$0xff]
      %v341 = vld [vmem:[%s1 + $0xa8] sm:$0xff]
      %v342 = vld [vmem:[%s1 + $0xb0] sm:$0xff]
      %v343 = vld [vmem:[%s1 + $0xb8] sm:$0xff]
      %v344 = vld [vmem:[%s1 + $0xc0] sm:$0xff]
      %v345 = vld [vmem:[%s1 + $0xc8] sm:$0xff]
      %v346 = vld [vmem:[%s1 + $0xd0] sm:$0xff]
      %v347 = vld [vmem:[%s1 + $0xd8] sm:$0xff]
      %v348 = vld [vmem:[%s1 + $0xe0] sm:$0xff]
      %v349 = vld [vmem:[%s1 + $0xe8] sm:$0xff]
      %v350 = vld [vmem:[%s2] sm:$0xff]
      %v351 = vld [vmem:[%s2 + $0x8] sm:$0xff]
      %v352 = vld [vmem:[%s2 + $0x10] sm:$0xff]
      %v353 = vld [vmem:[%s2 + $0x18] sm:$0xff]
      %v354 = vld [vmem:[%s2 + $0x20] sm:$0xff]
      %v355 = vld [vmem:[%s2 + $0x28] sm:$0xff]
      %v356 = vld [vmem:[%s2 + $0x30] sm:$0xff]
      %v357 = vld [vmem:[%s2 + $0x38] sm:$0xff]
      %v358 = vld [vmem:[%s2 + $0x40] sm:$0xff]
      %v359 = vld [vmem:[%s2 + $0x48] sm:$0xff]
      %v360 = vld [vmem:[%s2 + $0x50] sm:$0xff]
      %v361 = vld [vmem:[%s2 + $0x58] sm:$0xff]
      %v362 = vld [vmem:[%s2 + $0x60] sm:$0xff]
      %v363 = vld [vmem:[%s2 + $0x68] sm:$0xff]
      %v364 = vld [vmem:[%s2 + $0x70] sm:$0xff]
      %v365 = vld [vmem:[%s2 + $0x78] sm:$0xff]
      %v366 = vld [vmem:[%s2 + $0x80] sm:$0xff]
      %v367 = vld [vmem:[%s2 + $0x88] sm:$0xff]
      %v368 = vld [vmem:[%s2 + $0x90] sm:$0xff]
      %v369 = vld [vmem:[%s2 + $0x98] sm:$0xff]
      %v370 = vld [vmem:[%s2 + $0xa0] sm:$0xff]
      %v371 = vld [vmem:[%s2 + $0xa8] sm:$0xff]
      %v372 = vld [vmem:[%s2 + $0xb0] sm:$0xff]
      %v373 = vld [vmem:[%s2 + $0xb8] sm:$0xff]
      %v374 = vld [vmem:[%s2 + $0xc0] sm:$0xff]
      %v375 = vld [vmem:[%s2 + $0xc8] sm:$0xff]
      %v376 = vld [vmem:[%s2 + $0xd0] sm:$0xff]
      %v377 = vld [vmem:[%s2 + $0xd8] sm:$0xff]
      %v378 = vld [vmem:[%s2 + $0xe0] sm:$0xff]
      %v379 = vld [vmem:[%s2 + $0xe8] sm:$0xff]
      %381 = vset.pattern.permute.xlu0 0
      %382 = vperm.xlu0 %381, %v350
      %v383 = vpop.permute.xlu0 %382
      %386 = vset.pattern.permute.xlu0 0
      %387 = vperm.xlu0 %386, %v351
      %v388 = vpop.permute.xlu0 %387
      %391 = vset.pattern.permute.xlu0 0
      %392 = vperm.xlu0 %391, %v352
      %v393 = vpop.permute.xlu0 %392
      %396 = vset.pattern.permute.xlu0 0
      %397 = vperm.xlu0 %396, %v353
      %v398 = vpop.permute.xlu0 %397
      %401 = vset.pattern.permute.xlu0 0
      %402 = vperm.xlu0 %401, %v354
      %v403 = vpop.permute.xlu0 %402
      %406 = vset.pattern.permute.xlu0 0
      %407 = vperm.xlu0 %406, %v355
      %v408 = vpop.permute.xlu0 %407
      %411 = vset.pattern.permute.xlu0 0
      %412 = vperm.xlu0 %411, %v356
      %v413 = vpop.permute.xlu0 %412
      %416 = vset.pattern.permute.xlu0 0
      %417 = vperm.xlu0 %416, %v357
      %v418 = vpop.permute.xlu0 %417
      %421 = vset.pattern.permute.xlu0 0
      %422 = vperm.xlu0 %421, %v358
      %v423 = vpop.permute.xlu0 %422
      %426 = vset.pattern.permute.xlu0 0
      %427 = vperm.xlu0 %426, %v359
      %v428 = vpop.permute.xlu0 %427
      %431 = vset.pattern.permute.xlu0 0
      %432 = vperm.xlu0 %431, %v360
      %v433 = vpop.permute.xlu0 %432
      %436 = vset.pattern.permute.xlu0 0
      %437 = vperm.xlu0 %436, %v361
      %v438 = vpop.permute.xlu0 %437
      %441 = vset.pattern.permute.xlu0 0
      %442 = vperm.xlu0 %441, %v362
      %v443 = vpop.permute.xlu0 %442
      %446 = vset.pattern.permute.xlu0 0
      %447 = vperm.xlu0 %446, %v363
      %v448 = vpop.permute.xlu0 %447
      %451 = vset.pattern.permute.xlu0 0
      %452 = vperm.xlu0 %451, %v364
      %v453 = vpop.permute.xlu0 %452
      %456 = vset.pattern.permute.xlu0 0
      %457 = vperm.xlu0 %456, %v365
      %v458 = vpop.permute.xlu0 %457
      %461 = vset.pattern.permute.xlu0 0
      %462 = vperm.xlu0 %461, %v366
      %v463 = vpop.permute.xlu0 %462
      %466 = vset.pattern.permute.xlu0 0
      %467 = vperm.xlu0 %466, %v367
      %v468 = vpop.permute.xlu0 %467
      %471 = vset.pattern.permute.xlu0 0
      %472 = vperm.xlu0 %471, %v368
      %v473 = vpop.permute.xlu0 %472
      %476 = vset.pattern.permute.xlu0 0
      %477 = vperm.xlu0 %476, %v369
      %v478 = vpop.permute.xlu0 %477
      %481 = vset.pattern.permute.xlu0 0
      %482 = vperm.xlu0 %481, %v370
      %v483 = vpop.permute.xlu0 %482
      %486 = vset.pattern.permute.xlu0 0
      %487 = vperm.xlu0 %486, %v371
      %v488 = vpop.permute.xlu0 %487
      %491 = vset.pattern.permute.xlu0 0
      %492 = vperm.xlu0 %491, %v372
      %v493 = vpop.permute.xlu0 %492
      %496 = vset.pattern.permute.xlu0 0
      %497 = vperm.xlu0 %496, %v373
      %v498 = vpop.permute.xlu0 %497
      %501 = vset.pattern.permute.xlu0 0
      %502 = vperm.xlu0 %501, %v374
      %v503 = vpop.permute.xlu0 %502
      %506 = vset.pattern.permute.xlu0 0
      %507 = vperm.xlu0 %506, %v375
      %v508 = vpop.permute.xlu0 %507
      %511 = vset.pattern.permute.xlu0 0
      %512 = vperm.xlu0 %511, %v376
      %v513 = vpop.permute.xlu0 %512
      %516 = vset.pattern.permute.xlu0 0
      %517 = vperm.xlu0 %516, %v377
      %v518 = vpop.permute.xlu0 %517
      %521 = vset.pattern.permute.xlu0 0
      %522 = vperm.xlu0 %521, %v378
      %v523 = vpop.permute.xlu0 %522
      %526 = vset.pattern.permute.xlu0 0
      %527 = vperm.xlu0 %526, %v379
      %v528 = vpop.permute.xlu0 %527
      %v560 = vunpack.c.l.b16 %v320
      %v561 = vunpack.c.h.b16 %v320
      %v562 = vunpack.c.l.b16 %v321
      %v563 = vunpack.c.h.b16 %v321
      %v564 = vunpack.c.l.b16 %v322
      %v565 = vunpack.c.h.b16 %v322
      %v566 = vunpack.c.l.b16 %v323
      %v567 = vunpack.c.h.b16 %v323
      %v568 = vunpack.c.l.b16 %v324
      %v569 = vunpack.c.h.b16 %v324
      %v570 = vunpack.c.l.b16 %v325
      %v571 = vunpack.c.h.b16 %v325
      %v572 = vunpack.c.l.b16 %v326
      %v573 = vunpack.c.h.b16 %v326
      %v574 = vunpack.c.l.b16 %v327
      %v575 = vunpack.c.h.b16 %v327
      %v576 = vunpack.c.l.b16 %v328
      %v577 = vunpack.c.h.b16 %v328
      %v578 = vunpack.c.l.b16 %v329
      %v579 = vunpack.c.h.b16 %v329
      %v580 = vunpack.c.l.b16 %v330
      %v581 = vunpack.c.h.b16 %v330
      %v582 = vunpack.c.l.b16 %v331
      %v583 = vunpack.c.h.b16 %v331
      %v584 = vunpack.c.l.b16 %v332
      %v585 = vunpack.c.h.b16 %v332
      %v586 = vunpack.c.l.b16 %v333
      %v587 = vunpack.c.h.b16 %v333
      %v588 = vunpack.c.l.b16 %v334
      %v589 = vunpack.c.h.b16 %v334
      %v590 = vunpack.c.l.b16 %v335
      %v591 = vunpack.c.h.b16 %v335
      %v592 = vunpack.c.l.b16 %v336
      %v593 = vunpack.c.h.b16 %v336
      %v594 = vunpack.c.l.b16 %v337
      %v595 = vunpack.c.h.b16 %v337
      %v596 = vunpack.c.l.b16 %v338
      %v597 = vunpack.c.h.b16 %v338
      %v598 = vunpack.c.l.b16 %v339
      %v599 = vunpack.c.h.b16 %v339
      %v600 = vunpack.c.l.b16 %v340
      %v601 = vunpack.c.h.b16 %v340
      %v602 = vunpack.c.l.b16 %v341
      %v603 = vunpack.c.h.b16 %v341
      %v604 = vunpack.c.l.b16 %v342
      %v605 = vunpack.c.h.b16 %v342
      %v606 = vunpack.c.l.b16 %v343
      %v607 = vunpack.c.h.b16 %v343
      %v608 = vunpack.c.l.b16 %v344
      %v609 = vunpack.c.h.b16 %v344
      %v610 = vunpack.c.l.b16 %v345
      %v611 = vunpack.c.h.b16 %v345
      %v612 = vunpack.c.l.b16 %v346
      %v613 = vunpack.c.h.b16 %v346
      %v614 = vunpack.c.l.b16 %v347
      %v615 = vunpack.c.h.b16 %v347
      %v616 = vunpack.c.l.b16 %v348
      %v617 = vunpack.c.h.b16 %v348
      %v618 = vunpack.c.l.b16 %v349
      %v619 = vunpack.c.h.b16 %v349
      %v620 = vpack.c.b16 %v562, %v560
      %v621 = vpack.c.b16 %v563, %v561
      %v622 = vpack.c.b16 %v566, %v564
      %v623 = vpack.c.b16 %v567, %v565
      %v624 = vpack.c.b16 %v570, %v568
      %v625 = vpack.c.b16 %v571, %v569
      %v626 = vpack.c.b16 %v574, %v572
      %v627 = vpack.c.b16 %v575, %v573
      %v628 = vpack.c.b16 %v578, %v576
      %v629 = vpack.c.b16 %v579, %v577
      %v630 = vpack.c.b16 %v582, %v580
      %v631 = vpack.c.b16 %v583, %v581
      %v632 = vpack.c.b16 %v586, %v584
      %v633 = vpack.c.b16 %v587, %v585
      %v634 = vpack.c.b16 %v590, %v588
      %v635 = vpack.c.b16 %v591, %v589
      %v636 = vpack.c.b16 %v594, %v592
      %v637 = vpack.c.b16 %v595, %v593
      %v638 = vpack.c.b16 %v598, %v596
      %v639 = vpack.c.b16 %v599, %v597
      %v640 = vpack.c.b16 %v602, %v600
      %v641 = vpack.c.b16 %v603, %v601
      %v642 = vpack.c.b16 %v606, %v604
      %v643 = vpack.c.b16 %v607, %v605
      %v644 = vpack.c.b16 %v610, %v608
      %v645 = vpack.c.b16 %v611, %v609
      %v646 = vpack.c.b16 %v614, %v612
      %v647 = vpack.c.b16 %v615, %v613
      %v648 = vpack.c.b16 %v618, %v616
      %v649 = vpack.c.b16 %v619, %v617
      %vm665 = vcmask 261120
      %v667 = vsel %vm665, %v621, 0
      %v670 = vsel %vm665, %v623, 0
      %v673 = vsel %vm665, %v625, 0
      %v676 = vsel %vm665, %v627, 0
      %v679 = vsel %vm665, %v629, 0
      %v682 = vsel %vm665, %v631, 0
      %v685 = vsel %vm665, %v633, 0
      %v688 = vsel %vm665, %v635, 0
      %v691 = vsel %vm665, %v637, 0
      %v694 = vsel %vm665, %v639, 0
      %v697 = vsel %vm665, %v641, 0
      %v700 = vsel %vm665, %v643, 0
      %v703 = vsel %vm665, %v645, 0
      %v706 = vsel %vm665, %v647, 0
      %v709 = vsel %vm665, %v649, 0
      %711 = vmatprep.subr.bf16.mxu0 0
      %712 = vmatpush1.bf16.msra.mxu0 %v292
      %713 = vmatprep.subr.bf16.mxu0 0
      %714 = vmatpush1.bf16.msra.mxu0 %v293
      %715 = vmatprep.subr.bf16.mxu0 0
      %716 = vmatpush1.bf16.msra.mxu0 %v297
      %717 = vmatprep.subr.bf16.mxu0 0
      %718 = vmatpush1.bf16.msra.mxu0 %v299
      %719 = vmatprep.subr.bf16.mxu0 0
      %720 = vmatpush1.bf16.msra.mxu0 %v303
      %721 = vmatprep.subr.bf16.mxu0 0
      %722 = vmatpush1.bf16.msra.mxu0 %v305
      %723 = vmatprep.subr.bf16.mxu0 0
      %724 = vmatpush1.bf16.msra.mxu0 %v309
      %725 = vmatprep.subr.bf16.mxu0 0
      %726 = vmatpush1.bf16.msra.mxu0 %v311
      %727 = vmatprep.subr.bf16.mxu0 0
      %728 = vmatpush1.bf16.msra.mxu0 %v315
      %729 = vmatprep.subr.bf16.mxu0 0
      %730 = vmatpush1.bf16.msra.mxu0 %v317
      %731 = vmatprep.subr.bf16.mxu0 0
      %732 = vmatpush1.bf16.msra.mxu0 0
      %733 = vmatprep.subr.bf16.mxu0 0
      %734 = vmatpush1.bf16.msra.mxu0 0
      %735 = vmatprep.subr.bf16.mxu0 0
      %736 = vmatpush1.bf16.msra.mxu0 0
      %737 = vmatprep.subr.bf16.mxu0 0
      %738 = vmatpush1.bf16.msra.mxu0 0
      %739 = vmatprep.subr.bf16.mxu0 0
      %740 = vmatpush1.bf16.msra.mxu0 0
      %741 = vmatprep.subr.bf16.mxu0 0
      %742 = vmatpush1.bf16.msra.mxu0 0
      %743 = vmatprep.mubr.bf16.mxu0 %v667
      %744 = vmatmul.mubr.bf16.gmra.mrb[0].mxu0 %v620
      %v745 = vpop.f32.mrb[0].mxu0
      %v746 = vadd.f32 %v383, %v745
      %v747 = vpop.f32.mrb[0].mxu0
      %v748 = vpop.f32.mrb[0].mxu0
      %v749 = vadd.f32 %v388, %v748
      %v750 = vpop.f32.mrb[0].mxu0
      %751 = vmatprep.mubr.bf16.mxu0 %v670
      %752 = vmatmul.mubr.bf16.gmra.mrb[0].mxu0 %v622
      %v753 = vpop.f32.mrb[0].mxu0
      %v754 = vadd.f32 %v393, %v753
      %v755 = vpop.f32.mrb[0].mxu0
      %v756 = vpop.f32.mrb[0].mxu0
      %v757 = vadd.f32 %v398, %v756
      %v758 = vpop.f32.mrb[0].mxu0
      %759 = vmatprep.mubr.bf16.mxu0 %v673
      %760 = vmatmul.mubr.bf16.gmra.mrb[0].mxu0 %v624
      %v761 = vpop.f32.mrb[0].mxu0
      %v762 = vadd.f32 %v403, %v761
      %v763 = vpop.f32.mrb[0].mxu0
      %v764 = vpop.f32.mrb[0].mxu0
      %v765 = vadd.f32 %v408, %v764
      %v766 = vpop.f32.mrb[0].mxu0
      %767 = vmatprep.mubr.bf16.mxu0 %v676
      %768 = vmatmul.mubr.bf16.gmra.mrb[0].mxu0 %v626
      %v769 = vpop.f32.mrb[0].mxu0
      %v770 = vadd.f32 %v413, %v769
      %v771 = vpop.f32.mrb[0].mxu0
      %v772 = vpop.f32.mrb[0].mxu0
      %v773 = vadd.f32 %v418, %v772
      %v774 = vpop.f32.mrb[0].mxu0
      %775 = vmatprep.mubr.bf16.mxu0 %v679
      %776 = vmatmul.mubr.bf16.gmra.mrb[0].mxu0 %v628
      %v777 = vpop.f32.mrb[0].mxu0
      %v778 = vadd.f32 %v423, %v777
      %v779 = vpop.f32.mrb[0].mxu0
      %v780 = vpop.f32.mrb[0].mxu0
      %v781 = vadd.f32 %v428, %v780
      %v782 = vpop.f32.mrb[0].mxu0
      %783 = vmatprep.mubr.bf16.mxu0 %v682
      %784 = vmatmul.mubr.bf16.gmra.mrb[0].mxu0 %v630
      %v785 = vpop.f32.mrb[0].mxu0
      %v786 = vadd.f32 %v433, %v785
      %v787 = vpop.f32.mrb[0].mxu0
      %v788 = vpop.f32.mrb[0].mxu0
      %v789 = vadd.f32 %v438, %v788
      %v790 = vpop.f32.mrb[0].mxu0
      %791 = vmatprep.mubr.bf16.mxu0 %v685
      %792 = vmatmul.mubr.bf16.gmra.mrb[0].mxu0 %v632
      %v793 = vpop.f32.mrb[0].mxu0
      %v794 = vadd.f32 %v443, %v793
      %v795 = vpop.f32.mrb[0].mxu0
      %v796 = vpop.f32.mrb[0].mxu0
      %v797 = vadd.f32 %v448, %v796
      %v798 = vpop.f32.mrb[0].mxu0
      %799 = vmatprep.mubr.bf16.mxu0 %v688
      %800 = vmatmul.mubr.bf16.gmra.mrb[0].mxu0 %v634
      %v801 = vpop.f32.mrb[0].mxu0
      %v802 = vadd.f32 %v453, %v801
      %v803 = vpop.f32.mrb[0].mxu0
      %v804 = vpop.f32.mrb[0].mxu0
      %v805 = vadd.f32 %v458, %v804
      %v806 = vpop.f32.mrb[0].mxu0
      %807 = vmatprep.mubr.bf16.mxu0 %v691
      %808 = vmatmul.mubr.bf16.gmra.mrb[0].mxu0 %v636
      %v809 = vpop.f32.mrb[0].mxu0
      %v810 = vadd.f32 %v463, %v809
      %v811 = vpop.f32.mrb[0].mxu0
      %v812 = vpop.f32.mrb[0].mxu0
      %v813 = vadd.f32 %v468, %v812
      %v814 = vpop.f32.mrb[0].mxu0
      %815 = vmatprep.mubr.bf16.mxu0 %v694
      %816 = vmatmul.mubr.bf16.gmra.mrb[0].mxu0 %v638
      %v817 = vpop.f32.mrb[0].mxu0
      %v818 = vadd.f32 %v473, %v817
      %v819 = vpop.f32.mrb[0].mxu0
      %v820 = vpop.f32.mrb[0].mxu0
      %v821 = vadd.f32 %v478, %v820
      %v822 = vpop.f32.mrb[0].mxu0
      %823 = vmatprep.mubr.bf16.mxu0 %v697
      %824 = vmatmul.mubr.bf16.gmra.mrb[0].mxu0 %v640
      %v825 = vpop.f32.mrb[0].mxu0
      %v826 = vadd.f32 %v483, %v825
      %v827 = vpop.f32.mrb[0].mxu0
      %v828 = vpop.f32.mrb[0].mxu0
      %v829 = vadd.f32 %v488, %v828
      %v830 = vpop.f32.mrb[0].mxu0
      %831 = vmatprep.mubr.bf16.mxu0 %v700
      %832 = vmatmul.mubr.bf16.gmra.mrb[0].mxu0 %v642
      %v833 = vpop.f32.mrb[0].mxu0
      %v834 = vadd.f32 %v493, %v833
      %v835 = vpop.f32.mrb[0].mxu0
      %v836 = vpop.f32.mrb[0].mxu0
      %v837 = vadd.f32 %v498, %v836
      %v838 = vpop.f32.mrb[0].mxu0
      %839 = vmatprep.mubr.bf16.mxu0 %v703
      %840 = vmatmul.mubr.bf16.gmra.mrb[0].mxu0 %v644
      %v841 = vpop.f32.mrb[0].mxu0
      %v842 = vadd.f32 %v503, %v841
      %v843 = vpop.f32.mrb[0].mxu0
      %v844 = vpop.f32.mrb[0].mxu0
      %v845 = vadd.f32 %v508, %v844
      %v846 = vpop.f32.mrb[0].mxu0
      %847 = vmatprep.mubr.bf16.mxu0 %v706
      %848 = vmatmul.mubr.bf16.gmra.mrb[0].mxu0 %v646
      %v849 = vpop.f32.mrb[0].mxu0
      %v850 = vadd.f32 %v513, %v849
      %v851 = vpop.f32.mrb[0].mxu0
      %v852 = vpop.f32.mrb[0].mxu0
      %v853 = vadd.f32 %v518, %v852
      %v854 = vpop.f32.mrb[0].mxu0
      %855 = vmatprep.mubr.bf16.mxu0 %v709
      %856 = vmatmul.mubr.bf16.gmra.mrb[0].mxu0 %v648
      %v857 = vpop.f32.mrb[0].mxu0
      %v858 = vadd.f32 %v523, %v857
      %v859 = vpop.f32.mrb[0].mxu0
      %v860 = vpop.f32.mrb[0].mxu0
      %v861 = vadd.f32 %v528, %v860
      %v862 = vpop.f32.mrb[0].mxu0
      %863 = vdwg.mxu0
      %894 = vrot.lane.b32.xlu0 %v746, 124
      %v895 = vpop.permute.xlu0 %894
      %896 = vrot.lane.b32.xlu0 %v749, 124
      %v897 = vpop.permute.xlu0 %896
      %898 = vrot.lane.b32.xlu0 %v754, 124
      %v899 = vpop.permute.xlu0 %898
      %900 = vrot.lane.b32.xlu0 %v757, 124
      %v901 = vpop.permute.xlu0 %900
      %902 = vrot.lane.b32.xlu0 %v762, 124
      %v903 = vpop.permute.xlu0 %902
      %904 = vrot.lane.b32.xlu0 %v765, 124
      %v905 = vpop.permute.xlu0 %904
      %906 = vrot.lane.b32.xlu0 %v770, 124
      %v907 = vpop.permute.xlu0 %906
      %908 = vrot.lane.b32.xlu0 %v773, 124
      %v909 = vpop.permute.xlu0 %908
      %910 = vrot.lane.b32.xlu0 %v778, 124
      %v911 = vpop.permute.xlu0 %910
      %912 = vrot.lane.b32.xlu0 %v781, 124
      %v913 = vpop.permute.xlu0 %912
      %914 = vrot.lane.b32.xlu0 %v786, 124
      %v915 = vpop.permute.xlu0 %914
      %916 = vrot.lane.b32.xlu0 %v789, 124
      %v917 = vpop.permute.xlu0 %916
      %918 = vrot.lane.b32.xlu0 %v794, 124
      %v919 = vpop.permute.xlu0 %918
      %920 = vrot.lane.b32.xlu0 %v797, 124
      %v921 = vpop.permute.xlu0 %920
      %922 = vrot.lane.b32.xlu0 %v802, 124
      %v923 = vpop.permute.xlu0 %922
      %924 = vrot.lane.b32.xlu0 %v805, 124
      %v925 = vpop.permute.xlu0 %924
      %926 = vrot.lane.b32.xlu0 %v810, 124
      %v927 = vpop.permute.xlu0 %926
      %928 = vrot.lane.b32.xlu0 %v813, 124
      %v929 = vpop.permute.xlu0 %928
      %930 = vrot.lane.b32.xlu0 %v818, 124
      %v931 = vpop.permute.xlu0 %930
      %932 = vrot.lane.b32.xlu0 %v821, 124
      %v933 = vpop.permute.xlu0 %932
      %934 = vrot.lane.b32.xlu0 %v826, 124
      %v935 = vpop.permute.xlu0 %934
      %936 = vrot.lane.b32.xlu0 %v829, 124
      %v937 = vpop.permute.xlu0 %936
      %938 = vrot.lane.b32.xlu0 %v834, 124
      %v939 = vpop.permute.xlu0 %938
      %940 = vrot.lane.b32.xlu0 %v837, 124
      %v941 = vpop.permute.xlu0 %940
      %942 = vrot.lane.b32.xlu0 %v842, 124
      %v943 = vpop.permute.xlu0 %942
      %944 = vrot.lane.b32.xlu0 %v845, 124
      %v945 = vpop.permute.xlu0 %944
      %946 = vrot.lane.b32.xlu0 %v850, 124
      %v947 = vpop.permute.xlu0 %946
      %948 = vrot.lane.b32.xlu0 %v853, 124
      %v949 = vpop.permute.xlu0 %948
      %950 = vrot.lane.b32.xlu0 %v858, 124
      %v951 = vpop.permute.xlu0 %950
      %952 = vrot.lane.b32.xlu0 %v861, 124
      %v953 = vpop.permute.xlu0 %952
      %v984 = vmax.f32 %v746, %v895
      %v985 = vmax.f32 %v749, %v897
      %v986 = vmax.f32 %v754, %v899
      %v987 = vmax.f32 %v757, %v901
      %v988 = vmax.f32 %v762, %v903
      %v989 = vmax.f32 %v765, %v905
      %v990 = vmax.f32 %v770, %v907
      %v991 = vmax.f32 %v773, %v909
      %v992 = vmax.f32 %v778, %v911
      %v993 = vmax.f32 %v781, %v913
      %v994 = vmax.f32 %v786, %v915
      %v995 = vmax.f32 %v789, %v917
      %v996 = vmax.f32 %v794, %v919
      %v997 = vmax.f32 %v797, %v921
      %v998 = vmax.f32 %v802, %v923
      %v999 = vmax.f32 %v805, %v925
      %v1000 = vmax.f32 %v810, %v927
      %v1001 = vmax.f32 %v813, %v929
      %v1002 = vmax.f32 %v818, %v931
      %v1003 = vmax.f32 %v821, %v933
      %v1004 = vmax.f32 %v826, %v935
      %v1005 = vmax.f32 %v829, %v937
      %v1006 = vmax.f32 %v834, %v939
      %v1007 = vmax.f32 %v837, %v941
      %v1008 = vmax.f32 %v842, %v943
      %v1009 = vmax.f32 %v845, %v945
      %v1010 = vmax.f32 %v850, %v947
      %v1011 = vmax.f32 %v853, %v949
      %v1012 = vmax.f32 %v858, %v951
      %v1013 = vmax.f32 %v861, %v953
      %1044 = vrot.lane.b32.xlu0 %v984, 124
      %v1045 = vpop.permute.xlu0 %1044
      %1046 = vrot.lane.b32.xlu0 %v985, 124
      %v1047 = vpop.permute.xlu0 %1046
      %1048 = vrot.lane.b32.xlu0 %v986, 124
      %v1049 = vpop.permute.xlu0 %1048
      %1050 = vrot.lane.b32.xlu0 %v987, 124
      %v1051 = vpop.permute.xlu0 %1050
      %1052 = vrot.lane.b32.xlu0 %v988, 124
      %v1053 = vpop.permute.xlu0 %1052
      %1054 = vrot.lane.b32.xlu0 %v989, 124
      %v1055 = vpop.permute.xlu0 %1054
      %1056 = vrot.lane.b32.xlu0 %v990, 124
      %v1057 = vpop.permute.xlu0 %1056
      %1058 = vrot.lane.b32.xlu0 %v991, 124
      %v1059 = vpop.permute.xlu0 %1058
      %1060 = vrot.lane.b32.xlu0 %v992, 124
      %v1061 = vpop.permute.xlu0 %1060
      %1062 = vrot.lane.b32.xlu0 %v993, 124
      %v1063 = vpop.permute.xlu0 %1062
      %1064 = vrot.lane.b32.xlu0 %v994, 124
      %v1065 = vpop.permute.xlu0 %1064
      %1066 = vrot.lane.b32.xlu0 %v995, 124
      %v1067 = vpop.permute.xlu0 %1066
      %1068 = vrot.lane.b32.xlu0 %v996, 124
      %v1069 = vpop.permute.xlu0 %1068
      %1070 = vrot.lane.b32.xlu0 %v997, 124
      %v1071 = vpop.permute.xlu0 %1070
      %1072 = vrot.lane.b32.xlu0 %v998, 124
      %v1073 = vpop.permute.xlu0 %1072
      %1074 = vrot.lane.b32.xlu0 %v999, 124
      %v1075 = vpop.permute.xlu0 %1074
      %1076 = vrot.lane.b32.xlu0 %v1000, 124
      %v1077 = vpop.permute.xlu0 %1076
      %1078 = vrot.lane.b32.xlu0 %v1001, 124
      %v1079 = vpop.permute.xlu0 %1078
      %1080 = vrot.lane.b32.xlu0 %v1002, 124
      %v1081 = vpop.permute.xlu0 %1080
      %1082 = vrot.lane.b32.xlu0 %v1003, 124
      %v1083 = vpop.permute.xlu0 %1082
      %1084 = vrot.lane.b32.xlu0 %v1004, 124
      %v1085 = vpop.permute.xlu0 %1084
      %1086 = vrot.lane.b32.xlu0 %v1005, 124
      %v1087 = vpop.permute.xlu0 %1086
      %1088 = vrot.lane.b32.xlu0 %v1006, 124
      %v1089 = vpop.permute.xlu0 %1088
      %1090 = vrot.lane.b32.xlu0 %v1007, 124
      %v1091 = vpop.permute.xlu0 %1090
      %1092 = vrot.lane.b32.xlu0 %v1008, 124
      %v1093 = vpop.permute.xlu0 %1092
      %1094 = vrot.lane.b32.xlu0 %v1009, 124
      %v1095 = vpop.permute.xlu0 %1094
      %1096 = vrot.lane.b32.xlu0 %v1010, 124
      %v1097 = vpop.permute.xlu0 %1096
      %1098 = vrot.lane.b32.xlu0 %v1011, 124
      %v1099 = vpop.permute.xlu0 %1098
      %1100 = vrot.lane.b32.xlu0 %v1012, 124
      %v1101 = vpop.permute.xlu0 %1100
      %1102 = vrot.lane.b32.xlu0 %v1013, 124
      %v1103 = vpop.permute.xlu0 %1102
      %1134 = vrot.lane.b32.xlu0 %v984, 120
      %v1135 = vpop.permute.xlu0 %1134
      %1136 = vrot.lane.b32.xlu0 %v985, 120
      %v1137 = vpop.permute.xlu0 %1136
      %1138 = vrot.lane.b32.xlu0 %v986, 120
      %v1139 = vpop.permute.xlu0 %1138
      %1140 = vrot.lane.b32.xlu0 %v987, 120
      %v1141 = vpop.permute.xlu0 %1140
      %1142 = vrot.lane.b32.xlu0 %v988, 120
      %v1143 = vpop.permute.xlu0 %1142
      %1144 = vrot.lane.b32.xlu0 %v989, 120
      %v1145 = vpop.permute.xlu0 %1144
      %1146 = vrot.lane.b32.xlu0 %v990, 120
      %v1147 = vpop.permute.xlu0 %1146
      %1148 = vrot.lane.b32.xlu0 %v991, 120
      %v1149 = vpop.permute.xlu0 %1148
      %1150 = vrot.lane.b32.xlu0 %v992, 120
      %v1151 = vpop.permute.xlu0 %1150
      %1152 = vrot.lane.b32.xlu0 %v993, 120
      %v1153 = vpop.permute.xlu0 %1152
      %1154 = vrot.lane.b32.xlu0 %v994, 120
      %v1155 = vpop.permute.xlu0 %1154
      %1156 = vrot.lane.b32.xlu0 %v995, 120
      %v1157 = vpop.permute.xlu0 %1156
      %1158 = vrot.lane.b32.xlu0 %v996, 120
      %v1159 = vpop.permute.xlu0 %1158
      %1160 = vrot.lane.b32.xlu0 %v997, 120
      %v1161 = vpop.permute.xlu0 %1160
      %1162 = vrot.lane.b32.xlu0 %v998, 120
      %v1163 = vpop.permute.xlu0 %1162
      %1164 = vrot.lane.b32.xlu0 %v999, 120
      %v1165 = vpop.permute.xlu0 %1164
      %1166 = vrot.lane.b32.xlu0 %v1000, 120
      %v1167 = vpop.permute.xlu0 %1166
      %1168 = vrot.lane.b32.xlu0 %v1001, 120
      %v1169 = vpop.permute.xlu0 %1168
      %1170 = vrot.lane.b32.xlu0 %v1002, 120
      %v1171 = vpop.permute.xlu0 %1170
      %1172 = vrot.lane.b32.xlu0 %v1003, 120
      %v1173 = vpop.permute.xlu0 %1172
      %1174 = vrot.lane.b32.xlu0 %v1004, 120
      %v1175 = vpop.permute.xlu0 %1174
      %1176 = vrot.lane.b32.xlu0 %v1005, 120
      %v1177 = vpop.permute.xlu0 %1176
      %1178 = vrot.lane.b32.xlu0 %v1006, 120
      %v1179 = vpop.permute.xlu0 %1178
      %1180 = vrot.lane.b32.xlu0 %v1007, 120
      %v1181 = vpop.permute.xlu0 %1180
      %1182 = vrot.lane.b32.xlu0 %v1008, 120
      %v1183 = vpop.permute.xlu0 %1182
      %1184 = vrot.lane.b32.xlu0 %v1009, 120
      %v1185 = vpop.permute.xlu0 %1184
      %1186 = vrot.lane.b32.xlu0 %v1010, 120
      %v1187 = vpop.permute.xlu0 %1186
      %1188 = vrot.lane.b32.xlu0 %v1011, 120
      %v1189 = vpop.permute.xlu0 %1188
      %1190 = vrot.lane.b32.xlu0 %v1012, 120
      %v1191 = vpop.permute.xlu0 %1190
      %1192 = vrot.lane.b32.xlu0 %v1013, 120
      %v1193 = vpop.permute.xlu0 %1192
      %1224 = vrot.lane.b32.xlu0 %v984, 116
      %v1225 = vpop.permute.xlu0 %1224
      %1226 = vrot.lane.b32.xlu0 %v985, 116
      %v1227 = vpop.permute.xlu0 %1226
      %1228 = vrot.lane.b32.xlu0 %v986, 116
      %v1229 = vpop.permute.xlu0 %1228
      %1230 = vrot.lane.b32.xlu0 %v987, 116
      %v1231 = vpop.permute.xlu0 %1230
      %1232 = vrot.lane.b32.xlu0 %v988, 116
      %v1233 = vpop.permute.xlu0 %1232
      %1234 = vrot.lane.b32.xlu0 %v989, 116
      %v1235 = vpop.permute.xlu0 %1234
      %1236 = vrot.lane.b32.xlu0 %v990, 116
      %v1237 = vpop.permute.xlu0 %1236
      %1238 = vrot.lane.b32.xlu0 %v991, 116
      %v1239 = vpop.permute.xlu0 %1238
      %1240 = vrot.lane.b32.xlu0 %v992, 116
      %v1241 = vpop.permute.xlu0 %1240
      %1242 = vrot.lane.b32.xlu0 %v993, 116
      %v1243 = vpop.permute.xlu0 %1242
      %1244 = vrot.lane.b32.xlu0 %v994, 116
      %v1245 = vpop.permute.xlu0 %1244
      %1246 = vrot.lane.b32.xlu0 %v995, 116
      %v1247 = vpop.permute.xlu0 %1246
      %1248 = vrot.lane.b32.xlu0 %v996, 116
      %v1249 = vpop.permute.xlu0 %1248
      %1250 = vrot.lane.b32.xlu0 %v997, 116
      %v1251 = vpop.permute.xlu0 %1250
      %1252 = vrot.lane.b32.xlu0 %v998, 116
      %v1253 = vpop.permute.xlu0 %1252
      %1254 = vrot.lane.b32.xlu0 %v999, 116
      %v1255 = vpop.permute.xlu0 %1254
      %1256 = vrot.lane.b32.xlu0 %v1000, 116
      %v1257 = vpop.permute.xlu0 %1256
      %1258 = vrot.lane.b32.xlu0 %v1001, 116
      %v1259 = vpop.permute.xlu0 %1258
      %1260 = vrot.lane.b32.xlu0 %v1002, 116
      %v1261 = vpop.permute.xlu0 %1260
      %1262 = vrot.lane.b32.xlu0 %v1003, 116
      %v1263 = vpop.permute.xlu0 %1262
      %1264 = vrot.lane.b32.xlu0 %v1004, 116
      %v1265 = vpop.permute.xlu0 %1264
      %1266 = vrot.lane.b32.xlu0 %v1005, 116
      %v1267 = vpop.permute.xlu0 %1266
      %1268 = vrot.lane.b32.xlu0 %v1006, 116
      %v1269 = vpop.permute.xlu0 %1268
      %1270 = vrot.lane.b32.xlu0 %v1007, 116
      %v1271 = vpop.permute.xlu0 %1270
      %1272 = vrot.lane.b32.xlu0 %v1008, 116
      %v1273 = vpop.permute.xlu0 %1272
      %1274 = vrot.lane.b32.xlu0 %v1009, 116
      %v1275 = vpop.permute.xlu0 %1274
      %1276 = vrot.lane.b32.xlu0 %v1010, 116
      %v1277 = vpop.permute.xlu0 %1276
      %1278 = vrot.lane.b32.xlu0 %v1011, 116
      %v1279 = vpop.permute.xlu0 %1278
      %1280 = vrot.lane.b32.xlu0 %v1012, 116
      %v1281 = vpop.permute.xlu0 %1280
      %1282 = vrot.lane.b32.xlu0 %v1013, 116
      %v1283 = vpop.permute.xlu0 %1282
      %1314 = vrot.lane.b32.xlu0 %v984, 112
      %v1315 = vpop.permute.xlu0 %1314
      %1316 = vrot.lane.b32.xlu0 %v985, 112
      %v1317 = vpop.permute.xlu0 %1316
      %1318 = vrot.lane.b32.xlu0 %v986, 112
      %v1319 = vpop.permute.xlu0 %1318
      %1320 = vrot.lane.b32.xlu0 %v987, 112
      %v1321 = vpop.permute.xlu0 %1320
      %1322 = vrot.lane.b32.xlu0 %v988, 112
      %v1323 = vpop.permute.xlu0 %1322
      %1324 = vrot.lane.b32.xlu0 %v989, 112
      %v1325 = vpop.permute.xlu0 %1324
      %1326 = vrot.lane.b32.xlu0 %v990, 112
      %v1327 = vpop.permute.xlu0 %1326
      %1328 = vrot.lane.b32.xlu0 %v991, 112
      %v1329 = vpop.permute.xlu0 %1328
      %1330 = vrot.lane.b32.xlu0 %v992, 112
      %v1331 = vpop.permute.xlu0 %1330
      %1332 = vrot.lane.b32.xlu0 %v993, 112
      %v1333 = vpop.permute.xlu0 %1332
      %1334 = vrot.lane.b32.xlu0 %v994, 112
      %v1335 = vpop.permute.xlu0 %1334
      %1336 = vrot.lane.b32.xlu0 %v995, 112
      %v1337 = vpop.permute.xlu0 %1336
      %1338 = vrot.lane.b32.xlu0 %v996, 112
      %v1339 = vpop.permute.xlu0 %1338
      %1340 = vrot.lane.b32.xlu0 %v997, 112
      %v1341 = vpop.permute.xlu0 %1340
      %1342 = vrot.lane.b32.xlu0 %v998, 112
      %v1343 = vpop.permute.xlu0 %1342
      %1344 = vrot.lane.b32.xlu0 %v999, 112
      %v1345 = vpop.permute.xlu0 %1344
      %1346 = vrot.lane.b32.xlu0 %v1000, 112
      %v1347 = vpop.permute.xlu0 %1346
      %1348 = vrot.lane.b32.xlu0 %v1001, 112
      %v1349 = vpop.permute.xlu0 %1348
      %1350 = vrot.lane.b32.xlu0 %v1002, 112
      %v1351 = vpop.permute.xlu0 %1350
      %1352 = vrot.lane.b32.xlu0 %v1003, 112
      %v1353 = vpop.permute.xlu0 %1352
      %1354 = vrot.lane.b32.xlu0 %v1004, 112
      %v1355 = vpop.permute.xlu0 %1354
      %1356 = vrot.lane.b32.xlu0 %v1005, 112
      %v1357 = vpop.permute.xlu0 %1356
      %1358 = vrot.lane.b32.xlu0 %v1006, 112
      %v1359 = vpop.permute.xlu0 %1358
      %1360 = vrot.lane.b32.xlu0 %v1007, 112
      %v1361 = vpop.permute.xlu0 %1360
      %1362 = vrot.lane.b32.xlu0 %v1008, 112
      %v1363 = vpop.permute.xlu0 %1362
      %1364 = vrot.lane.b32.xlu0 %v1009, 112
      %v1365 = vpop.permute.xlu0 %1364
      %1366 = vrot.lane.b32.xlu0 %v1010, 112
      %v1367 = vpop.permute.xlu0 %1366
      %1368 = vrot.lane.b32.xlu0 %v1011, 112
      %v1369 = vpop.permute.xlu0 %1368
      %1370 = vrot.lane.b32.xlu0 %v1012, 112
      %v1371 = vpop.permute.xlu0 %1370
      %1372 = vrot.lane.b32.xlu0 %v1013, 112
      %v1373 = vpop.permute.xlu0 %1372
      %1404 = vrot.lane.b32.xlu0 %v984, 108
      %v1405 = vpop.permute.xlu0 %1404
      %1406 = vrot.lane.b32.xlu0 %v985, 108
      %v1407 = vpop.permute.xlu0 %1406
      %1408 = vrot.lane.b32.xlu0 %v986, 108
      %v1409 = vpop.permute.xlu0 %1408
      %1410 = vrot.lane.b32.xlu0 %v987, 108
      %v1411 = vpop.permute.xlu0 %1410
      %1412 = vrot.lane.b32.xlu0 %v988, 108
      %v1413 = vpop.permute.xlu0 %1412
      %1414 = vrot.lane.b32.xlu0 %v989, 108
      %v1415 = vpop.permute.xlu0 %1414
      %1416 = vrot.lane.b32.xlu0 %v990, 108
      %v1417 = vpop.permute.xlu0 %1416
      %1418 = vrot.lane.b32.xlu0 %v991, 108
      %v1419 = vpop.permute.xlu0 %1418
      %1420 = vrot.lane.b32.xlu0 %v992, 108
      %v1421 = vpop.permute.xlu0 %1420
      %1422 = vrot.lane.b32.xlu0 %v993, 108
      %v1423 = vpop.permute.xlu0 %1422
      %1424 = vrot.lane.b32.xlu0 %v994, 108
      %v1425 = vpop.permute.xlu0 %1424
      %1426 = vrot.lane.b32.xlu0 %v995, 108
      %v1427 = vpop.permute.xlu0 %1426
      %1428 = vrot.lane.b32.xlu0 %v996, 108
      %v1429 = vpop.permute.xlu0 %1428
      %1430 = vrot.lane.b32.xlu0 %v997, 108
      %v1431 = vpop.permute.xlu0 %1430
      %1432 = vrot.lane.b32.xlu0 %v998, 108
      %v1433 = vpop.permute.xlu0 %1432
      %1434 = vrot.lane.b32.xlu0 %v999, 108
      %v1435 = vpop.permute.xlu0 %1434
      %1436 = vrot.lane.b32.xlu0 %v1000, 108
      %v1437 = vpop.permute.xlu0 %1436
      %1438 = vrot.lane.b32.xlu0 %v1001, 108
      %v1439 = vpop.permute.xlu0 %1438
      %1440 = vrot.lane.b32.xlu0 %v1002, 108
      %v1441 = vpop.permute.xlu0 %1440
      %1442 = vrot.lane.b32.xlu0 %v1003, 108
      %v1443 = vpop.permute.xlu0 %1442
      %1444 = vrot.lane.b32.xlu0 %v1004, 108
      %v1445 = vpop.permute.xlu0 %1444
      %1446 = vrot.lane.b32.xlu0 %v1005, 108
      %v1447 = vpop.permute.xlu0 %1446
      %1448 = vrot.lane.b32.xlu0 %v1006, 108
      %v1449 = vpop.permute.xlu0 %1448
      %1450 = vrot.lane.b32.xlu0 %v1007, 108
      %v1451 = vpop.permute.xlu0 %1450
      %1452 = vrot.lane.b32.xlu0 %v1008, 108
      %v1453 = vpop.permute.xlu0 %1452
      %1454 = vrot.lane.b32.xlu0 %v1009, 108
      %v1455 = vpop.permute.xlu0 %1454
      %1456 = vrot.lane.b32.xlu0 %v1010, 108
      %v1457 = vpop.permute.xlu0 %1456
      %1458 = vrot.lane.b32.xlu0 %v1011, 108
      %v1459 = vpop.permute.xlu0 %1458
      %1460 = vrot.lane.b32.xlu0 %v1012, 108
      %v1461 = vpop.permute.xlu0 %1460
      %1462 = vrot.lane.b32.xlu0 %v1013, 108
      %v1463 = vpop.permute.xlu0 %1462
      %1494 = vrot.lane.b32.xlu0 %v984, 104
      %v1495 = vpop.permute.xlu0 %1494
      %1496 = vrot.lane.b32.xlu0 %v985, 104
      %v1497 = vpop.permute.xlu0 %1496
      %1498 = vrot.lane.b32.xlu0 %v986, 104
      %v1499 = vpop.permute.xlu0 %1498
      %1500 = vrot.lane.b32.xlu0 %v987, 104
      %v1501 = vpop.permute.xlu0 %1500
      %1502 = vrot.lane.b32.xlu0 %v988, 104
      %v1503 = vpop.permute.xlu0 %1502
      %1504 = vrot.lane.b32.xlu0 %v989, 104
      %v1505 = vpop.permute.xlu0 %1504
      %1506 = vrot.lane.b32.xlu0 %v990, 104
      %v1507 = vpop.permute.xlu0 %1506
      %1508 = vrot.lane.b32.xlu0 %v991, 104
      %v1509 = vpop.permute.xlu0 %1508
      %1510 = vrot.lane.b32.xlu0 %v992, 104
      %v1511 = vpop.permute.xlu0 %1510
      %1512 = vrot.lane.b32.xlu0 %v993, 104
      %v1513 = vpop.permute.xlu0 %1512
      %1514 = vrot.lane.b32.xlu0 %v994, 104
      %v1515 = vpop.permute.xlu0 %1514
      %1516 = vrot.lane.b32.xlu0 %v995, 104
      %v1517 = vpop.permute.xlu0 %1516
      %1518 = vrot.lane.b32.xlu0 %v996, 104
      %v1519 = vpop.permute.xlu0 %1518
      %1520 = vrot.lane.b32.xlu0 %v997, 104
      %v1521 = vpop.permute.xlu0 %1520
      %1522 = vrot.lane.b32.xlu0 %v998, 104
      %v1523 = vpop.permute.xlu0 %1522
      %1524 = vrot.lane.b32.xlu0 %v999, 104
      %v1525 = vpop.permute.xlu0 %1524
      %1526 = vrot.lane.b32.xlu0 %v1000, 104
      %v1527 = vpop.permute.xlu0 %1526
      %1528 = vrot.lane.b32.xlu0 %v1001, 104
      %v1529 = vpop.permute.xlu0 %1528
      %1530 = vrot.lane.b32.xlu0 %v1002, 104
      %v1531 = vpop.permute.xlu0 %1530
      %1532 = vrot.lane.b32.xlu0 %v1003, 104
      %v1533 = vpop.permute.xlu0 %1532
      %1534 = vrot.lane.b32.xlu0 %v1004, 104
      %v1535 = vpop.permute.xlu0 %1534
      %1536 = vrot.lane.b32.xlu0 %v1005, 104
      %v1537 = vpop.permute.xlu0 %1536
      %1538 = vrot.lane.b32.xlu0 %v1006, 104
      %v1539 = vpop.permute.xlu0 %1538
      %1540 = vrot.lane.b32.xlu0 %v1007, 104
      %v1541 = vpop.permute.xlu0 %1540
      %1542 = vrot.lane.b32.xlu0 %v1008, 104
      %v1543 = vpop.permute.xlu0 %1542
      %1544 = vrot.lane.b32.xlu0 %v1009, 104
      %v1545 = vpop.permute.xlu0 %1544
      %1546 = vrot.lane.b32.xlu0 %v1010, 104
      %v1547 = vpop.permute.xlu0 %1546
      %1548 = vrot.lane.b32.xlu0 %v1011, 104
      %v1549 = vpop.permute.xlu0 %1548
      %1550 = vrot.lane.b32.xlu0 %v1012, 104
      %v1551 = vpop.permute.xlu0 %1550
      %1552 = vrot.lane.b32.xlu0 %v1013, 104
      %v1553 = vpop.permute.xlu0 %1552
      %1584 = vrot.lane.b32.xlu0 %v984, 100
      %v1585 = vpop.permute.xlu0 %1584
      %1586 = vrot.lane.b32.xlu0 %v985, 100
      %v1587 = vpop.permute.xlu0 %1586
      %1588 = vrot.lane.b32.xlu0 %v986, 100
      %v1589 = vpop.permute.xlu0 %1588
      %1590 = vrot.lane.b32.xlu0 %v987, 100
      %v1591 = vpop.permute.xlu0 %1590
      %1592 = vrot.lane.b32.xlu0 %v988, 100
      %v1593 = vpop.permute.xlu0 %1592
      %1594 = vrot.lane.b32.xlu0 %v989, 100
      %v1595 = vpop.permute.xlu0 %1594
      %1596 = vrot.lane.b32.xlu0 %v990, 100
      %v1597 = vpop.permute.xlu0 %1596
      %1598 = vrot.lane.b32.xlu0 %v991, 100
      %v1599 = vpop.permute.xlu0 %1598
      %1600 = vrot.lane.b32.xlu0 %v992, 100
      %v1601 = vpop.permute.xlu0 %1600
      %1602 = vrot.lane.b32.xlu0 %v993, 100
      %v1603 = vpop.permute.xlu0 %1602
      %1604 = vrot.lane.b32.xlu0 %v994, 100
      %v1605 = vpop.permute.xlu0 %1604
      %1606 = vrot.lane.b32.xlu0 %v995, 100
      %v1607 = vpop.permute.xlu0 %1606
      %1608 = vrot.lane.b32.xlu0 %v996, 100
      %v1609 = vpop.permute.xlu0 %1608
      %1610 = vrot.lane.b32.xlu0 %v997, 100
      %v1611 = vpop.permute.xlu0 %1610
      %1612 = vrot.lane.b32.xlu0 %v998, 100
      %v1613 = vpop.permute.xlu0 %1612
      %1614 = vrot.lane.b32.xlu0 %v999, 100
      %v1615 = vpop.permute.xlu0 %1614
      %1616 = vrot.lane.b32.xlu0 %v1000, 100
      %v1617 = vpop.permute.xlu0 %1616
      %1618 = vrot.lane.b32.xlu0 %v1001, 100
      %v1619 = vpop.permute.xlu0 %1618
      %1620 = vrot.lane.b32.xlu0 %v1002, 100
      %v1621 = vpop.permute.xlu0 %1620
      %1622 = vrot.lane.b32.xlu0 %v1003, 100
      %v1623 = vpop.permute.xlu0 %1622
      %1624 = vrot.lane.b32.xlu0 %v1004, 100
      %v1625 = vpop.permute.xlu0 %1624
      %1626 = vrot.lane.b32.xlu0 %v1005, 100
      %v1627 = vpop.permute.xlu0 %1626
      %1628 = vrot.lane.b32.xlu0 %v1006, 100
      %v1629 = vpop.permute.xlu0 %1628
      %1630 = vrot.lane.b32.xlu0 %v1007, 100
      %v1631 = vpop.permute.xlu0 %1630
      %1632 = vrot.lane.b32.xlu0 %v1008, 100
      %v1633 = vpop.permute.xlu0 %1632
      %1634 = vrot.lane.b32.xlu0 %v1009, 100
      %v1635 = vpop.permute.xlu0 %1634
      %1636 = vrot.lane.b32.xlu0 %v1010, 100
      %v1637 = vpop.permute.xlu0 %1636
      %1638 = vrot.lane.b32.xlu0 %v1011, 100
      %v1639 = vpop.permute.xlu0 %1638
      %1640 = vrot.lane.b32.xlu0 %v1012, 100
      %v1641 = vpop.permute.xlu0 %1640
      %1642 = vrot.lane.b32.xlu0 %v1013, 100
      %v1643 = vpop.permute.xlu0 %1642
      %1674 = vrot.lane.b32.xlu0 %v984, 96
      %v1675 = vpop.permute.xlu0 %1674
      %1676 = vrot.lane.b32.xlu0 %v985, 96
      %v1677 = vpop.permute.xlu0 %1676
      %1678 = vrot.lane.b32.xlu0 %v986, 96
      %v1679 = vpop.permute.xlu0 %1678
      %1680 = vrot.lane.b32.xlu0 %v987, 96
      %v1681 = vpop.permute.xlu0 %1680
      %1682 = vrot.lane.b32.xlu0 %v988, 96
      %v1683 = vpop.permute.xlu0 %1682
      %1684 = vrot.lane.b32.xlu0 %v989, 96
      %v1685 = vpop.permute.xlu0 %1684
      %1686 = vrot.lane.b32.xlu0 %v990, 96
      %v1687 = vpop.permute.xlu0 %1686
      %1688 = vrot.lane.b32.xlu0 %v991, 96
      %v1689 = vpop.permute.xlu0 %1688
      %1690 = vrot.lane.b32.xlu0 %v992, 96
      %v1691 = vpop.permute.xlu0 %1690
      %1692 = vrot.lane.b32.xlu0 %v993, 96
      %v1693 = vpop.permute.xlu0 %1692
      %1694 = vrot.lane.b32.xlu0 %v994, 96
      %v1695 = vpop.permute.xlu0 %1694
      %1696 = vrot.lane.b32.xlu0 %v995, 96
      %v1697 = vpop.permute.xlu0 %1696
      %1698 = vrot.lane.b32.xlu0 %v996, 96
      %v1699 = vpop.permute.xlu0 %1698
      %1700 = vrot.lane.b32.xlu0 %v997, 96
      %v1701 = vpop.permute.xlu0 %1700
      %1702 = vrot.lane.b32.xlu0 %v998, 96
      %v1703 = vpop.permute.xlu0 %1702
      %1704 = vrot.lane.b32.xlu0 %v999, 96
      %v1705 = vpop.permute.xlu0 %1704
      %1706 = vrot.lane.b32.xlu0 %v1000, 96
      %v1707 = vpop.permute.xlu0 %1706
      %1708 = vrot.lane.b32.xlu0 %v1001, 96
      %v1709 = vpop.permute.xlu0 %1708
      %1710 = vrot.lane.b32.xlu0 %v1002, 96
      %v1711 = vpop.permute.xlu0 %1710
      %1712 = vrot.lane.b32.xlu0 %v1003, 96
      %v1713 = vpop.permute.xlu0 %1712
      %1714 = vrot.lane.b32.xlu0 %v1004, 96
      %v1715 = vpop.permute.xlu0 %1714
      %1716 = vrot.lane.b32.xlu0 %v1005, 96
      %v1717 = vpop.permute.xlu0 %1716
      %1718 = vrot.lane.b32.xlu0 %v1006, 96
      %v1719 = vpop.permute.xlu0 %1718
      %1720 = vrot.lane.b32.xlu0 %v1007, 96
      %v1721 = vpop.permute.xlu0 %1720
      %1722 = vrot.lane.b32.xlu0 %v1008, 96
      %v1723 = vpop.permute.xlu0 %1722
      %1724 = vrot.lane.b32.xlu0 %v1009, 96
      %v1725 = vpop.permute.xlu0 %1724
      %1726 = vrot.lane.b32.xlu0 %v1010, 96
      %v1727 = vpop.permute.xlu0 %1726
      %1728 = vrot.lane.b32.xlu0 %v1011, 96
      %v1729 = vpop.permute.xlu0 %1728
      %1730 = vrot.lane.b32.xlu0 %v1012, 96
      %v1731 = vpop.permute.xlu0 %1730
      %1732 = vrot.lane.b32.xlu0 %v1013, 96
      %v1733 = vpop.permute.xlu0 %1732
      %1764 = vrot.lane.b32.xlu0 %v984, 92
      %v1765 = vpop.permute.xlu0 %1764
      %1766 = vrot.lane.b32.xlu0 %v985, 92
      %v1767 = vpop.permute.xlu0 %1766
      %1768 = vrot.lane.b32.xlu0 %v986, 92
      %v1769 = vpop.permute.xlu0 %1768
      %1770 = vrot.lane.b32.xlu0 %v987, 92
      %v1771 = vpop.permute.xlu0 %1770
      %1772 = vrot.lane.b32.xlu0 %v988, 92
      %v1773 = vpop.permute.xlu0 %1772
      %1774 = vrot.lane.b32.xlu0 %v989, 92
      %v1775 = vpop.permute.xlu0 %1774
      %1776 = vrot.lane.b32.xlu0 %v990, 92
      %v1777 = vpop.permute.xlu0 %1776
      %1778 = vrot.lane.b32.xlu0 %v991, 92
      %v1779 = vpop.permute.xlu0 %1778
      %1780 = vrot.lane.b32.xlu0 %v992, 92
      %v1781 = vpop.permute.xlu0 %1780
      %1782 = vrot.lane.b32.xlu0 %v993, 92
      %v1783 = vpop.permute.xlu0 %1782
      %1784 = vrot.lane.b32.xlu0 %v994, 92
      %v1785 = vpop.permute.xlu0 %1784
      %1786 = vrot.lane.b32.xlu0 %v995, 92
      %v1787 = vpop.permute.xlu0 %1786
      %1788 = vrot.lane.b32.xlu0 %v996, 92
      %v1789 = vpop.permute.xlu0 %1788
      %1790 = vrot.lane.b32.xlu0 %v997, 92
      %v1791 = vpop.permute.xlu0 %1790
      %1792 = vrot.lane.b32.xlu0 %v998, 92
      %v1793 = vpop.permute.xlu0 %1792
      %1794 = vrot.lane.b32.xlu0 %v999, 92
      %v1795 = vpop.permute.xlu0 %1794
      %1796 = vrot.lane.b32.xlu0 %v1000, 92
      %v1797 = vpop.permute.xlu0 %1796
      %1798 = vrot.lane.b32.xlu0 %v1001, 92
      %v1799 = vpop.permute.xlu0 %1798
      %1800 = vrot.lane.b32.xlu0 %v1002, 92
      %v1801 = vpop.permute.xlu0 %1800
      %1802 = vrot.lane.b32.xlu0 %v1003, 92
      %v1803 = vpop.permute.xlu0 %1802
      %1804 = vrot.lane.b32.xlu0 %v1004, 92
      %v1805 = vpop.permute.xlu0 %1804
      %1806 = vrot.lane.b32.xlu0 %v1005, 92
      %v1807 = vpop.permute.xlu0 %1806
      %1808 = vrot.lane.b32.xlu0 %v1006, 92
      %v1809 = vpop.permute.xlu0 %1808
      %1810 = vrot.lane.b32.xlu0 %v1007, 92
      %v1811 = vpop.permute.xlu0 %1810
      %1812 = vrot.lane.b32.xlu0 %v1008, 92
      %v1813 = vpop.permute.xlu0 %1812
      %1814 = vrot.lane.b32.xlu0 %v1009, 92
      %v1815 = vpop.permute.xlu0 %1814
      %1816 = vrot.lane.b32.xlu0 %v1010, 92
      %v1817 = vpop.permute.xlu0 %1816
      %1818 = vrot.lane.b32.xlu0 %v1011, 92
      %v1819 = vpop.permute.xlu0 %1818
      %1820 = vrot.lane.b32.xlu0 %v1012, 92
      %v1821 = vpop.permute.xlu0 %1820
      %1822 = vrot.lane.b32.xlu0 %v1013, 92
      %v1823 = vpop.permute.xlu0 %1822
      %1854 = vrot.lane.b32.xlu0 %v984, 88
      %v1855 = vpop.permute.xlu0 %1854
      %1856 = vrot.lane.b32.xlu0 %v985, 88
      %v1857 = vpop.permute.xlu0 %1856
      %1858 = vrot.lane.b32.xlu0 %v986, 88
      %v1859 = vpop.permute.xlu0 %1858
      %1860 = vrot.lane.b32.xlu0 %v987, 88
      %v1861 = vpop.permute.xlu0 %1860
      %1862 = vrot.lane.b32.xlu0 %v988, 88
      %v1863 = vpop.permute.xlu0 %1862
      %1864 = vrot.lane.b32.xlu0 %v989, 88
      %v1865 = vpop.permute.xlu0 %1864
      %1866 = vrot.lane.b32.xlu0 %v990, 88
      %v1867 = vpop.permute.xlu0 %1866
      %1868 = vrot.lane.b32.xlu0 %v991, 88
      %v1869 = vpop.permute.xlu0 %1868
      %1870 = vrot.lane.b32.xlu0 %v992, 88
      %v1871 = vpop.permute.xlu0 %1870
      %1872 = vrot.lane.b32.xlu0 %v993, 88
      %v1873 = vpop.permute.xlu0 %1872
      %1874 = vrot.lane.b32.xlu0 %v994, 88
      %v1875 = vpop.permute.xlu0 %1874
      %1876 = vrot.lane.b32.xlu0 %v995, 88
      %v1877 = vpop.permute.xlu0 %1876
      %1878 = vrot.lane.b32.xlu0 %v996, 88
      %v1879 = vpop.permute.xlu0 %1878
      %1880 = vrot.lane.b32.xlu0 %v997, 88
      %v1881 = vpop.permute.xlu0 %1880
      %1882 = vrot.lane.b32.xlu0 %v998, 88
      %v1883 = vpop.permute.xlu0 %1882
      %1884 = vrot.lane.b32.xlu0 %v999, 88
      %v1885 = vpop.permute.xlu0 %1884
      %1886 = vrot.lane.b32.xlu0 %v1000, 88
      %v1887 = vpop.permute.xlu0 %1886
      %1888 = vrot.lane.b32.xlu0 %v1001, 88
      %v1889 = vpop.permute.xlu0 %1888
      %1890 = vrot.lane.b32.xlu0 %v1002, 88
      %v1891 = vpop.permute.xlu0 %1890
      %1892 = vrot.lane.b32.xlu0 %v1003, 88
      %v1893 = vpop.permute.xlu0 %1892
      %1894 = vrot.lane.b32.xlu0 %v1004, 88
      %v1895 = vpop.permute.xlu0 %1894
      %1896 = vrot.lane.b32.xlu0 %v1005, 88
      %v1897 = vpop.permute.xlu0 %1896
      %1898 = vrot.lane.b32.xlu0 %v1006, 88
      %v1899 = vpop.permute.xlu0 %1898
      %1900 = vrot.lane.b32.xlu0 %v1007, 88
      %v1901 = vpop.permute.xlu0 %1900
      %1902 = vrot.lane.b32.xlu0 %v1008, 88
      %v1903 = vpop.permute.xlu0 %1902
      %1904 = vrot.lane.b32.xlu0 %v1009, 88
      %v1905 = vpop.permute.xlu0 %1904
      %1906 = vrot.lane.b32.xlu0 %v1010, 88
      %v1907 = vpop.permute.xlu0 %1906
      %1908 = vrot.lane.b32.xlu0 %v1011, 88
      %v1909 = vpop.permute.xlu0 %1908
      %1910 = vrot.lane.b32.xlu0 %v1012, 88
      %v1911 = vpop.permute.xlu0 %1910
      %1912 = vrot.lane.b32.xlu0 %v1013, 88
      %v1913 = vpop.permute.xlu0 %1912
      %1944 = vrot.lane.b32.xlu0 %v984, 84
      %v1945 = vpop.permute.xlu0 %1944
      %1946 = vrot.lane.b32.xlu0 %v985, 84
      %v1947 = vpop.permute.xlu0 %1946
      %1948 = vrot.lane.b32.xlu0 %v986, 84
      %v1949 = vpop.permute.xlu0 %1948
      %1950 = vrot.lane.b32.xlu0 %v987, 84
      %v1951 = vpop.permute.xlu0 %1950
      %1952 = vrot.lane.b32.xlu0 %v988, 84
      %v1953 = vpop.permute.xlu0 %1952
      %1954 = vrot.lane.b32.xlu0 %v989, 84
      %v1955 = vpop.permute.xlu0 %1954
      %1956 = vrot.lane.b32.xlu0 %v990, 84
      %v1957 = vpop.permute.xlu0 %1956
      %1958 = vrot.lane.b32.xlu0 %v991, 84
      %v1959 = vpop.permute.xlu0 %1958
      %1960 = vrot.lane.b32.xlu0 %v992, 84
      %v1961 = vpop.permute.xlu0 %1960
      %1962 = vrot.lane.b32.xlu0 %v993, 84
      %v1963 = vpop.permute.xlu0 %1962
      %1964 = vrot.lane.b32.xlu0 %v994, 84
      %v1965 = vpop.permute.xlu0 %1964
      %1966 = vrot.lane.b32.xlu0 %v995, 84
      %v1967 = vpop.permute.xlu0 %1966
      %1968 = vrot.lane.b32.xlu0 %v996, 84
      %v1969 = vpop.permute.xlu0 %1968
      %1970 = vrot.lane.b32.xlu0 %v997, 84
      %v1971 = vpop.permute.xlu0 %1970
      %1972 = vrot.lane.b32.xlu0 %v998, 84
      %v1973 = vpop.permute.xlu0 %1972
      %1974 = vrot.lane.b32.xlu0 %v999, 84
      %v1975 = vpop.permute.xlu0 %1974
      %1976 = vrot.lane.b32.xlu0 %v1000, 84
      %v1977 = vpop.permute.xlu0 %1976
      %1978 = vrot.lane.b32.xlu0 %v1001, 84
      %v1979 = vpop.permute.xlu0 %1978
      %1980 = vrot.lane.b32.xlu0 %v1002, 84
      %v1981 = vpop.permute.xlu0 %1980
      %1982 = vrot.lane.b32.xlu0 %v1003, 84
      %v1983 = vpop.permute.xlu0 %1982
      %1984 = vrot.lane.b32.xlu0 %v1004, 84
      %v1985 = vpop.permute.xlu0 %1984
      %1986 = vrot.lane.b32.xlu0 %v1005, 84
      %v1987 = vpop.permute.xlu0 %1986
      %1988 = vrot.lane.b32.xlu0 %v1006, 84
      %v1989 = vpop.permute.xlu0 %1988
      %1990 = vrot.lane.b32.xlu0 %v1007, 84
      %v1991 = vpop.permute.xlu0 %1990
      %1992 = vrot.lane.b32.xlu0 %v1008, 84
      %v1993 = vpop.permute.xlu0 %1992
      %1994 = vrot.lane.b32.xlu0 %v1009, 84
      %v1995 = vpop.permute.xlu0 %1994
      %1996 = vrot.lane.b32.xlu0 %v1010, 84
      %v1997 = vpop.permute.xlu0 %1996
      %1998 = vrot.lane.b32.xlu0 %v1011, 84
      %v1999 = vpop.permute.xlu0 %1998
      %2000 = vrot.lane.b32.xlu0 %v1012, 84
      %v2001 = vpop.permute.xlu0 %2000
      %2002 = vrot.lane.b32.xlu0 %v1013, 84
      %v2003 = vpop.permute.xlu0 %2002
      %vm2034 = vcmask 31744
      %v2035 = vsel %vm2034, %v984, %v1045
      %v2036 = vsel %vm2034, %v985, %v1047
      %v2037 = vsel %vm2034, %v986, %v1049
      %v2038 = vsel %vm2034, %v987, %v1051
      %v2039 = vsel %vm2034, %v988, %v1053
      %v2040 = vsel %vm2034, %v989, %v1055
      %v2041 = vsel %vm2034, %v990, %v1057
      %v2042 = vsel %vm2034, %v991, %v1059
      %v2043 = vsel %vm2034, %v992, %v1061
      %v2044 = vsel %vm2034, %v993, %v1063
      %v2045 = vsel %vm2034, %v994, %v1065
      %v2046 = vsel %vm2034, %v995, %v1067
      %v2047 = vsel %vm2034, %v996, %v1069
      %v2048 = vsel %vm2034, %v997, %v1071
      %v2049 = vsel %vm2034, %v998, %v1073
      %v2050 = vsel %vm2034, %v999, %v1075
      %v2051 = vsel %vm2034, %v1000, %v1077
      %v2052 = vsel %vm2034, %v1001, %v1079
      %v2053 = vsel %vm2034, %v1002, %v1081
      %v2054 = vsel %vm2034, %v1003, %v1083
      %v2055 = vsel %vm2034, %v1004, %v1085
      %v2056 = vsel %vm2034, %v1005, %v1087
      %v2057 = vsel %vm2034, %v1006, %v1089
      %v2058 = vsel %vm2034, %v1007, %v1091
      %v2059 = vsel %vm2034, %v1008, %v1093
      %v2060 = vsel %vm2034, %v1009, %v1095
      %v2061 = vsel %vm2034, %v1010, %v1097
      %v2062 = vsel %vm2034, %v1011, %v1099
      %v2063 = vsel %vm2034, %v1012, %v1101
      %v2064 = vsel %vm2034, %v1013, %v1103
      %vm2065 = vcmask 64512
      %v2066 = vsel %vm2065, %v2035, %v1135
      %v2067 = vsel %vm2065, %v2036, %v1137
      %v2068 = vsel %vm2065, %v2037, %v1139
      %v2069 = vsel %vm2065, %v2038, %v1141
      %v2070 = vsel %vm2065, %v2039, %v1143
      %v2071 = vsel %vm2065, %v2040, %v1145
      %v2072 = vsel %vm2065, %v2041, %v1147
      %v2073 = vsel %vm2065, %v2042, %v1149
      %v2074 = vsel %vm2065, %v2043, %v1151
      %v2075 = vsel %vm2065, %v2044, %v1153
      %v2076 = vsel %vm2065, %v2045, %v1155
      %v2077 = vsel %vm2065, %v2046, %v1157
      %v2078 = vsel %vm2065, %v2047, %v1159
      %v2079 = vsel %vm2065, %v2048, %v1161
      %v2080 = vsel %vm2065, %v2049, %v1163
      %v2081 = vsel %vm2065, %v2050, %v1165
      %v2082 = vsel %vm2065, %v2051, %v1167
      %v2083 = vsel %vm2065, %v2052, %v1169
      %v2084 = vsel %vm2065, %v2053, %v1171
      %v2085 = vsel %vm2065, %v2054, %v1173
      %v2086 = vsel %vm2065, %v2055, %v1175
      %v2087 = vsel %vm2065, %v2056, %v1177
      %v2088 = vsel %vm2065, %v2057, %v1179
      %v2089 = vsel %vm2065, %v2058, %v1181
      %v2090 = vsel %vm2065, %v2059, %v1183
      %v2091 = vsel %vm2065, %v2060, %v1185
      %v2092 = vsel %vm2065, %v2061, %v1187
      %v2093 = vsel %vm2065, %v2062, %v1189
      %v2094 = vsel %vm2065, %v2063, %v1191
      %v2095 = vsel %vm2065, %v2064, %v1193
      %vm2096 = vcmask 97280
      %v2097 = vsel %vm2096, %v2066, %v1225
      %v2098 = vsel %vm2096, %v2067, %v1227
      %v2099 = vsel %vm2096, %v2068, %v1229
      %v2100 = vsel %vm2096, %v2069, %v1231
      %v2101 = vsel %vm2096, %v2070, %v1233
      %v2102 = vsel %vm2096, %v2071, %v1235
      %v2103 = vsel %vm2096, %v2072, %v1237
      %v2104 = vsel %vm2096, %v2073, %v1239
      %v2105 = vsel %vm2096, %v2074, %v1241
      %v2106 = vsel %vm2096, %v2075, %v1243
      %v2107 = vsel %vm2096, %v2076, %v1245
      %v2108 = vsel %vm2096, %v2077, %v1247
      %v2109 = vsel %vm2096, %v2078, %v1249
      %v2110 = vsel %vm2096, %v2079, %v1251
      %v2111 = vsel %vm2096, %v2080, %v1253
      %v2112 = vsel %vm2096, %v2081, %v1255
      %v2113 = vsel %vm2096, %v2082, %v1257
      %v2114 = vsel %vm2096, %v2083, %v1259
      %v2115 = vsel %vm2096, %v2084, %v1261
      %v2116 = vsel %vm2096, %v2085, %v1263
      %v2117 = vsel %vm2096, %v2086, %v1265
      %v2118 = vsel %vm2096, %v2087, %v1267
      %v2119 = vsel %vm2096, %v2088, %v1269
      %v2120 = vsel %vm2096, %v2089, %v1271
      %v2121 = vsel %vm2096, %v2090, %v1273
      %v2122 = vsel %vm2096, %v2091, %v1275
      %v2123 = vsel %vm2096, %v2092, %v1277
      %v2124 = vsel %vm2096, %v2093, %v1279
      %v2125 = vsel %vm2096, %v2094, %v1281
      %v2126 = vsel %vm2096, %v2095, %v1283
      %vm2127 = vcmask 130048
      %v2128 = vsel %vm2127, %v2097, %v1315
      %v2129 = vsel %vm2127, %v2098, %v1317
      %v2130 = vsel %vm2127, %v2099, %v1319
      %v2131 = vsel %vm2127, %v2100, %v1321
      %v2132 = vsel %vm2127, %v2101, %v1323
      %v2133 = vsel %vm2127, %v2102, %v1325
      %v2134 = vsel %vm2127, %v2103, %v1327
      %v2135 = vsel %vm2127, %v2104, %v1329
      %v2136 = vsel %vm2127, %v2105, %v1331
      %v2137 = vsel %vm2127, %v2106, %v1333
      %v2138 = vsel %vm2127, %v2107, %v1335
      %v2139 = vsel %vm2127, %v2108, %v1337
      %v2140 = vsel %vm2127, %v2109, %v1339
      %v2141 = vsel %vm2127, %v2110, %v1341
      %v2142 = vsel %vm2127, %v2111, %v1343
      %v2143 = vsel %vm2127, %v2112, %v1345
      %v2144 = vsel %vm2127, %v2113, %v1347
      %v2145 = vsel %vm2127, %v2114, %v1349
      %v2146 = vsel %vm2127, %v2115, %v1351
      %v2147 = vsel %vm2127, %v2116, %v1353
      %v2148 = vsel %vm2127, %v2117, %v1355
      %v2149 = vsel %vm2127, %v2118, %v1357
      %v2150 = vsel %vm2127, %v2119, %v1359
      %v2151 = vsel %vm2127, %v2120, %v1361
      %v2152 = vsel %vm2127, %v2121, %v1363
      %v2153 = vsel %vm2127, %v2122, %v1365
      %v2154 = vsel %vm2127, %v2123, %v1367
      %v2155 = vsel %vm2127, %v2124, %v1369
      %v2156 = vsel %vm2127, %v2125, %v1371
      %v2157 = vsel %vm2127, %v2126, %v1373
      %vm2158 = vcmask 162816
      %v2159 = vsel %vm2158, %v2128, %v1405
      %v2160 = vsel %vm2158, %v2129, %v1407
      %v2161 = vsel %vm2158, %v2130, %v1409
      %v2162 = vsel %vm2158, %v2131, %v1411
      %v2163 = vsel %vm2158, %v2132, %v1413
      %v2164 = vsel %vm2158, %v2133, %v1415
      %v2165 = vsel %vm2158, %v2134, %v1417
      %v2166 = vsel %vm2158, %v2135, %v1419
      %v2167 = vsel %vm2158, %v2136, %v1421
      %v2168 = vsel %vm2158, %v2137, %v1423
      %v2169 = vsel %vm2158, %v2138, %v1425
      %v2170 = vsel %vm2158, %v2139, %v1427
      %v2171 = vsel %vm2158, %v2140, %v1429
      %v2172 = vsel %vm2158, %v2141, %v1431
      %v2173 = vsel %vm2158, %v2142, %v1433
      %v2174 = vsel %vm2158, %v2143, %v1435
      %v2175 = vsel %vm2158, %v2144, %v1437
      %v2176 = vsel %vm2158, %v2145, %v1439
      %v2177 = vsel %vm2158, %v2146, %v1441
      %v2178 = vsel %vm2158, %v2147, %v1443
      %v2179 = vsel %vm2158, %v2148, %v1445
      %v2180 = vsel %vm2158, %v2149, %v1447
      %v2181 = vsel %vm2158, %v2150, %v1449
      %v2182 = vsel %vm2158, %v2151, %v1451
      %v2183 = vsel %vm2158, %v2152, %v1453
      %v2184 = vsel %vm2158, %v2153, %v1455
      %v2185 = vsel %vm2158, %v2154, %v1457
      %v2186 = vsel %vm2158, %v2155, %v1459
      %v2187 = vsel %vm2158, %v2156, %v1461
      %v2188 = vsel %vm2158, %v2157, %v1463
      %vm2189 = vcmask 195584
      %v2190 = vsel %vm2189, %v2159, %v1495
      %v2191 = vsel %vm2189, %v2160, %v1497
      %v2192 = vsel %vm2189, %v2161, %v1499
      %v2193 = vsel %vm2189, %v2162, %v1501
      %v2194 = vsel %vm2189, %v2163, %v1503
      %v2195 = vsel %vm2189, %v2164, %v1505
      %v2196 = vsel %vm2189, %v2165, %v1507
      %v2197 = vsel %vm2189, %v2166, %v1509
      %v2198 = vsel %vm2189, %v2167, %v1511
      %v2199 = vsel %vm2189, %v2168, %v1513
      %v2200 = vsel %vm2189, %v2169, %v1515
      %v2201 = vsel %vm2189, %v2170, %v1517
      %v2202 = vsel %vm2189, %v2171, %v1519
      %v2203 = vsel %vm2189, %v2172, %v1521
      %v2204 = vsel %vm2189, %v2173, %v1523
      %v2205 = vsel %vm2189, %v2174, %v1525
      %v2206 = vsel %vm2189, %v2175, %v1527
      %v2207 = vsel %vm2189, %v2176, %v1529
      %v2208 = vsel %vm2189, %v2177, %v1531
      %v2209 = vsel %vm2189, %v2178, %v1533
      %v2210 = vsel %vm2189, %v2179, %v1535
      %v2211 = vsel %vm2189, %v2180, %v1537
      %v2212 = vsel %vm2189, %v2181, %v1539
      %v2213 = vsel %vm2189, %v2182, %v1541
      %v2214 = vsel %vm2189, %v2183, %v1543
      %v2215 = vsel %vm2189, %v2184, %v1545
      %v2216 = vsel %vm2189, %v2185, %v1547
      %v2217 = vsel %vm2189, %v2186, %v1549
      %v2218 = vsel %vm2189, %v2187, %v1551
      %v2219 = vsel %vm2189, %v2188, %v1553
      %vm2220 = vcmask 228352
      %v2221 = vsel %vm2220, %v2190, %v1585
      %v2222 = vsel %vm2220, %v2191, %v1587
      %v2223 = vsel %vm2220, %v2192, %v1589
      %v2224 = vsel %vm2220, %v2193, %v1591
      %v2225 = vsel %vm2220, %v2194, %v1593
      %v2226 = vsel %vm2220, %v2195, %v1595
      %v2227 = vsel %vm2220, %v2196, %v1597
      %v2228 = vsel %vm2220, %v2197, %v1599
      %v2229 = vsel %vm2220, %v2198, %v1601
      %v2230 = vsel %vm2220, %v2199, %v1603
      %v2231 = vsel %vm2220, %v2200, %v1605
      %v2232 = vsel %vm2220, %v2201, %v1607
      %v2233 = vsel %vm2220, %v2202, %v1609
      %v2234 = vsel %vm2220, %v2203, %v1611
      %v2235 = vsel %vm2220, %v2204, %v1613
      %v2236 = vsel %vm2220, %v2205, %v1615
      %v2237 = vsel %vm2220, %v2206, %v1617
      %v2238 = vsel %vm2220, %v2207, %v1619
      %v2239 = vsel %vm2220, %v2208, %v1621
      %v2240 = vsel %vm2220, %v2209, %v1623
      %v2241 = vsel %vm2220, %v2210, %v1625
      %v2242 = vsel %vm2220, %v2211, %v1627
      %v2243 = vsel %vm2220, %v2212, %v1629
      %v2244 = vsel %vm2220, %v2213, %v1631
      %v2245 = vsel %vm2220, %v2214, %v1633
      %v2246 = vsel %vm2220, %v2215, %v1635
      %v2247 = vsel %vm2220, %v2216, %v1637
      %v2248 = vsel %vm2220, %v2217, %v1639
      %v2249 = vsel %vm2220, %v2218, %v1641
      %v2250 = vsel %vm2220, %v2219, %v1643
      %v2251 = vsel %vm665, %v2221, %v1675
      %v2252 = vsel %vm665, %v2222, %v1677
      %v2253 = vsel %vm665, %v2223, %v1679
      %v2254 = vsel %vm665, %v2224, %v1681
      %v2255 = vsel %vm665, %v2225, %v1683
      %v2256 = vsel %vm665, %v2226, %v1685
      %v2257 = vsel %vm665, %v2227, %v1687
      %v2258 = vsel %vm665, %v2228, %v1689
      %v2259 = vsel %vm665, %v2229, %v1691
      %v2260 = vsel %vm665, %v2230, %v1693
      %v2261 = vsel %vm665, %v2231, %v1695
      %v2262 = vsel %vm665, %v2232, %v1697
      %v2263 = vsel %vm665, %v2233, %v1699
      %v2264 = vsel %vm665, %v2234, %v1701
      %v2265 = vsel %vm665, %v2235, %v1703
      %v2266 = vsel %vm665, %v2236, %v1705
      %v2267 = vsel %vm665, %v2237, %v1707
      %v2268 = vsel %vm665, %v2238, %v1709
      %v2269 = vsel %vm665, %v2239, %v1711
      %v2270 = vsel %vm665, %v2240, %v1713
      %v2271 = vsel %vm665, %v2241, %v1715
      %v2272 = vsel %vm665, %v2242, %v1717
      %v2273 = vsel %vm665, %v2243, %v1719
      %v2274 = vsel %vm665, %v2244, %v1721
      %v2275 = vsel %vm665, %v2245, %v1723
      %v2276 = vsel %vm665, %v2246, %v1725
      %v2277 = vsel %vm665, %v2247, %v1727
      %v2278 = vsel %vm665, %v2248, %v1729
      %v2279 = vsel %vm665, %v2249, %v1731
      %v2280 = vsel %vm665, %v2250, %v1733
      %vm2281 = vcmask 293888
      %v2282 = vsel %vm2281, %v2251, %v1765
      %v2283 = vsel %vm2281, %v2252, %v1767
      %v2284 = vsel %vm2281, %v2253, %v1769
      %v2285 = vsel %vm2281, %v2254, %v1771
      %v2286 = vsel %vm2281, %v2255, %v1773
      %v2287 = vsel %vm2281, %v2256, %v1775
      %v2288 = vsel %vm2281, %v2257, %v1777
      %v2289 = vsel %vm2281, %v2258, %v1779
      %v2290 = vsel %vm2281, %v2259, %v1781
      %v2291 = vsel %vm2281, %v2260, %v1783
      %v2292 = vsel %vm2281, %v2261, %v1785
      %v2293 = vsel %vm2281, %v2262, %v1787
      %v2294 = vsel %vm2281, %v2263, %v1789
      %v2295 = vsel %vm2281, %v2264, %v1791
      %v2296 = vsel %vm2281, %v2265, %v1793
      %v2297 = vsel %vm2281, %v2266, %v1795
      %v2298 = vsel %vm2281, %v2267, %v1797
      %v2299 = vsel %vm2281, %v2268, %v1799
      %v2300 = vsel %vm2281, %v2269, %v1801
      %v2301 = vsel %vm2281, %v2270, %v1803
      %v2302 = vsel %vm2281, %v2271, %v1805
      %v2303 = vsel %vm2281, %v2272, %v1807
      %v2304 = vsel %vm2281, %v2273, %v1809
      %v2305 = vsel %vm2281, %v2274, %v1811
      %v2306 = vsel %vm2281, %v2275, %v1813
      %v2307 = vsel %vm2281, %v2276, %v1815
      %v2308 = vsel %vm2281, %v2277, %v1817
      %v2309 = vsel %vm2281, %v2278, %v1819
      %v2310 = vsel %vm2281, %v2279, %v1821
      %v2311 = vsel %vm2281, %v2280, %v1823
      %vm2312 = vcmask 326656
      %v2313 = vsel %vm2312, %v2282, %v1855
      %v2314 = vsel %vm2312, %v2283, %v1857
      %v2315 = vsel %vm2312, %v2284, %v1859
      %v2316 = vsel %vm2312, %v2285, %v1861
      %v2317 = vsel %vm2312, %v2286, %v1863
      %v2318 = vsel %vm2312, %v2287, %v1865
      %v2319 = vsel %vm2312, %v2288, %v1867
      %v2320 = vsel %vm2312, %v2289, %v1869
      %v2321 = vsel %vm2312, %v2290, %v1871
      %v2322 = vsel %vm2312, %v2291, %v1873
      %v2323 = vsel %vm2312, %v2292, %v1875
      %v2324 = vsel %vm2312, %v2293, %v1877
      %v2325 = vsel %vm2312, %v2294, %v1879
      %v2326 = vsel %vm2312, %v2295, %v1881
      %v2327 = vsel %vm2312, %v2296, %v1883
      %v2328 = vsel %vm2312, %v2297, %v1885
      %v2329 = vsel %vm2312, %v2298, %v1887
      %v2330 = vsel %vm2312, %v2299, %v1889
      %v2331 = vsel %vm2312, %v2300, %v1891
      %v2332 = vsel %vm2312, %v2301, %v1893
      %v2333 = vsel %vm2312, %v2302, %v1895
      %v2334 = vsel %vm2312, %v2303, %v1897
      %v2335 = vsel %vm2312, %v2304, %v1899
      %v2336 = vsel %vm2312, %v2305, %v1901
      %v2337 = vsel %vm2312, %v2306, %v1903
      %v2338 = vsel %vm2312, %v2307, %v1905
      %v2339 = vsel %vm2312, %v2308, %v1907
      %v2340 = vsel %vm2312, %v2309, %v1909
      %v2341 = vsel %vm2312, %v2310, %v1911
      %v2342 = vsel %vm2312, %v2311, %v1913
      %vm2343 = vcmask 359424
      %v2344 = vsel %vm2343, %v2313, %v1945
      %v2345 = vsel %vm2343, %v2314, %v1947
      %v2346 = vsel %vm2343, %v2315, %v1949
      %v2347 = vsel %vm2343, %v2316, %v1951
      %v2348 = vsel %vm2343, %v2317, %v1953
      %v2349 = vsel %vm2343, %v2318, %v1955
      %v2350 = vsel %vm2343, %v2319, %v1957
      %v2351 = vsel %vm2343, %v2320, %v1959
      %v2352 = vsel %vm2343, %v2321, %v1961
      %v2353 = vsel %vm2343, %v2322, %v1963
      %v2354 = vsel %vm2343, %v2323, %v1965
      %v2355 = vsel %vm2343, %v2324, %v1967
      %v2356 = vsel %vm2343, %v2325, %v1969
      %v2357 = vsel %vm2343, %v2326, %v1971
      %v2358 = vsel %vm2343, %v2327, %v1973
      %v2359 = vsel %vm2343, %v2328, %v1975
      %v2360 = vsel %vm2343, %v2329, %v1977
      %v2361 = vsel %vm2343, %v2330, %v1979
      %v2362 = vsel %vm2343, %v2331, %v1981
      %v2363 = vsel %vm2343, %v2332, %v1983
      %v2364 = vsel %vm2343, %v2333, %v1985
      %v2365 = vsel %vm2343, %v2334, %v1987
      %v2366 = vsel %vm2343, %v2335, %v1989
      %v2367 = vsel %vm2343, %v2336, %v1991
      %v2368 = vsel %vm2343, %v2337, %v1993
      %v2369 = vsel %vm2343, %v2338, %v1995
      %v2370 = vsel %vm2343, %v2339, %v1997
      %v2371 = vsel %vm2343, %v2340, %v1999
      %v2372 = vsel %vm2343, %v2341, %v2001
      %v2373 = vsel %vm2343, %v2342, %v2003
      %v2374 = vrot.slane %v2344, 1
      %v2375 = vrot.slane %v2345, 1
      %v2376 = vrot.slane %v2346, 1
      %v2377 = vrot.slane %v2347, 1
      %v2378 = vrot.slane %v2348, 1
      %v2379 = vrot.slane %v2349, 1
      %v2380 = vrot.slane %v2350, 1
      %v2381 = vrot.slane %v2351, 1
      %v2382 = vrot.slane %v2352, 1
      %v2383 = vrot.slane %v2353, 1
      %v2384 = vrot.slane %v2354, 1
      %v2385 = vrot.slane %v2355, 1
      %v2386 = vrot.slane %v2356, 1
      %v2387 = vrot.slane %v2357, 1
      %v2388 = vrot.slane %v2358, 1
      %v2389 = vrot.slane %v2359, 1
      %v2390 = vrot.slane %v2360, 1
      %v2391 = vrot.slane %v2361, 1
      %v2392 = vrot.slane %v2362, 1
      %v2393 = vrot.slane %v2363, 1
      %v2394 = vrot.slane %v2364, 1
      %v2395 = vrot.slane %v2365, 1
      %v2396 = vrot.slane %v2366, 1
      %v2397 = vrot.slane %v2367, 1
      %v2398 = vrot.slane %v2368, 1
      %v2399 = vrot.slane %v2369, 1
      %v2400 = vrot.slane %v2370, 1
      %v2401 = vrot.slane %v2371, 1
      %v2402 = vrot.slane %v2372, 1
      %v2403 = vrot.slane %v2373, 1
      %v2404 = vlaneseq
      %v2405 = vshrl.u32 %v2404, 7
      %vm2406 = vcmp.lt.s32.totalorder %v2405, 7
      %v2407 = vsel %vm2406, %v2402, %v2403
      %v2408 = vsel %vm2406, %v2401, %v2402
      %v2409 = vsel %vm2406, %v2400, %v2401
      %v2410 = vsel %vm2406, %v2399, %v2400
      %v2411 = vsel %vm2406, %v2398, %v2399
      %v2412 = vsel %vm2406, %v2397, %v2398
      %v2413 = vsel %vm2406, %v2396, %v2397
      %v2414 = vsel %vm2406, %v2395, %v2396
      %v2415 = vsel %vm2406, %v2394, %v2395
      %v2416 = vsel %vm2406, %v2393, %v2394
      %v2417 = vsel %vm2406, %v2392, %v2393
      %v2418 = vsel %vm2406, %v2391, %v2392
      %v2419 = vsel %vm2406, %v2390, %v2391
      %v2420 = vsel %vm2406, %v2389, %v2390
      %v2421 = vsel %vm2406, %v2388, %v2389
      %v2422 = vsel %vm2406, %v2387, %v2388
      %v2423 = vsel %vm2406, %v2386, %v2387
      %v2424 = vsel %vm2406, %v2385, %v2386
      %v2425 = vsel %vm2406, %v2384, %v2385
      %v2426 = vsel %vm2406, %v2383, %v2384
      %v2427 = vsel %vm2406, %v2382, %v2383
      %v2428 = vsel %vm2406, %v2381, %v2382
      %v2429 = vsel %vm2406, %v2380, %v2381
      %v2430 = vsel %vm2406, %v2379, %v2380
      %v2431 = vsel %vm2406, %v2378, %v2379
      %v2432 = vsel %vm2406, %v2377, %v2378
      %v2433 = vsel %vm2406, %v2376, %v2377
      %v2434 = vsel %vm2406, %v2375, %v2376
      %v2435 = vsel %vm2406, %v2374, %v2375
      %v2436 = vsel %vm2406, %v2403, %v2374
      %v2437 = vmax.f32 %v2344, %v2435
      %v2438 = vmax.f32 %v2345, %v2434
      %v2439 = vmax.f32 %v2346, %v2433
      %v2440 = vmax.f32 %v2347, %v2432
      %v2441 = vmax.f32 %v2348, %v2431
      %v2442 = vmax.f32 %v2349, %v2430
      %v2443 = vmax.f32 %v2350, %v2429
      %v2444 = vmax.f32 %v2351, %v2428
      %v2445 = vmax.f32 %v2352, %v2427
      %v2446 = vmax.f32 %v2353, %v2426
      %v2447 = vmax.f32 %v2354, %v2425
      %v2448 = vmax.f32 %v2355, %v2424
      %v2449 = vmax.f32 %v2356, %v2423
      %v2450 = vmax.f32 %v2357, %v2422
      %v2451 = vmax.f32 %v2358, %v2421
      %v2452 = vmax.f32 %v2359, %v2420
      %v2453 = vmax.f32 %v2360, %v2419
      %v2454 = vmax.f32 %v2361, %v2418
      %v2455 = vmax.f32 %v2362, %v2417
      %v2456 = vmax.f32 %v2363, %v2416
      %v2457 = vmax.f32 %v2364, %v2415
      %v2458 = vmax.f32 %v2365, %v2414
      %v2459 = vmax.f32 %v2366, %v2413
      %v2460 = vmax.f32 %v2367, %v2412
      %v2461 = vmax.f32 %v2368, %v2411
      %v2462 = vmax.f32 %v2369, %v2410
      %v2463 = vmax.f32 %v2370, %v2409
      %v2464 = vmax.f32 %v2371, %v2408
      %v2465 = vmax.f32 %v2372, %v2407
      %v2466 = vmax.f32 %v2373, %v2436
      %v2467 = vmax.f32 %v2437, 0.0
      %v2468 = vmax.f32 %v2438, 0.0
      %v2469 = vmax.f32 %v2439, 0.0
      %v2470 = vmax.f32 %v2440, 0.0
      %v2471 = vmax.f32 %v2441, 0.0
      %v2472 = vmax.f32 %v2442, 0.0
      %v2473 = vmax.f32 %v2443, 0.0
      %v2474 = vmax.f32 %v2444, 0.0
      %v2475 = vmax.f32 %v2445, 0.0
      %v2476 = vmax.f32 %v2446, 0.0
      %v2477 = vmax.f32 %v2447, 0.0
      %v2478 = vmax.f32 %v2448, 0.0
      %v2479 = vmax.f32 %v2449, 0.0
      %v2480 = vmax.f32 %v2450, 0.0
      %v2481 = vmax.f32 %v2451, 0.0
      %v2482 = vmax.f32 %v2452, 0.0
      %v2483 = vmax.f32 %v2453, 0.0
      %v2484 = vmax.f32 %v2454, 0.0
      %v2485 = vmax.f32 %v2455, 0.0
      %v2486 = vmax.f32 %v2456, 0.0
      %v2487 = vmax.f32 %v2457, 0.0
      %v2488 = vmax.f32 %v2458, 0.0
      %v2489 = vmax.f32 %v2459, 0.0
      %v2490 = vmax.f32 %v2460, 0.0
      %v2491 = vmax.f32 %v2461, 0.0
      %v2492 = vmax.f32 %v2462, 0.0
      %v2493 = vmax.f32 %v2463, 0.0
      %v2494 = vmax.f32 %v2464, 0.0
      %v2495 = vmax.f32 %v2465, 0.0
      %v2496 = vmax.f32 %v2466, 0.0
      %v2497 = vpack.c.bf16 %v2468, %v2467
      %v2498 = vpack.c.bf16 %v2470, %v2469
      %v2499 = vpack.c.bf16 %v2472, %v2471
      %v2500 = vpack.c.bf16 %v2474, %v2473
      %v2501 = vpack.c.bf16 %v2476, %v2475
      %v2502 = vpack.c.bf16 %v2478, %v2477
      %v2503 = vpack.c.bf16 %v2480, %v2479
      %v2504 = vpack.c.bf16 %v2482, %v2481
      %v2505 = vpack.c.bf16 %v2484, %v2483
      %v2506 = vpack.c.bf16 %v2486, %v2485
      %v2507 = vpack.c.bf16 %v2488, %v2487
      %v2508 = vpack.c.bf16 %v2490, %v2489
      %v2509 = vpack.c.bf16 %v2492, %v2491
      %v2510 = vpack.c.bf16 %v2494, %v2493
      %v2511 = vpack.c.bf16 %v2496, %v2495
      %v2512 = vld [vmem:[%s3] sm:$0xff]
      %v2513 = vld [vmem:[%s3 + $0x8] sm:$0xff]
      %v2514 = vld [vmem:[%s3 + $0x10] sm:$0xff]
      %v2515 = vld [vmem:[%s3 + $0x18] sm:$0xff]
      %v2516 = vld [vmem:[%s3 + $0x20] sm:$0xff]
      %v2517 = vld [vmem:[%s3 + $0x28] sm:$0xff]
      %v2518 = vld [vmem:[%s3 + $0x30] sm:$0xff]
      %v2519 = vld [vmem:[%s3 + $0x38] sm:$0xff]
      %v2520 = vld [vmem:[%s3 + $0x40] sm:$0xff]
      %v2521 = vld [vmem:[%s3 + $0x48] sm:$0xff]
      %v2522 = vld [vmem:[%s3 + $0x50] sm:$0xff]
      %v2523 = vld [vmem:[%s3 + $0x58] sm:$0xff]
      %v2524 = vld [vmem:[%s3 + $0x60] sm:$0xff]
      %v2525 = vld [vmem:[%s3 + $0x68] sm:$0xff]
      %v2526 = vld [vmem:[%s3 + $0x70] sm:$0xff]
      %v2527 = vld [vmem:[%s3 + $0x78] sm:$0xff]
      %v2528 = vld [vmem:[%s3 + $0x80] sm:$0xff]
      %v2529 = vld [vmem:[%s3 + $0x88] sm:$0xff]
      %v2530 = vld [vmem:[%s3 + $0x90] sm:$0xff]
      %v2531 = vld [vmem:[%s3 + $0x98] sm:$0xff]
      %s2532 = scalar_lea.vmem %s3, 160
      %v2533 = vld [vmem:[%s2532] sm:$0xff]
      %v2534 = vld [vmem:[%s2532 + $0x8] sm:$0xff]
      %v2535 = vld [vmem:[%s2532 + $0x10] sm:$0xff]
      %v2536 = vld [vmem:[%s2532 + $0x18] sm:$0xff]
      %v2537 = vld [vmem:[%s2532 + $0x20] sm:$0xff]
      %v2538 = vld [vmem:[%s2532 + $0x28] sm:$0xff]
      %v2539 = vld [vmem:[%s2532 + $0x30] sm:$0xff]
      %v2540 = vld [vmem:[%s2532 + $0x38] sm:$0xff]
      %v2541 = vld [vmem:[%s2532 + $0x40] sm:$0xff]
      %v2542 = vld [vmem:[%s2532 + $0x48] sm:$0xff]
      %v2543 = vld [vmem:[%s2532 + $0x50] sm:$0xff]
      %v2544 = vld [vmem:[%s2532 + $0x58] sm:$0xff]
      %v2545 = vld [vmem:[%s2532 + $0x60] sm:$0xff]
      %v2546 = vld [vmem:[%s2532 + $0x68] sm:$0xff]
      %v2547 = vld [vmem:[%s2532 + $0x70] sm:$0xff]
      %v2548 = vld [vmem:[%s2532 + $0x78] sm:$0xff]
      %v2549 = vld [vmem:[%s2532 + $0x80] sm:$0xff]
      %v2550 = vld [vmem:[%s2532 + $0x88] sm:$0xff]
      %v2551 = vld [vmem:[%s2532 + $0x90] sm:$0xff]
      %v2552 = vld [vmem:[%s2532 + $0x98] sm:$0xff]
      %v2573 = vunpack.c.l.b16 %v2533
      %v2574 = vunpack.c.h.b16 %v2533
      %v2575 = vunpack.c.l.b16 %v2534
      %v2576 = vunpack.c.h.b16 %v2534
      %v2577 = vunpack.c.l.b16 %v2535
      %v2578 = vunpack.c.h.b16 %v2535
      %v2579 = vunpack.c.l.b16 %v2536
      %v2580 = vunpack.c.h.b16 %v2536
      %v2581 = vunpack.c.l.b16 %v2537
      %v2582 = vunpack.c.h.b16 %v2537
      %v2583 = vunpack.c.l.b16 %v2538
      %v2584 = vunpack.c.h.b16 %v2538
      %v2585 = vunpack.c.l.b16 %v2539
      %v2586 = vunpack.c.h.b16 %v2539
      %v2587 = vunpack.c.l.b16 %v2540
      %v2588 = vunpack.c.h.b16 %v2540
      %v2589 = vunpack.c.l.b16 %v2541
      %v2590 = vunpack.c.h.b16 %v2541
      %v2591 = vunpack.c.l.b16 %v2542
      %v2592 = vunpack.c.h.b16 %v2542
      %v2593 = vunpack.c.l.b16 %v2543
      %v2594 = vunpack.c.h.b16 %v2543
      %v2595 = vunpack.c.l.b16 %v2544
      %v2596 = vunpack.c.h.b16 %v2544
      %v2597 = vunpack.c.l.b16 %v2545
      %v2598 = vunpack.c.h.b16 %v2545
      %v2599 = vunpack.c.l.b16 %v2546
      %v2600 = vunpack.c.h.b16 %v2546
      %v2601 = vunpack.c.l.b16 %v2547
      %v2602 = vunpack.c.h.b16 %v2547
      %v2603 = vunpack.c.l.b16 %v2548
      %v2604 = vunpack.c.h.b16 %v2548
      %v2605 = vunpack.c.l.b16 %v2549
      %v2606 = vunpack.c.h.b16 %v2549
      %v2607 = vunpack.c.l.b16 %v2550
      %v2608 = vunpack.c.h.b16 %v2550
      %v2609 = vunpack.c.l.b16 %v2551
      %v2610 = vunpack.c.h.b16 %v2551
      %v2611 = vunpack.c.l.b16 %v2552
      %v2612 = vunpack.c.h.b16 %v2552
      %v2613 = vpack.c.b16 %v2575, %v2573
      %v2614 = vpack.c.b16 %v2576, %v2574
      %v2615 = vpack.c.b16 %v2579, %v2577
      %v2616 = vpack.c.b16 %v2580, %v2578
      %v2617 = vpack.c.b16 %v2583, %v2581
      %v2618 = vpack.c.b16 %v2584, %v2582
      %v2619 = vpack.c.b16 %v2587, %v2585
      %v2620 = vpack.c.b16 %v2588, %v2586
      %v2621 = vpack.c.b16 %v2591, %v2589
      %v2622 = vpack.c.b16 %v2592, %v2590
      %v2623 = vpack.c.b16 %v2595, %v2593
      %v2624 = vpack.c.b16 %v2596, %v2594
      %v2625 = vpack.c.b16 %v2599, %v2597
      %v2626 = vpack.c.b16 %v2600, %v2598
      %v2627 = vpack.c.b16 %v2603, %v2601
      %v2628 = vpack.c.b16 %v2604, %v2602
      %v2629 = vpack.c.b16 %v2607, %v2605
      %v2630 = vpack.c.b16 %v2608, %v2606
      %v2631 = vpack.c.b16 %v2611, %v2609
      %v2632 = vpack.c.b16 %v2612, %v2610
      %2658 = vrot.lane.b32.xlu0 %v2497, 124
      %v2659 = vpop.permute.xlu0 %2658
      %2660 = vrot.lane.b32.xlu0 %v2498, 124
      %v2661 = vpop.permute.xlu0 %2660
      %2662 = vrot.lane.b32.xlu0 %v2499, 124
      %v2663 = vpop.permute.xlu0 %2662
      %2664 = vrot.lane.b32.xlu0 %v2500, 124
      %v2665 = vpop.permute.xlu0 %2664
      %2666 = vrot.lane.b32.xlu0 %v2501, 124
      %v2667 = vpop.permute.xlu0 %2666
      %2668 = vrot.lane.b32.xlu0 %v2502, 124
      %v2669 = vpop.permute.xlu0 %2668
      %2670 = vrot.lane.b32.xlu0 %v2503, 124
      %v2671 = vpop.permute.xlu0 %2670
      %2672 = vrot.lane.b32.xlu0 %v2504, 124
      %v2673 = vpop.permute.xlu0 %2672
      %2674 = vrot.lane.b32.xlu0 %v2505, 124
      %v2675 = vpop.permute.xlu0 %2674
      %2676 = vrot.lane.b32.xlu0 %v2506, 124
      %v2677 = vpop.permute.xlu0 %2676
      %2678 = vrot.lane.b32.xlu0 %v2507, 124
      %v2679 = vpop.permute.xlu0 %2678
      %2680 = vrot.lane.b32.xlu0 %v2508, 124
      %v2681 = vpop.permute.xlu0 %2680
      %2682 = vrot.lane.b32.xlu0 %v2509, 124
      %v2683 = vpop.permute.xlu0 %2682
      %2684 = vrot.lane.b32.xlu0 %v2510, 124
      %v2685 = vpop.permute.xlu0 %2684
      %2686 = vrot.lane.b32.xlu0 %v2511, 124
      %v2687 = vpop.permute.xlu0 %2686
      %vm2703 = vcmask 916480
      %v2705 = vsel %vm2703, %v2614, 0
      %v2708 = vsel %vm2703, %v2616, 0
      %v2711 = vsel %vm2703, %v2618, 0
      %v2714 = vsel %vm2703, %v2620, 0
      %v2717 = vsel %vm2703, %v2622, 0
      %v2720 = vsel %vm2703, %v2624, 0
      %v2723 = vsel %vm2703, %v2626, 0
      %v2726 = vsel %vm2703, %v2628, 0
      %v2729 = vsel %vm2703, %v2630, 0
      %v2732 = vsel %vm2703, %v2632, 0
      %2734 = vmatprep.subr.bf16.mxu0 0
      %2735 = vmatpush1.bf16.msra.mxu0 %v2659
      %2736 = vmatprep.subr.bf16.mxu0 0
      %2737 = vmatpush1.bf16.msra.mxu0 %v2661
      %2738 = vmatprep.subr.bf16.mxu0 0
      %2739 = vmatpush1.bf16.msra.mxu0 %v2663
      %2740 = vmatprep.subr.bf16.mxu0 0
      %2741 = vmatpush1.bf16.msra.mxu0 %v2665
      %2742 = vmatprep.subr.bf16.mxu0 0
      %2743 = vmatpush1.bf16.msra.mxu0 %v2667
      %2744 = vmatprep.subr.bf16.mxu0 0
      %2745 = vmatpush1.bf16.msra.mxu0 %v2669
      %2746 = vmatprep.subr.bf16.mxu0 0
      %2747 = vmatpush1.bf16.msra.mxu0 %v2671
      %2748 = vmatprep.subr.bf16.mxu0 0
      %2749 = vmatpush1.bf16.msra.mxu0 %v2673
      %2750 = vmatprep.subr.bf16.mxu0 0
      %2751 = vmatpush1.bf16.msra.mxu0 %v2675
      %2752 = vmatprep.subr.bf16.mxu0 0
      %2753 = vmatpush1.bf16.msra.mxu0 %v2677
      %2754 = vmatprep.subr.bf16.mxu0 0
      %2755 = vmatpush1.bf16.msra.mxu0 %v2679
      %2756 = vmatprep.subr.bf16.mxu0 0
      %2757 = vmatpush1.bf16.msra.mxu0 %v2681
      %2758 = vmatprep.subr.bf16.mxu0 0
      %2759 = vmatpush1.bf16.msra.mxu0 %v2683
      %2760 = vmatprep.subr.bf16.mxu0 0
      %2761 = vmatpush1.bf16.msra.mxu0 %v2685
      %2762 = vmatprep.subr.bf16.mxu0 0
      %2763 = vmatpush1.bf16.msra.mxu0 %v2687
      %2764 = vmatprep.subr.bf16.mxu0 0
      %2765 = vmatpush1.bf16.msra.mxu0 0
      %2766 = vmatprep.mubr.bf16.mxu0 %v2705
      %2767 = vmatmul.mubr.bf16.gmra.mrb[0].mxu0 %v2613
      %v2768 = vpop.f32.mrb[0].mxu0
      %v2769 = vadd.f32 0.0, %v2768
      %v2770 = vpop.f32.mrb[0].mxu0
      %v2771 = vpop.f32.mrb[0].mxu0
      %v2772 = vadd.f32 0.0, %v2771
      %v2773 = vpop.f32.mrb[0].mxu0
      %2774 = vmatprep.mubr.bf16.mxu0 %v2708
      %2775 = vmatmul.mubr.bf16.gmra.mrb[0].mxu0 %v2615
      %v2776 = vpop.f32.mrb[0].mxu0
      %v2777 = vadd.f32 0.0, %v2776
      %v2778 = vpop.f32.mrb[0].mxu0
      %v2779 = vpop.f32.mrb[0].mxu0
      %v2780 = vadd.f32 0.0, %v2779
      %v2781 = vpop.f32.mrb[0].mxu0
      %2782 = vmatprep.mubr.bf16.mxu0 %v2711
      %2783 = vmatmul.mubr.bf16.gmra.mrb[0].mxu0 %v2617
      %v2784 = vpop.f32.mrb[0].mxu0
      %v2785 = vadd.f32 0.0, %v2784
      %v2786 = vpop.f32.mrb[0].mxu0
      %v2787 = vpop.f32.mrb[0].mxu0
      %v2788 = vadd.f32 0.0, %v2787
      %v2789 = vpop.f32.mrb[0].mxu0
      %2790 = vmatprep.mubr.bf16.mxu0 %v2714
      %2791 = vmatmul.mubr.bf16.gmra.mrb[0].mxu0 %v2619
      %v2792 = vpop.f32.mrb[0].mxu0
      %v2793 = vadd.f32 0.0, %v2792
      %v2794 = vpop.f32.mrb[0].mxu0
      %v2795 = vpop.f32.mrb[0].mxu0
      %v2796 = vadd.f32 0.0, %v2795
      %v2797 = vpop.f32.mrb[0].mxu0
      %2798 = vmatprep.mubr.bf16.mxu0 %v2717
      %2799 = vmatmul.mubr.bf16.gmra.mrb[0].mxu0 %v2621
      %v2800 = vpop.f32.mrb[0].mxu0
      %v2801 = vadd.f32 0.0, %v2800
      %v2802 = vpop.f32.mrb[0].mxu0
      %v2803 = vpop.f32.mrb[0].mxu0
      %v2804 = vadd.f32 0.0, %v2803
      %v2805 = vpop.f32.mrb[0].mxu0
      %2806 = vmatprep.mubr.bf16.mxu0 %v2720
      %2807 = vmatmul.mubr.bf16.gmra.mrb[0].mxu0 %v2623
      %v2808 = vpop.f32.mrb[0].mxu0
      %v2809 = vadd.f32 0.0, %v2808
      %v2810 = vpop.f32.mrb[0].mxu0
      %v2811 = vpop.f32.mrb[0].mxu0
      %v2812 = vadd.f32 0.0, %v2811
      %v2813 = vpop.f32.mrb[0].mxu0
      %2814 = vmatprep.mubr.bf16.mxu0 %v2723
      %2815 = vmatmul.mubr.bf16.gmra.mrb[0].mxu0 %v2625
      %v2816 = vpop.f32.mrb[0].mxu0
      %v2817 = vadd.f32 0.0, %v2816
      %v2818 = vpop.f32.mrb[0].mxu0
      %v2819 = vpop.f32.mrb[0].mxu0
      %v2820 = vadd.f32 0.0, %v2819
      %v2821 = vpop.f32.mrb[0].mxu0
      %2822 = vmatprep.mubr.bf16.mxu0 %v2726
      %2823 = vmatmul.mubr.bf16.gmra.mrb[0].mxu0 %v2627
      %v2824 = vpop.f32.mrb[0].mxu0
      %v2825 = vadd.f32 0.0, %v2824
      %v2826 = vpop.f32.mrb[0].mxu0
      %v2827 = vpop.f32.mrb[0].mxu0
      %v2828 = vadd.f32 0.0, %v2827
      %v2829 = vpop.f32.mrb[0].mxu0
      %2830 = vmatprep.mubr.bf16.mxu0 %v2729
      %2831 = vmatmul.mubr.bf16.gmra.mrb[0].mxu0 %v2629
      %v2832 = vpop.f32.mrb[0].mxu0
      %v2833 = vadd.f32 0.0, %v2832
      %v2834 = vpop.f32.mrb[0].mxu0
      %v2835 = vpop.f32.mrb[0].mxu0
      %v2836 = vadd.f32 0.0, %v2835
      %v2837 = vpop.f32.mrb[0].mxu0
      %2838 = vmatprep.mubr.bf16.mxu0 %v2732
      %2839 = vmatmul.mubr.bf16.gmra.mrb[0].mxu0 %v2631
      %v2840 = vpop.f32.mrb[0].mxu0
      %v2841 = vadd.f32 0.0, %v2840
      %v2842 = vpop.f32.mrb[0].mxu0
      %v2843 = vpop.f32.mrb[0].mxu0
      %v2844 = vadd.f32 0.0, %v2843
      %v2845 = vpop.f32.mrb[0].mxu0
      %2846 = vdwg.mxu0
      %v2867 = vunpack.c.l.b16 %v2512
      %v2868 = vunpack.c.h.b16 %v2512
      %v2869 = vunpack.c.l.b16 %v2513
      %v2870 = vunpack.c.h.b16 %v2513
      %v2871 = vunpack.c.l.b16 %v2514
      %v2872 = vunpack.c.h.b16 %v2514
      %v2873 = vunpack.c.l.b16 %v2515
      %v2874 = vunpack.c.h.b16 %v2515
      %v2875 = vunpack.c.l.b16 %v2516
      %v2876 = vunpack.c.h.b16 %v2516
      %v2877 = vunpack.c.l.b16 %v2517
      %v2878 = vunpack.c.h.b16 %v2517
      %v2879 = vunpack.c.l.b16 %v2518
      %v2880 = vunpack.c.h.b16 %v2518
      %v2881 = vunpack.c.l.b16 %v2519
      %v2882 = vunpack.c.h.b16 %v2519
      %v2883 = vunpack.c.l.b16 %v2520
      %v2884 = vunpack.c.h.b16 %v2520
      %v2885 = vunpack.c.l.b16 %v2521
      %v2886 = vunpack.c.h.b16 %v2521
      %v2887 = vunpack.c.l.b16 %v2522
      %v2888 = vunpack.c.h.b16 %v2522
      %v2889 = vunpack.c.l.b16 %v2523
      %v2890 = vunpack.c.h.b16 %v2523
      %v2891 = vunpack.c.l.b16 %v2524
      %v2892 = vunpack.c.h.b16 %v2524
      %v2893 = vunpack.c.l.b16 %v2525
      %v2894 = vunpack.c.h.b16 %v2525
      %v2895 = vunpack.c.l.b16 %v2526
      %v2896 = vunpack.c.h.b16 %v2526
      %v2897 = vunpack.c.l.b16 %v2527
      %v2898 = vunpack.c.h.b16 %v2527
      %v2899 = vunpack.c.l.b16 %v2528
      %v2900 = vunpack.c.h.b16 %v2528
      %v2901 = vunpack.c.l.b16 %v2529
      %v2902 = vunpack.c.h.b16 %v2529
      %v2903 = vunpack.c.l.b16 %v2530
      %v2904 = vunpack.c.h.b16 %v2530
      %v2905 = vunpack.c.l.b16 %v2531
      %v2906 = vunpack.c.h.b16 %v2531
      %v2907 = vpack.c.b16 %v2869, %v2867
      %v2908 = vpack.c.b16 %v2870, %v2868
      %v2909 = vpack.c.b16 %v2873, %v2871
      %v2910 = vpack.c.b16 %v2874, %v2872
      %v2911 = vpack.c.b16 %v2877, %v2875
      %v2912 = vpack.c.b16 %v2878, %v2876
      %v2913 = vpack.c.b16 %v2881, %v2879
      %v2914 = vpack.c.b16 %v2882, %v2880
      %v2915 = vpack.c.b16 %v2885, %v2883
      %v2916 = vpack.c.b16 %v2886, %v2884
      %v2917 = vpack.c.b16 %v2889, %v2887
      %v2918 = vpack.c.b16 %v2890, %v2888
      %v2919 = vpack.c.b16 %v2893, %v2891
      %v2920 = vpack.c.b16 %v2894, %v2892
      %v2921 = vpack.c.b16 %v2897, %v2895
      %v2922 = vpack.c.b16 %v2898, %v2896
      %v2923 = vpack.c.b16 %v2901, %v2899
      %v2924 = vpack.c.b16 %v2902, %v2900
      %v2925 = vpack.c.b16 %v2905, %v2903
      %v2926 = vpack.c.b16 %v2906, %v2904
      %v2938 = vsel %vm2703, %v2908, 0
      %v2941 = vsel %vm2703, %v2910, 0
      %v2944 = vsel %vm2703, %v2912, 0
      %v2947 = vsel %vm2703, %v2914, 0
      %v2950 = vsel %vm2703, %v2916, 0
      %v2953 = vsel %vm2703, %v2918, 0
      %v2956 = vsel %vm2703, %v2920, 0
      %v2959 = vsel %vm2703, %v2922, 0
      %v2962 = vsel %vm2703, %v2924, 0
      %v2965 = vsel %vm2703, %v2926, 0
      %2967 = vmatprep.subr.bf16.mxu0 0
      %2968 = vmatpush1.bf16.msra.mxu0 %v2497
      %2969 = vmatprep.subr.bf16.mxu0 0
      %2970 = vmatpush1.bf16.msra.mxu0 %v2498
      %2971 = vmatprep.subr.bf16.mxu0 0
      %2972 = vmatpush1.bf16.msra.mxu0 %v2499
      %2973 = vmatprep.subr.bf16.mxu0 0
      %2974 = vmatpush1.bf16.msra.mxu0 %v2500
      %2975 = vmatprep.subr.bf16.mxu0 0
      %2976 = vmatpush1.bf16.msra.mxu0 %v2501
      %2977 = vmatprep.subr.bf16.mxu0 0
      %2978 = vmatpush1.bf16.msra.mxu0 %v2502
      %2979 = vmatprep.subr.bf16.mxu0 0
      %2980 = vmatpush1.bf16.msra.mxu0 %v2503
      %2981 = vmatprep.subr.bf16.mxu0 0
      %2982 = vmatpush1.bf16.msra.mxu0 %v2504
      %2983 = vmatprep.subr.bf16.mxu0 0
      %2984 = vmatpush1.bf16.msra.mxu0 %v2505
      %2985 = vmatprep.subr.bf16.mxu0 0
      %2986 = vmatpush1.bf16.msra.mxu0 %v2506
      %2987 = vmatprep.subr.bf16.mxu0 0
      %2988 = vmatpush1.bf16.msra.mxu0 %v2507
      %2989 = vmatprep.subr.bf16.mxu0 0
      %2990 = vmatpush1.bf16.msra.mxu0 %v2508
      %2991 = vmatprep.subr.bf16.mxu0 0
      %2992 = vmatpush1.bf16.msra.mxu0 %v2509
      %2993 = vmatprep.subr.bf16.mxu0 0
      %2994 = vmatpush1.bf16.msra.mxu0 %v2510
      %2995 = vmatprep.subr.bf16.mxu0 0
      %2996 = vmatpush1.bf16.msra.mxu0 %v2511
      %2997 = vmatprep.subr.bf16.mxu0 0
      %2998 = vmatpush1.bf16.msra.mxu0 0
      %2999 = vmatprep.mubr.bf16.mxu0 %v2938
      %3000 = vmatmul.mubr.bf16.gmra.mrb[0].mxu0 %v2907
      %v3001 = vpop.f32.mrb[0].mxu0
      %v3002 = vadd.f32 %v2769, %v3001
      %v3003 = vpop.f32.mrb[0].mxu0
      %v3004 = vpop.f32.mrb[0].mxu0
      %v3005 = vadd.f32 %v2772, %v3004
      %v3006 = vpop.f32.mrb[0].mxu0
      %3007 = vmatprep.mubr.bf16.mxu0 %v2941
      %3008 = vmatmul.mubr.bf16.gmra.mrb[0].mxu0 %v2909
      %v3009 = vpop.f32.mrb[0].mxu0
      %v3010 = vadd.f32 %v2777, %v3009
      %v3011 = vpop.f32.mrb[0].mxu0
      %v3012 = vpop.f32.mrb[0].mxu0
      %v3013 = vadd.f32 %v2780, %v3012
      %v3014 = vpop.f32.mrb[0].mxu0
      %3015 = vmatprep.mubr.bf16.mxu0 %v2944
      %3016 = vmatmul.mubr.bf16.gmra.mrb[0].mxu0 %v2911
      %v3017 = vpop.f32.mrb[0].mxu0
      %v3018 = vadd.f32 %v2785, %v3017
      %v3019 = vpop.f32.mrb[0].mxu0
      %v3020 = vpop.f32.mrb[0].mxu0
      %v3021 = vadd.f32 %v2788, %v3020
      %v3022 = vpop.f32.mrb[0].mxu0
      %3023 = vmatprep.mubr.bf16.mxu0 %v2947
      %3024 = vmatmul.mubr.bf16.gmra.mrb[0].mxu0 %v2913
      %v3025 = vpop.f32.mrb[0].mxu0
      %v3026 = vadd.f32 %v2793, %v3025
      %v3027 = vpop.f32.mrb[0].mxu0
      %v3028 = vpop.f32.mrb[0].mxu0
      %v3029 = vadd.f32 %v2796, %v3028
      %v3030 = vpop.f32.mrb[0].mxu0
      %3031 = vmatprep.mubr.bf16.mxu0 %v2950
      %3032 = vmatmul.mubr.bf16.gmra.mrb[0].mxu0 %v2915
      %v3033 = vpop.f32.mrb[0].mxu0
      %v3034 = vadd.f32 %v2801, %v3033
      %v3035 = vpop.f32.mrb[0].mxu0
      %v3036 = vpop.f32.mrb[0].mxu0
      %v3037 = vadd.f32 %v2804, %v3036
      %v3038 = vpop.f32.mrb[0].mxu0
      %3039 = vmatprep.mubr.bf16.mxu0 %v2953
      %3040 = vmatmul.mubr.bf16.gmra.mrb[0].mxu0 %v2917
      %v3041 = vpop.f32.mrb[0].mxu0
      %v3042 = vadd.f32 %v2809, %v3041
      %v3043 = vpop.f32.mrb[0].mxu0
      %v3044 = vpop.f32.mrb[0].mxu0
      %v3045 = vadd.f32 %v2812, %v3044
      %v3046 = vpop.f32.mrb[0].mxu0
      %3047 = vmatprep.mubr.bf16.mxu0 %v2956
      %3048 = vmatmul.mubr.bf16.gmra.mrb[0].mxu0 %v2919
      %v3049 = vpop.f32.mrb[0].mxu0
      %v3050 = vadd.f32 %v2817, %v3049
      %v3051 = vpop.f32.mrb[0].mxu0
      %v3052 = vpop.f32.mrb[0].mxu0
      %v3053 = vadd.f32 %v2820, %v3052
      %v3054 = vpop.f32.mrb[0].mxu0
      %3055 = vmatprep.mubr.bf16.mxu0 %v2959
      %3056 = vmatmul.mubr.bf16.gmra.mrb[0].mxu0 %v2921
      %v3057 = vpop.f32.mrb[0].mxu0
      %v3058 = vadd.f32 %v2825, %v3057
      %v3059 = vpop.f32.mrb[0].mxu0
      %v3060 = vpop.f32.mrb[0].mxu0
      %v3061 = vadd.f32 %v2828, %v3060
      %v3062 = vpop.f32.mrb[0].mxu0
      %3063 = vmatprep.mubr.bf16.mxu0 %v2962
      %3064 = vmatmul.mubr.bf16.gmra.mrb[0].mxu0 %v2923
      %v3065 = vpop.f32.mrb[0].mxu0
      %v3066 = vadd.f32 %v2833, %v3065
      %v3067 = vpop.f32.mrb[0].mxu0
      %v3068 = vpop.f32.mrb[0].mxu0
      %v3069 = vadd.f32 %v2836, %v3068
      %v3070 = vpop.f32.mrb[0].mxu0
      %3071 = vmatprep.mubr.bf16.mxu0 %v2965
      %3072 = vmatmul.mubr.bf16.gmra.mrb[0].mxu0 %v2925
      %v3073 = vpop.f32.mrb[0].mxu0
      %v3074 = vadd.f32 %v2841, %v3073
      %v3075 = vpop.f32.mrb[0].mxu0
      %v3076 = vpop.f32.mrb[0].mxu0
      %v3077 = vadd.f32 %v2844, %v3076
      %v3078 = vpop.f32.mrb[0].mxu0
      %3079 = vdwg.mxu0
      %s3080 = scalar_lea.vmem %s3, 320
      %v3081 = vld [vmem:[%s3080] sm:$0xff]
      %v3082 = vld [vmem:[%s3080 + $0x8] sm:$0xff]
      %v3083 = vld [vmem:[%s3080 + $0x10] sm:$0xff]
      %v3084 = vld [vmem:[%s3080 + $0x18] sm:$0xff]
      %v3085 = vld [vmem:[%s3080 + $0x20] sm:$0xff]
      %v3086 = vld [vmem:[%s3080 + $0x28] sm:$0xff]
      %v3087 = vld [vmem:[%s3080 + $0x30] sm:$0xff]
      %v3088 = vld [vmem:[%s3080 + $0x38] sm:$0xff]
      %v3089 = vld [vmem:[%s3080 + $0x40] sm:$0xff]
      %v3090 = vld [vmem:[%s3080 + $0x48] sm:$0xff]
      %v3091 = vld [vmem:[%s3080 + $0x50] sm:$0xff]
      %v3092 = vld [vmem:[%s3080 + $0x58] sm:$0xff]
      %v3093 = vld [vmem:[%s3080 + $0x60] sm:$0xff]
      %v3094 = vld [vmem:[%s3080 + $0x68] sm:$0xff]
      %v3095 = vld [vmem:[%s3080 + $0x70] sm:$0xff]
      %v3096 = vld [vmem:[%s3080 + $0x78] sm:$0xff]
      %v3097 = vld [vmem:[%s3080 + $0x80] sm:$0xff]
      %v3098 = vld [vmem:[%s3080 + $0x88] sm:$0xff]
      %v3099 = vld [vmem:[%s3080 + $0x90] sm:$0xff]
      %v3100 = vld [vmem:[%s3080 + $0x98] sm:$0xff]
      %v3121 = vunpack.c.l.b16 %v3081
      %v3122 = vunpack.c.h.b16 %v3081
      %v3123 = vunpack.c.l.b16 %v3082
      %v3124 = vunpack.c.h.b16 %v3082
      %v3125 = vunpack.c.l.b16 %v3083
      %v3126 = vunpack.c.h.b16 %v3083
      %v3127 = vunpack.c.l.b16 %v3084
      %v3128 = vunpack.c.h.b16 %v3084
      %v3129 = vunpack.c.l.b16 %v3085
      %v3130 = vunpack.c.h.b16 %v3085
      %v3131 = vunpack.c.l.b16 %v3086
      %v3132 = vunpack.c.h.b16 %v3086
      %v3133 = vunpack.c.l.b16 %v3087
      %v3134 = vunpack.c.h.b16 %v3087
      %v3135 = vunpack.c.l.b16 %v3088
      %v3136 = vunpack.c.h.b16 %v3088
      %v3137 = vunpack.c.l.b16 %v3089
      %v3138 = vunpack.c.h.b16 %v3089
      %v3139 = vunpack.c.l.b16 %v3090
      %v3140 = vunpack.c.h.b16 %v3090
      %v3141 = vunpack.c.l.b16 %v3091
      %v3142 = vunpack.c.h.b16 %v3091
      %v3143 = vunpack.c.l.b16 %v3092
      %v3144 = vunpack.c.h.b16 %v3092
      %v3145 = vunpack.c.l.b16 %v3093
      %v3146 = vunpack.c.h.b16 %v3093
      %v3147 = vunpack.c.l.b16 %v3094
      %v3148 = vunpack.c.h.b16 %v3094
      %v3149 = vunpack.c.l.b16 %v3095
      %v3150 = vunpack.c.h.b16 %v3095
      %v3151 = vunpack.c.l.b16 %v3096
      %v3152 = vunpack.c.h.b16 %v3096
      %v3153 = vunpack.c.l.b16 %v3097
      %v3154 = vunpack.c.h.b16 %v3097
      %v3155 = vunpack.c.l.b16 %v3098
      %v3156 = vunpack.c.h.b16 %v3098
      %v3157 = vunpack.c.l.b16 %v3099
      %v3158 = vunpack.c.h.b16 %v3099
      %v3159 = vunpack.c.l.b16 %v3100
      %v3160 = vunpack.c.h.b16 %v3100
      %v3161 = vpack.c.b16 %v3123, %v3121
      %v3162 = vpack.c.b16 %v3124, %v3122
      %v3163 = vpack.c.b16 %v3127, %v3125
      %v3164 = vpack.c.b16 %v3128, %v3126
      %v3165 = vpack.c.b16 %v3131, %v3129
      %v3166 = vpack.c.b16 %v3132, %v3130
      %v3167 = vpack.c.b16 %v3135, %v3133
      %v3168 = vpack.c.b16 %v3136, %v3134
      %v3169 = vpack.c.b16 %v3139, %v3137
      %v3170 = vpack.c.b16 %v3140, %v3138
      %v3171 = vpack.c.b16 %v3143, %v3141
      %v3172 = vpack.c.b16 %v3144, %v3142
      %v3173 = vpack.c.b16 %v3147, %v3145
      %v3174 = vpack.c.b16 %v3148, %v3146
      %v3175 = vpack.c.b16 %v3151, %v3149
      %v3176 = vpack.c.b16 %v3152, %v3150
      %v3177 = vpack.c.b16 %v3155, %v3153
      %v3178 = vpack.c.b16 %v3156, %v3154
      %v3179 = vpack.c.b16 %v3159, %v3157
      %v3180 = vpack.c.b16 %v3160, %v3158
      %3191 = vrot.lane.b32.xlu0 %v2497, 120
      %v3192 = vpop.permute.xlu0 %3191
      %3193 = vrot.lane.b32.xlu0 %v2498, 120
      %v3194 = vpop.permute.xlu0 %3193
      %3195 = vrot.lane.b32.xlu0 %v2499, 120
      %v3196 = vpop.permute.xlu0 %3195
      %3197 = vrot.lane.b32.xlu0 %v2500, 120
      %v3198 = vpop.permute.xlu0 %3197
      %3199 = vrot.lane.b32.xlu0 %v2501, 120
      %v3200 = vpop.permute.xlu0 %3199
      %3201 = vrot.lane.b32.xlu0 %v2502, 120
      %v3202 = vpop.permute.xlu0 %3201
      %3203 = vrot.lane.b32.xlu0 %v2503, 120
      %v3204 = vpop.permute.xlu0 %3203
      %3205 = vrot.lane.b32.xlu0 %v2504, 120
      %v3206 = vpop.permute.xlu0 %3205
      %3207 = vrot.lane.b32.xlu0 %v2505, 120
      %v3208 = vpop.permute.xlu0 %3207
      %3209 = vrot.lane.b32.xlu0 %v2506, 120
      %v3210 = vpop.permute.xlu0 %3209
      %3211 = vrot.lane.b32.xlu0 %v2507, 120
      %v3212 = vpop.permute.xlu0 %3211
      %3213 = vrot.lane.b32.xlu0 %v2508, 120
      %v3214 = vpop.permute.xlu0 %3213
      %3215 = vrot.lane.b32.xlu0 %v2509, 120
      %v3216 = vpop.permute.xlu0 %3215
      %3217 = vrot.lane.b32.xlu0 %v2510, 120
      %v3218 = vpop.permute.xlu0 %3217
      %3219 = vrot.lane.b32.xlu0 %v2511, 120
      %v3220 = vpop.permute.xlu0 %3219
      %v3237 = vsel %vm2703, %v3162, 0
      %v3240 = vsel %vm2703, %v3164, 0
      %v3243 = vsel %vm2703, %v3166, 0
      %v3246 = vsel %vm2703, %v3168, 0
      %v3249 = vsel %vm2703, %v3170, 0
      %v3252 = vsel %vm2703, %v3172, 0
      %v3255 = vsel %vm2703, %v3174, 0
      %v3258 = vsel %vm2703, %v3176, 0
      %v3261 = vsel %vm2703, %v3178, 0
      %v3264 = vsel %vm2703, %v3180, 0
      %3266 = vmatprep.subr.bf16.mxu0 0
      %3267 = vmatpush1.bf16.msra.mxu0 %v3192
      %3268 = vmatprep.subr.bf16.mxu0 0
      %3269 = vmatpush1.bf16.msra.mxu0 %v3194
      %3270 = vmatprep.subr.bf16.mxu0 0
      %3271 = vmatpush1.bf16.msra.mxu0 %v3196
      %3272 = vmatprep.subr.bf16.mxu0 0
      %3273 = vmatpush1.bf16.msra.mxu0 %v3198
      %3274 = vmatprep.subr.bf16.mxu0 0
      %3275 = vmatpush1.bf16.msra.mxu0 %v3200
      %3276 = vmatprep.subr.bf16.mxu0 0
      %3277 = vmatpush1.bf16.msra.mxu0 %v3202
      %3278 = vmatprep.subr.bf16.mxu0 0
      %3279 = vmatpush1.bf16.msra.mxu0 %v3204
      %3280 = vmatprep.subr.bf16.mxu0 0
      %3281 = vmatpush1.bf16.msra.mxu0 %v3206
      %3282 = vmatprep.subr.bf16.mxu0 0
      %3283 = vmatpush1.bf16.msra.mxu0 %v3208
      %3284 = vmatprep.subr.bf16.mxu0 0
      %3285 = vmatpush1.bf16.msra.mxu0 %v3210
      %3286 = vmatprep.subr.bf16.mxu0 0
      %3287 = vmatpush1.bf16.msra.mxu0 %v3212
      %3288 = vmatprep.subr.bf16.mxu0 0
      %3289 = vmatpush1.bf16.msra.mxu0 %v3214
      %3290 = vmatprep.subr.bf16.mxu0 0
      %3291 = vmatpush1.bf16.msra.mxu0 %v3216
      %3292 = vmatprep.subr.bf16.mxu0 0
      %3293 = vmatpush1.bf16.msra.mxu0 %v3218
      %3294 = vmatprep.subr.bf16.mxu0 0
      %3295 = vmatpush1.bf16.msra.mxu0 %v3220
      %3296 = vmatprep.subr.bf16.mxu0 0
      %3297 = vmatpush1.bf16.msra.mxu0 0
      %3298 = vmatprep.mubr.bf16.mxu0 %v3237
      %3299 = vmatmul.mubr.bf16.gmra.mrb[0].mxu0 %v3161
      %v3300 = vpop.f32.mrb[0].mxu0
      %v3301 = vadd.f32 0.0, %v3300
      %v3302 = vpop.f32.mrb[0].mxu0
      %v3303 = vpop.f32.mrb[0].mxu0
      %v3304 = vadd.f32 0.0, %v3303
      %v3305 = vpop.f32.mrb[0].mxu0
      %3306 = vmatprep.mubr.bf16.mxu0 %v3240
      %3307 = vmatmul.mubr.bf16.gmra.mrb[0].mxu0 %v3163
      %v3308 = vpop.f32.mrb[0].mxu0
      %v3309 = vadd.f32 0.0, %v3308
      %v3310 = vpop.f32.mrb[0].mxu0
      %v3311 = vpop.f32.mrb[0].mxu0
      %v3312 = vadd.f32 0.0, %v3311
      %v3313 = vpop.f32.mrb[0].mxu0
      %3314 = vmatprep.mubr.bf16.mxu0 %v3243
      %3315 = vmatmul.mubr.bf16.gmra.mrb[0].mxu0 %v3165
      %v3316 = vpop.f32.mrb[0].mxu0
      %v3317 = vadd.f32 0.0, %v3316
      %v3318 = vpop.f32.mrb[0].mxu0
      %v3319 = vpop.f32.mrb[0].mxu0
      %v3320 = vadd.f32 0.0, %v3319
      %v3321 = vpop.f32.mrb[0].mxu0
      %3322 = vmatprep.mubr.bf16.mxu0 %v3246
      %3323 = vmatmul.mubr.bf16.gmra.mrb[0].mxu0 %v3167
      %v3324 = vpop.f32.mrb[0].mxu0
      %v3325 = vadd.f32 0.0, %v3324
      %v3326 = vpop.f32.mrb[0].mxu0
      %v3327 = vpop.f32.mrb[0].mxu0
      %v3328 = vadd.f32 0.0, %v3327
      %v3329 = vpop.f32.mrb[0].mxu0
      %3330 = vmatprep.mubr.bf16.mxu0 %v3249
      %3331 = vmatmul.mubr.bf16.gmra.mrb[0].mxu0 %v3169
      %v3332 = vpop.f32.mrb[0].mxu0
      %v3333 = vadd.f32 0.0, %v3332
      %v3334 = vpop.f32.mrb[0].mxu0
      %v3335 = vpop.f32.mrb[0].mxu0
      %v3336 = vadd.f32 0.0, %v3335
      %v3337 = vpop.f32.mrb[0].mxu0
      %3338 = vmatprep.mubr.bf16.mxu0 %v3252
      %3339 = vmatmul.mubr.bf16.gmra.mrb[0].mxu0 %v3171
      %v3340 = vpop.f32.mrb[0].mxu0
      %v3341 = vadd.f32 0.0, %v3340
      %v3342 = vpop.f32.mrb[0].mxu0
      %v3343 = vpop.f32.mrb[0].mxu0
      %v3344 = vadd.f32 0.0, %v3343
      %v3345 = vpop.f32.mrb[0].mxu0
      %3346 = vmatprep.mubr.bf16.mxu0 %v3255
      %3347 = vmatmul.mubr.bf16.gmra.mrb[0].mxu0 %v3173
      %v3348 = vpop.f32.mrb[0].mxu0
      %v3349 = vadd.f32 0.0, %v3348
      %v3350 = vpop.f32.mrb[0].mxu0
      %v3351 = vpop.f32.mrb[0].mxu0
      %v3352 = vadd.f32 0.0, %v3351
      %v3353 = vpop.f32.mrb[0].mxu0
      %3354 = vmatprep.mubr.bf16.mxu0 %v3258
      %3355 = vmatmul.mubr.bf16.gmra.mrb[0].mxu0 %v3175
      %v3356 = vpop.f32.mrb[0].mxu0
      %v3357 = vadd.f32 0.0, %v3356
      %v3358 = vpop.f32.mrb[0].mxu0
      %v3359 = vpop.f32.mrb[0].mxu0
      %v3360 = vadd.f32 0.0, %v3359
      %v3361 = vpop.f32.mrb[0].mxu0
      %3362 = vmatprep.mubr.bf16.mxu0 %v3261
      %3363 = vmatmul.mubr.bf16.gmra.mrb[0].mxu0 %v3177
      %v3364 = vpop.f32.mrb[0].mxu0
      %v3365 = vadd.f32 0.0, %v3364
      %v3366 = vpop.f32.mrb[0].mxu0
      %v3367 = vpop.f32.mrb[0].mxu0
      %v3368 = vadd.f32 0.0, %v3367
      %v3369 = vpop.f32.mrb[0].mxu0
      %3370 = vmatprep.mubr.bf16.mxu0 %v3264
      %3371 = vmatmul.mubr.bf16.gmra.mrb[0].mxu0 %v3179
      %v3372 = vpop.f32.mrb[0].mxu0
      %v3373 = vadd.f32 0.0, %v3372
      %v3374 = vpop.f32.mrb[0].mxu0
      %v3375 = vpop.f32.mrb[0].mxu0
      %v3376 = vadd.f32 0.0, %v3375
      %v3377 = vpop.f32.mrb[0].mxu0
      %3378 = vdwg.mxu0
      %v3379 = vadd.f32 %v3002, %v3301
      %v3380 = vadd.f32 %v3005, %v3304
      %v3381 = vadd.f32 %v3010, %v3309
      %v3382 = vadd.f32 %v3013, %v3312
      %v3383 = vadd.f32 %v3018, %v3317
      %v3384 = vadd.f32 %v3021, %v3320
      %v3385 = vadd.f32 %v3026, %v3325
      %v3386 = vadd.f32 %v3029, %v3328
      %v3387 = vadd.f32 %v3034, %v3333
      %v3388 = vadd.f32 %v3037, %v3336
      %v3389 = vadd.f32 %v3042, %v3341
      %v3390 = vadd.f32 %v3045, %v3344
      %v3391 = vadd.f32 %v3050, %v3349
      %v3392 = vadd.f32 %v3053, %v3352
      %v3393 = vadd.f32 %v3058, %v3357
      %v3394 = vadd.f32 %v3061, %v3360
      %v3395 = vadd.f32 %v3066, %v3365
      %v3396 = vadd.f32 %v3069, %v3368
      %v3397 = vadd.f32 %v3074, %v3373
      %v3398 = vadd.f32 %v3077, %v3376
      %s3399 = scalar_lea.vmem %s3, 480
      %v3400 = vld [vmem:[%s3399] sm:$0xff]
      %v3401 = vld [vmem:[%s3399 + $0x8] sm:$0xff]
      %v3402 = vld [vmem:[%s3399 + $0x10] sm:$0xff]
      %v3403 = vld [vmem:[%s3399 + $0x18] sm:$0xff]
      %v3404 = vld [vmem:[%s3399 + $0x20] sm:$0xff]
      %v3405 = vld [vmem:[%s3399 + $0x28] sm:$0xff]
      %v3406 = vld [vmem:[%s3399 + $0x30] sm:$0xff]
      %v3407 = vld [vmem:[%s3399 + $0x38] sm:$0xff]
      %v3408 = vld [vmem:[%s3399 + $0x40] sm:$0xff]
      %v3409 = vld [vmem:[%s3399 + $0x48] sm:$0xff]
      %v3410 = vld [vmem:[%s3399 + $0x50] sm:$0xff]
      %v3411 = vld [vmem:[%s3399 + $0x58] sm:$0xff]
      %v3412 = vld [vmem:[%s3399 + $0x60] sm:$0xff]
      %v3413 = vld [vmem:[%s3399 + $0x68] sm:$0xff]
      %v3414 = vld [vmem:[%s3399 + $0x70] sm:$0xff]
      %v3415 = vld [vmem:[%s3399 + $0x78] sm:$0xff]
      %v3416 = vld [vmem:[%s3399 + $0x80] sm:$0xff]
      %v3417 = vld [vmem:[%s3399 + $0x88] sm:$0xff]
      %v3418 = vld [vmem:[%s3399 + $0x90] sm:$0xff]
      %v3419 = vld [vmem:[%s3399 + $0x98] sm:$0xff]
      %v3440 = vunpack.c.l.b16 %v3400
      %v3441 = vunpack.c.h.b16 %v3400
      %v3442 = vunpack.c.l.b16 %v3401
      %v3443 = vunpack.c.h.b16 %v3401
      %v3444 = vunpack.c.l.b16 %v3402
      %v3445 = vunpack.c.h.b16 %v3402
      %v3446 = vunpack.c.l.b16 %v3403
      %v3447 = vunpack.c.h.b16 %v3403
      %v3448 = vunpack.c.l.b16 %v3404
      %v3449 = vunpack.c.h.b16 %v3404
      %v3450 = vunpack.c.l.b16 %v3405
      %v3451 = vunpack.c.h.b16 %v3405
      %v3452 = vunpack.c.l.b16 %v3406
      %v3453 = vunpack.c.h.b16 %v3406
      %v3454 = vunpack.c.l.b16 %v3407
      %v3455 = vunpack.c.h.b16 %v3407
      %v3456 = vunpack.c.l.b16 %v3408
      %v3457 = vunpack.c.h.b16 %v3408
      %v3458 = vunpack.c.l.b16 %v3409
      %v3459 = vunpack.c.h.b16 %v3409
      %v3460 = vunpack.c.l.b16 %v3410
      %v3461 = vunpack.c.h.b16 %v3410
      %v3462 = vunpack.c.l.b16 %v3411
      %v3463 = vunpack.c.h.b16 %v3411
      %v3464 = vunpack.c.l.b16 %v3412
      %v3465 = vunpack.c.h.b16 %v3412
      %v3466 = vunpack.c.l.b16 %v3413
      %v3467 = vunpack.c.h.b16 %v3413
      %v3468 = vunpack.c.l.b16 %v3414
      %v3469 = vunpack.c.h.b16 %v3414
      %v3470 = vunpack.c.l.b16 %v3415
      %v3471 = vunpack.c.h.b16 %v3415
      %v3472 = vunpack.c.l.b16 %v3416
      %v3473 = vunpack.c.h.b16 %v3416
      %v3474 = vunpack.c.l.b16 %v3417
      %v3475 = vunpack.c.h.b16 %v3417
      %v3476 = vunpack.c.l.b16 %v3418
      %v3477 = vunpack.c.h.b16 %v3418
      %v3478 = vunpack.c.l.b16 %v3419
      %v3479 = vunpack.c.h.b16 %v3419
      %v3480 = vpack.c.b16 %v3442, %v3440
      %v3481 = vpack.c.b16 %v3443, %v3441
      %v3482 = vpack.c.b16 %v3446, %v3444
      %v3483 = vpack.c.b16 %v3447, %v3445
      %v3484 = vpack.c.b16 %v3450, %v3448
      %v3485 = vpack.c.b16 %v3451, %v3449
      %v3486 = vpack.c.b16 %v3454, %v3452
      %v3487 = vpack.c.b16 %v3455, %v3453
      %v3488 = vpack.c.b16 %v3458, %v3456
      %v3489 = vpack.c.b16 %v3459, %v3457
      %v3490 = vpack.c.b16 %v3462, %v3460
      %v3491 = vpack.c.b16 %v3463, %v3461
      %v3492 = vpack.c.b16 %v3466, %v3464
      %v3493 = vpack.c.b16 %v3467, %v3465
      %v3494 = vpack.c.b16 %v3470, %v3468
      %v3495 = vpack.c.b16 %v3471, %v3469
      %v3496 = vpack.c.b16 %v3474, %v3472
      %v3497 = vpack.c.b16 %v3475, %v3473
      %v3498 = vpack.c.b16 %v3478, %v3476
      %v3499 = vpack.c.b16 %v3479, %v3477
      %3510 = vrot.lane.b32.xlu0 %v2497, 116
      %v3511 = vpop.permute.xlu0 %3510
      %3512 = vrot.lane.b32.xlu0 %v2498, 116
      %v3513 = vpop.permute.xlu0 %3512
      %3514 = vrot.lane.b32.xlu0 %v2499, 116
      %v3515 = vpop.permute.xlu0 %3514
      %3516 = vrot.lane.b32.xlu0 %v2500, 116
      %v3517 = vpop.permute.xlu0 %3516
      %3518 = vrot.lane.b32.xlu0 %v2501, 116
      %v3519 = vpop.permute.xlu0 %3518
      %3520 = vrot.lane.b32.xlu0 %v2502, 116
      %v3521 = vpop.permute.xlu0 %3520
      %3522 = vrot.lane.b32.xlu0 %v2503, 116
      %v3523 = vpop.permute.xlu0 %3522
      %3524 = vrot.lane.b32.xlu0 %v2504, 116
      %v3525 = vpop.permute.xlu0 %3524
      %3526 = vrot.lane.b32.xlu0 %v2505, 116
      %v3527 = vpop.permute.xlu0 %3526
      %3528 = vrot.lane.b32.xlu0 %v2506, 116
      %v3529 = vpop.permute.xlu0 %3528
      %3530 = vrot.lane.b32.xlu0 %v2507, 116
      %v3531 = vpop.permute.xlu0 %3530
      %3532 = vrot.lane.b32.xlu0 %v2508, 116
      %v3533 = vpop.permute.xlu0 %3532
      %3534 = vrot.lane.b32.xlu0 %v2509, 116
      %v3535 = vpop.permute.xlu0 %3534
      %3536 = vrot.lane.b32.xlu0 %v2510, 116
      %v3537 = vpop.permute.xlu0 %3536
      %3538 = vrot.lane.b32.xlu0 %v2511, 116
      %v3539 = vpop.permute.xlu0 %3538
      %v3556 = vsel %vm2703, %v3481, 0
      %v3559 = vsel %vm2703, %v3483, 0
      %v3562 = vsel %vm2703, %v3485, 0
      %v3565 = vsel %vm2703, %v3487, 0
      %v3568 = vsel %vm2703, %v3489, 0
      %v3571 = vsel %vm2703, %v3491, 0
      %v3574 = vsel %vm2703, %v3493, 0
      %v3577 = vsel %vm2703, %v3495, 0
      %v3580 = vsel %vm2703, %v3497, 0
      %v3583 = vsel %vm2703, %v3499, 0
      %3585 = vmatprep.subr.bf16.mxu0 0
      %3586 = vmatpush1.bf16.msra.mxu0 %v3511
      %3587 = vmatprep.subr.bf16.mxu0 0
      %3588 = vmatpush1.bf16.msra.mxu0 %v3513
      %3589 = vmatprep.subr.bf16.mxu0 0
      %3590 = vmatpush1.bf16.msra.mxu0 %v3515
      %3591 = vmatprep.subr.bf16.mxu0 0
      %3592 = vmatpush1.bf16.msra.mxu0 %v3517
      %3593 = vmatprep.subr.bf16.mxu0 0
      %3594 = vmatpush1.bf16.msra.mxu0 %v3519
      %3595 = vmatprep.subr.bf16.mxu0 0
      %3596 = vmatpush1.bf16.msra.mxu0 %v3521
      %3597 = vmatprep.subr.bf16.mxu0 0
      %3598 = vmatpush1.bf16.msra.mxu0 %v3523
      %3599 = vmatprep.subr.bf16.mxu0 0
      %3600 = vmatpush1.bf16.msra.mxu0 %v3525
      %3601 = vmatprep.subr.bf16.mxu0 0
      %3602 = vmatpush1.bf16.msra.mxu0 %v3527
      %3603 = vmatprep.subr.bf16.mxu0 0
      %3604 = vmatpush1.bf16.msra.mxu0 %v3529
      %3605 = vmatprep.subr.bf16.mxu0 0
      %3606 = vmatpush1.bf16.msra.mxu0 %v3531
      %3607 = vmatprep.subr.bf16.mxu0 0
      %3608 = vmatpush1.bf16.msra.mxu0 %v3533
      %3609 = vmatprep.subr.bf16.mxu0 0
      %3610 = vmatpush1.bf16.msra.mxu0 %v3535
      %3611 = vmatprep.subr.bf16.mxu0 0
      %3612 = vmatpush1.bf16.msra.mxu0 %v3537
      %3613 = vmatprep.subr.bf16.mxu0 0
      %3614 = vmatpush1.bf16.msra.mxu0 %v3539
      %3615 = vmatprep.subr.bf16.mxu0 0
      %3616 = vmatpush1.bf16.msra.mxu0 0
      %3617 = vmatprep.mubr.bf16.mxu0 %v3556
      %3618 = vmatmul.mubr.bf16.gmra.mrb[0].mxu0 %v3480
      %v3619 = vpop.f32.mrb[0].mxu0
      %v3620 = vadd.f32 0.0, %v3619
      %v3621 = vpop.f32.mrb[0].mxu0
      %v3622 = vpop.f32.mrb[0].mxu0
      %v3623 = vadd.f32 0.0, %v3622
      %v3624 = vpop.f32.mrb[0].mxu0
      %3625 = vmatprep.mubr.bf16.mxu0 %v3559
      %3626 = vmatmul.mubr.bf16.gmra.mrb[0].mxu0 %v3482
      %v3627 = vpop.f32.mrb[0].mxu0
      %v3628 = vadd.f32 0.0, %v3627
      %v3629 = vpop.f32.mrb[0].mxu0
      %v3630 = vpop.f32.mrb[0].mxu0
      %v3631 = vadd.f32 0.0, %v3630
      %v3632 = vpop.f32.mrb[0].mxu0
      %3633 = vmatprep.mubr.bf16.mxu0 %v3562
      %3634 = vmatmul.mubr.bf16.gmra.mrb[0].mxu0 %v3484
      %v3635 = vpop.f32.mrb[0].mxu0
      %v3636 = vadd.f32 0.0, %v3635
      %v3637 = vpop.f32.mrb[0].mxu0
      %v3638 = vpop.f32.mrb[0].mxu0
      %v3639 = vadd.f32 0.0, %v3638
      %v3640 = vpop.f32.mrb[0].mxu0
      %3641 = vmatprep.mubr.bf16.mxu0 %v3565
      %3642 = vmatmul.mubr.bf16.gmra.mrb[0].mxu0 %v3486
      %v3643 = vpop.f32.mrb[0].mxu0
      %v3644 = vadd.f32 0.0, %v3643
      %v3645 = vpop.f32.mrb[0].mxu0
      %v3646 = vpop.f32.mrb[0].mxu0
      %v3647 = vadd.f32 0.0, %v3646
      %v3648 = vpop.f32.mrb[0].mxu0
      %3649 = vmatprep.mubr.bf16.mxu0 %v3568
      %3650 = vmatmul.mubr.bf16.gmra.mrb[0].mxu0 %v3488
      %v3651 = vpop.f32.mrb[0].mxu0
      %v3652 = vadd.f32 0.0, %v3651
      %v3653 = vpop.f32.mrb[0].mxu0
      %v3654 = vpop.f32.mrb[0].mxu0
      %v3655 = vadd.f32 0.0, %v3654
      %v3656 = vpop.f32.mrb[0].mxu0
      %3657 = vmatprep.mubr.bf16.mxu0 %v3571
      %3658 = vmatmul.mubr.bf16.gmra.mrb[0].mxu0 %v3490
      %v3659 = vpop.f32.mrb[0].mxu0
      %v3660 = vadd.f32 0.0, %v3659
      %v3661 = vpop.f32.mrb[0].mxu0
      %v3662 = vpop.f32.mrb[0].mxu0
      %v3663 = vadd.f32 0.0, %v3662
      %v3664 = vpop.f32.mrb[0].mxu0
      %3665 = vmatprep.mubr.bf16.mxu0 %v3574
      %3666 = vmatmul.mubr.bf16.gmra.mrb[0].mxu0 %v3492
      %v3667 = vpop.f32.mrb[0].mxu0
      %v3668 = vadd.f32 0.0, %v3667
      %v3669 = vpop.f32.mrb[0].mxu0
      %v3670 = vpop.f32.mrb[0].mxu0
      %v3671 = vadd.f32 0.0, %v3670
      %v3672 = vpop.f32.mrb[0].mxu0
      %3673 = vmatprep.mubr.bf16.mxu0 %v3577
      %3674 = vmatmul.mubr.bf16.gmra.mrb[0].mxu0 %v3494
      %v3675 = vpop.f32.mrb[0].mxu0
      %v3676 = vadd.f32 0.0, %v3675
      %v3677 = vpop.f32.mrb[0].mxu0
      %v3678 = vpop.f32.mrb[0].mxu0
      %v3679 = vadd.f32 0.0, %v3678
      %v3680 = vpop.f32.mrb[0].mxu0
      %3681 = vmatprep.mubr.bf16.mxu0 %v3580
      %3682 = vmatmul.mubr.bf16.gmra.mrb[0].mxu0 %v3496
      %v3683 = vpop.f32.mrb[0].mxu0
      %v3684 = vadd.f32 0.0, %v3683
      %v3685 = vpop.f32.mrb[0].mxu0
      %v3686 = vpop.f32.mrb[0].mxu0
      %v3687 = vadd.f32 0.0, %v3686
      %v3688 = vpop.f32.mrb[0].mxu0
      %3689 = vmatprep.mubr.bf16.mxu0 %v3583
      %3690 = vmatmul.mubr.bf16.gmra.mrb[0].mxu0 %v3498
      %v3691 = vpop.f32.mrb[0].mxu0
      %v3692 = vadd.f32 0.0, %v3691
      %v3693 = vpop.f32.mrb[0].mxu0
      %v3694 = vpop.f32.mrb[0].mxu0
      %v3695 = vadd.f32 0.0, %v3694
      %v3696 = vpop.f32.mrb[0].mxu0
      %3697 = vdwg.mxu0
      %v3698 = vadd.f32 %v3379, %v3620
      %v3699 = vadd.f32 %v3380, %v3623
      %v3700 = vadd.f32 %v3381, %v3628
      %v3701 = vadd.f32 %v3382, %v3631
      %v3702 = vadd.f32 %v3383, %v3636
      %v3703 = vadd.f32 %v3384, %v3639
      %v3704 = vadd.f32 %v3385, %v3644
      %v3705 = vadd.f32 %v3386, %v3647
      %v3706 = vadd.f32 %v3387, %v3652
      %v3707 = vadd.f32 %v3388, %v3655
      %v3708 = vadd.f32 %v3389, %v3660
      %v3709 = vadd.f32 %v3390, %v3663
      %v3710 = vadd.f32 %v3391, %v3668
      %v3711 = vadd.f32 %v3392, %v3671
      %v3712 = vadd.f32 %v3393, %v3676
      %v3713 = vadd.f32 %v3394, %v3679
      %v3714 = vadd.f32 %v3395, %v3684
      %v3715 = vadd.f32 %v3396, %v3687
      %v3716 = vadd.f32 %v3397, %v3692
      %v3717 = vadd.f32 %v3398, %v3695
      %s3718 = scalar_lea.vmem %s3, 640
      %v3719 = vld [vmem:[%s3718] sm:$0xff]
      %v3720 = vld [vmem:[%s3718 + $0x8] sm:$0xff]
      %v3721 = vld [vmem:[%s3718 + $0x10] sm:$0xff]
      %v3722 = vld [vmem:[%s3718 + $0x18] sm:$0xff]
      %v3723 = vld [vmem:[%s3718 + $0x20] sm:$0xff]
      %v3724 = vld [vmem:[%s3718 + $0x28] sm:$0xff]
      %v3725 = vld [vmem:[%s3718 + $0x30] sm:$0xff]
      %v3726 = vld [vmem:[%s3718 + $0x38] sm:$0xff]
      %v3727 = vld [vmem:[%s3718 + $0x40] sm:$0xff]
      %v3728 = vld [vmem:[%s3718 + $0x48] sm:$0xff]
      %v3729 = vld [vmem:[%s3718 + $0x50] sm:$0xff]
      %v3730 = vld [vmem:[%s3718 + $0x58] sm:$0xff]
      %v3731 = vld [vmem:[%s3718 + $0x60] sm:$0xff]
      %v3732 = vld [vmem:[%s3718 + $0x68] sm:$0xff]
      %v3733 = vld [vmem:[%s3718 + $0x70] sm:$0xff]
      %v3734 = vld [vmem:[%s3718 + $0x78] sm:$0xff]
      %v3735 = vld [vmem:[%s3718 + $0x80] sm:$0xff]
      %v3736 = vld [vmem:[%s3718 + $0x88] sm:$0xff]
      %v3737 = vld [vmem:[%s3718 + $0x90] sm:$0xff]
      %v3738 = vld [vmem:[%s3718 + $0x98] sm:$0xff]
      %v3759 = vunpack.c.l.b16 %v3719
      %v3760 = vunpack.c.h.b16 %v3719
      %v3761 = vunpack.c.l.b16 %v3720
      %v3762 = vunpack.c.h.b16 %v3720
      %v3763 = vunpack.c.l.b16 %v3721
      %v3764 = vunpack.c.h.b16 %v3721
      %v3765 = vunpack.c.l.b16 %v3722
      %v3766 = vunpack.c.h.b16 %v3722
      %v3767 = vunpack.c.l.b16 %v3723
      %v3768 = vunpack.c.h.b16 %v3723
      %v3769 = vunpack.c.l.b16 %v3724
      %v3770 = vunpack.c.h.b16 %v3724
      %v3771 = vunpack.c.l.b16 %v3725
      %v3772 = vunpack.c.h.b16 %v3725
      %v3773 = vunpack.c.l.b16 %v3726
      %v3774 = vunpack.c.h.b16 %v3726
      %v3775 = vunpack.c.l.b16 %v3727
      %v3776 = vunpack.c.h.b16 %v3727
      %v3777 = vunpack.c.l.b16 %v3728
      %v3778 = vunpack.c.h.b16 %v3728
      %v3779 = vunpack.c.l.b16 %v3729
      %v3780 = vunpack.c.h.b16 %v3729
      %v3781 = vunpack.c.l.b16 %v3730
      %v3782 = vunpack.c.h.b16 %v3730
      %v3783 = vunpack.c.l.b16 %v3731
      %v3784 = vunpack.c.h.b16 %v3731
      %v3785 = vunpack.c.l.b16 %v3732
      %v3786 = vunpack.c.h.b16 %v3732
      %v3787 = vunpack.c.l.b16 %v3733
      %v3788 = vunpack.c.h.b16 %v3733
      %v3789 = vunpack.c.l.b16 %v3734
      %v3790 = vunpack.c.h.b16 %v3734
      %v3791 = vunpack.c.l.b16 %v3735
      %v3792 = vunpack.c.h.b16 %v3735
      %v3793 = vunpack.c.l.b16 %v3736
      %v3794 = vunpack.c.h.b16 %v3736
      %v3795 = vunpack.c.l.b16 %v3737
      %v3796 = vunpack.c.h.b16 %v3737
      %v3797 = vunpack.c.l.b16 %v3738
      %v3798 = vunpack.c.h.b16 %v3738
      %v3799 = vpack.c.b16 %v3761, %v3759
      %v3800 = vpack.c.b16 %v3762, %v3760
      %v3801 = vpack.c.b16 %v3765, %v3763
      %v3802 = vpack.c.b16 %v3766, %v3764
      %v3803 = vpack.c.b16 %v3769, %v3767
      %v3804 = vpack.c.b16 %v3770, %v3768
      %v3805 = vpack.c.b16 %v3773, %v3771
      %v3806 = vpack.c.b16 %v3774, %v3772
      %v3807 = vpack.c.b16 %v3777, %v3775
      %v3808 = vpack.c.b16 %v3778, %v3776
      %v3809 = vpack.c.b16 %v3781, %v3779
      %v3810 = vpack.c.b16 %v3782, %v3780
      %v3811 = vpack.c.b16 %v3785, %v3783
      %v3812 = vpack.c.b16 %v3786, %v3784
      %v3813 = vpack.c.b16 %v3789, %v3787
      %v3814 = vpack.c.b16 %v3790, %v3788
      %v3815 = vpack.c.b16 %v3793, %v3791
      %v3816 = vpack.c.b16 %v3794, %v3792
      %v3817 = vpack.c.b16 %v3797, %v3795
      %v3818 = vpack.c.b16 %v3798, %v3796
      %3829 = vrot.lane.b32.xlu0 %v2497, 112
      %v3830 = vpop.permute.xlu0 %3829
      %3831 = vrot.lane.b32.xlu0 %v2498, 112
      %v3832 = vpop.permute.xlu0 %3831
      %3833 = vrot.lane.b32.xlu0 %v2499, 112
      %v3834 = vpop.permute.xlu0 %3833
      %3835 = vrot.lane.b32.xlu0 %v2500, 112
      %v3836 = vpop.permute.xlu0 %3835
      %3837 = vrot.lane.b32.xlu0 %v2501, 112
      %v3838 = vpop.permute.xlu0 %3837
      %3839 = vrot.lane.b32.xlu0 %v2502, 112
      %v3840 = vpop.permute.xlu0 %3839
      %3841 = vrot.lane.b32.xlu0 %v2503, 112
      %v3842 = vpop.permute.xlu0 %3841
      %3843 = vrot.lane.b32.xlu0 %v2504, 112
      %v3844 = vpop.permute.xlu0 %3843
      %3845 = vrot.lane.b32.xlu0 %v2505, 112
      %v3846 = vpop.permute.xlu0 %3845
      %3847 = vrot.lane.b32.xlu0 %v2506, 112
      %v3848 = vpop.permute.xlu0 %3847
      %3849 = vrot.lane.b32.xlu0 %v2507, 112
      %v3850 = vpop.permute.xlu0 %3849
      %3851 = vrot.lane.b32.xlu0 %v2508, 112
      %v3852 = vpop.permute.xlu0 %3851
      %3853 = vrot.lane.b32.xlu0 %v2509, 112
      %v3854 = vpop.permute.xlu0 %3853
      %3855 = vrot.lane.b32.xlu0 %v2510, 112
      %v3856 = vpop.permute.xlu0 %3855
      %3857 = vrot.lane.b32.xlu0 %v2511, 112
      %v3858 = vpop.permute.xlu0 %3857
      %v3875 = vsel %vm2703, %v3800, 0
      %v3878 = vsel %vm2703, %v3802, 0
      %v3881 = vsel %vm2703, %v3804, 0
      %v3884 = vsel %vm2703, %v3806, 0
      %v3887 = vsel %vm2703, %v3808, 0
      %v3890 = vsel %vm2703, %v3810, 0
      %v3893 = vsel %vm2703, %v3812, 0
      %v3896 = vsel %vm2703, %v3814, 0
      %v3899 = vsel %vm2703, %v3816, 0
      %v3902 = vsel %vm2703, %v3818, 0
      %3904 = vmatprep.subr.bf16.mxu0 0
      %3905 = vmatpush1.bf16.msra.mxu0 %v3830
      %3906 = vmatprep.subr.bf16.mxu0 0
      %3907 = vmatpush1.bf16.msra.mxu0 %v3832
      %3908 = vmatprep.subr.bf16.mxu0 0
      %3909 = vmatpush1.bf16.msra.mxu0 %v3834
      %3910 = vmatprep.subr.bf16.mxu0 0
      %3911 = vmatpush1.bf16.msra.mxu0 %v3836
      %3912 = vmatprep.subr.bf16.mxu0 0
      %3913 = vmatpush1.bf16.msra.mxu0 %v3838
      %3914 = vmatprep.subr.bf16.mxu0 0
      %3915 = vmatpush1.bf16.msra.mxu0 %v3840
      %3916 = vmatprep.subr.bf16.mxu0 0
      %3917 = vmatpush1.bf16.msra.mxu0 %v3842
      %3918 = vmatprep.subr.bf16.mxu0 0
      %3919 = vmatpush1.bf16.msra.mxu0 %v3844
      %3920 = vmatprep.subr.bf16.mxu0 0
      %3921 = vmatpush1.bf16.msra.mxu0 %v3846
      %3922 = vmatprep.subr.bf16.mxu0 0
      %3923 = vmatpush1.bf16.msra.mxu0 %v3848
      %3924 = vmatprep.subr.bf16.mxu0 0
      %3925 = vmatpush1.bf16.msra.mxu0 %v3850
      %3926 = vmatprep.subr.bf16.mxu0 0
      %3927 = vmatpush1.bf16.msra.mxu0 %v3852
      %3928 = vmatprep.subr.bf16.mxu0 0
      %3929 = vmatpush1.bf16.msra.mxu0 %v3854
      %3930 = vmatprep.subr.bf16.mxu0 0
      %3931 = vmatpush1.bf16.msra.mxu0 %v3856
      %3932 = vmatprep.subr.bf16.mxu0 0
      %3933 = vmatpush1.bf16.msra.mxu0 %v3858
      %3934 = vmatprep.subr.bf16.mxu0 0
      %3935 = vmatpush1.bf16.msra.mxu0 0
      %3936 = vmatprep.mubr.bf16.mxu0 %v3875
      %3937 = vmatmul.mubr.bf16.gmra.mrb[0].mxu0 %v3799
      %v3938 = vpop.f32.mrb[0].mxu0
      %v3939 = vadd.f32 0.0, %v3938
      %v3940 = vpop.f32.mrb[0].mxu0
      %v3941 = vpop.f32.mrb[0].mxu0
      %v3942 = vadd.f32 0.0, %v3941
      %v3943 = vpop.f32.mrb[0].mxu0
      %3944 = vmatprep.mubr.bf16.mxu0 %v3878
      %3945 = vmatmul.mubr.bf16.gmra.mrb[0].mxu0 %v3801
      %v3946 = vpop.f32.mrb[0].mxu0
      %v3947 = vadd.f32 0.0, %v3946
      %v3948 = vpop.f32.mrb[0].mxu0
      %v3949 = vpop.f32.mrb[0].mxu0
      %v3950 = vadd.f32 0.0, %v3949
      %v3951 = vpop.f32.mrb[0].mxu0
      %3952 = vmatprep.mubr.bf16.mxu0 %v3881
      %3953 = vmatmul.mubr.bf16.gmra.mrb[0].mxu0 %v3803
      %v3954 = vpop.f32.mrb[0].mxu0
      %v3955 = vadd.f32 0.0, %v3954
      %v3956 = vpop.f32.mrb[0].mxu0
      %v3957 = vpop.f32.mrb[0].mxu0
      %v3958 = vadd.f32 0.0, %v3957
      %v3959 = vpop.f32.mrb[0].mxu0
      %3960 = vmatprep.mubr.bf16.mxu0 %v3884
      %3961 = vmatmul.mubr.bf16.gmra.mrb[0].mxu0 %v3805
      %v3962 = vpop.f32.mrb[0].mxu0
      %v3963 = vadd.f32 0.0, %v3962
      %v3964 = vpop.f32.mrb[0].mxu0
      %v3965 = vpop.f32.mrb[0].mxu0
      %v3966 = vadd.f32 0.0, %v3965
      %v3967 = vpop.f32.mrb[0].mxu0
      %3968 = vmatprep.mubr.bf16.mxu0 %v3887
      %3969 = vmatmul.mubr.bf16.gmra.mrb[0].mxu0 %v3807
      %v3970 = vpop.f32.mrb[0].mxu0
      %v3971 = vadd.f32 0.0, %v3970
      %v3972 = vpop.f32.mrb[0].mxu0
      %v3973 = vpop.f32.mrb[0].mxu0
      %v3974 = vadd.f32 0.0, %v3973
      %v3975 = vpop.f32.mrb[0].mxu0
      %3976 = vmatprep.mubr.bf16.mxu0 %v3890
      %3977 = vmatmul.mubr.bf16.gmra.mrb[0].mxu0 %v3809
      %v3978 = vpop.f32.mrb[0].mxu0
      %v3979 = vadd.f32 0.0, %v3978
      %v3980 = vpop.f32.mrb[0].mxu0
      %v3981 = vpop.f32.mrb[0].mxu0
      %v3982 = vadd.f32 0.0, %v3981
      %v3983 = vpop.f32.mrb[0].mxu0
      %3984 = vmatprep.mubr.bf16.mxu0 %v3893
      %3985 = vmatmul.mubr.bf16.gmra.mrb[0].mxu0 %v3811
      %v3986 = vpop.f32.mrb[0].mxu0
      %v3987 = vadd.f32 0.0, %v3986
      %v3988 = vpop.f32.mrb[0].mxu0
      %v3989 = vpop.f32.mrb[0].mxu0
      %v3990 = vadd.f32 0.0, %v3989
      %v3991 = vpop.f32.mrb[0].mxu0
      %3992 = vmatprep.mubr.bf16.mxu0 %v3896
      %3993 = vmatmul.mubr.bf16.gmra.mrb[0].mxu0 %v3813
      %v3994 = vpop.f32.mrb[0].mxu0
      %v3995 = vadd.f32 0.0, %v3994
      %v3996 = vpop.f32.mrb[0].mxu0
      %v3997 = vpop.f32.mrb[0].mxu0
      %v3998 = vadd.f32 0.0, %v3997
      %v3999 = vpop.f32.mrb[0].mxu0
      %4000 = vmatprep.mubr.bf16.mxu0 %v3899
      %4001 = vmatmul.mubr.bf16.gmra.mrb[0].mxu0 %v3815
      %v4002 = vpop.f32.mrb[0].mxu0
      %v4003 = vadd.f32 0.0, %v4002
      %v4004 = vpop.f32.mrb[0].mxu0
      %v4005 = vpop.f32.mrb[0].mxu0
      %v4006 = vadd.f32 0.0, %v4005
      %v4007 = vpop.f32.mrb[0].mxu0
      %4008 = vmatprep.mubr.bf16.mxu0 %v3902
      %4009 = vmatmul.mubr.bf16.gmra.mrb[0].mxu0 %v3817
      %v4010 = vpop.f32.mrb[0].mxu0
      %v4011 = vadd.f32 0.0, %v4010
      %v4012 = vpop.f32.mrb[0].mxu0
      %v4013 = vpop.f32.mrb[0].mxu0
      %v4014 = vadd.f32 0.0, %v4013
      %v4015 = vpop.f32.mrb[0].mxu0
      %4016 = vdwg.mxu0
      %v4017 = vadd.f32 %v3698, %v3939
      %v4018 = vadd.f32 %v3699, %v3942
      %v4019 = vadd.f32 %v3700, %v3947
      %v4020 = vadd.f32 %v3701, %v3950
      %v4021 = vadd.f32 %v3702, %v3955
      %v4022 = vadd.f32 %v3703, %v3958
      %v4023 = vadd.f32 %v3704, %v3963
      %v4024 = vadd.f32 %v3705, %v3966
      %v4025 = vadd.f32 %v3706, %v3971
      %v4026 = vadd.f32 %v3707, %v3974
      %v4027 = vadd.f32 %v3708, %v3979
      %v4028 = vadd.f32 %v3709, %v3982
      %v4029 = vadd.f32 %v3710, %v3987
      %v4030 = vadd.f32 %v3711, %v3990
      %v4031 = vadd.f32 %v3712, %v3995
      %v4032 = vadd.f32 %v3713, %v3998
      %v4033 = vadd.f32 %v3714, %v4003
      %v4034 = vadd.f32 %v3715, %v4006
      %v4035 = vadd.f32 %v3716, %v4011
      %v4036 = vadd.f32 %v3717, %v4014
      %v4037 = vld [vmem:[%s4] sm:$0xff]
      %v4038 = vld [vmem:[%s4 + $0x8] sm:$0xff]
      %v4039 = vld [vmem:[%s4 + $0x10] sm:$0xff]
      %v4040 = vld [vmem:[%s4 + $0x18] sm:$0xff]
      %v4041 = vld [vmem:[%s4 + $0x20] sm:$0xff]
      %v4042 = vld [vmem:[%s4 + $0x28] sm:$0xff]
      %v4043 = vld [vmem:[%s4 + $0x30] sm:$0xff]
      %v4044 = vld [vmem:[%s4 + $0x38] sm:$0xff]
      %v4045 = vld [vmem:[%s4 + $0x40] sm:$0xff]
      %v4046 = vld [vmem:[%s4 + $0x48] sm:$0xff]
      %v4047 = vld [vmem:[%s4 + $0x50] sm:$0xff]
      %v4048 = vld [vmem:[%s4 + $0x58] sm:$0xff]
      %v4049 = vld [vmem:[%s4 + $0x60] sm:$0xff]
      %v4050 = vld [vmem:[%s4 + $0x68] sm:$0xff]
      %v4051 = vld [vmem:[%s4 + $0x70] sm:$0xff]
      %v4052 = vld [vmem:[%s4 + $0x78] sm:$0xff]
      %v4053 = vld [vmem:[%s4 + $0x80] sm:$0xff]
      %v4054 = vld [vmem:[%s4 + $0x88] sm:$0xff]
      %v4055 = vld [vmem:[%s4 + $0x90] sm:$0xff]
      %v4056 = vld [vmem:[%s4 + $0x98] sm:$0xff]
      %4058 = vset.pattern.permute.xlu0 0
      %4059 = vperm.xlu0 %4058, %v4037
      %v4060 = vpop.permute.xlu0 %4059
      %4063 = vset.pattern.permute.xlu0 0
      %4064 = vperm.xlu0 %4063, %v4038
      %v4065 = vpop.permute.xlu0 %4064
      %4068 = vset.pattern.permute.xlu0 0
      %4069 = vperm.xlu0 %4068, %v4039
      %v4070 = vpop.permute.xlu0 %4069
      %4073 = vset.pattern.permute.xlu0 0
      %4074 = vperm.xlu0 %4073, %v4040
      %v4075 = vpop.permute.xlu0 %4074
      %4078 = vset.pattern.permute.xlu0 0
      %4079 = vperm.xlu0 %4078, %v4041
      %v4080 = vpop.permute.xlu0 %4079
      %4083 = vset.pattern.permute.xlu0 0
      %4084 = vperm.xlu0 %4083, %v4042
      %v4085 = vpop.permute.xlu0 %4084
      %4088 = vset.pattern.permute.xlu0 0
      %4089 = vperm.xlu0 %4088, %v4043
      %v4090 = vpop.permute.xlu0 %4089
      %4093 = vset.pattern.permute.xlu0 0
      %4094 = vperm.xlu0 %4093, %v4044
      %v4095 = vpop.permute.xlu0 %4094
      %4098 = vset.pattern.permute.xlu0 0
      %4099 = vperm.xlu0 %4098, %v4045
      %v4100 = vpop.permute.xlu0 %4099
      %4103 = vset.pattern.permute.xlu0 0
      %4104 = vperm.xlu0 %4103, %v4046
      %v4105 = vpop.permute.xlu0 %4104
      %4108 = vset.pattern.permute.xlu0 0
      %4109 = vperm.xlu0 %4108, %v4047
      %v4110 = vpop.permute.xlu0 %4109
      %4113 = vset.pattern.permute.xlu0 0
      %4114 = vperm.xlu0 %4113, %v4048
      %v4115 = vpop.permute.xlu0 %4114
      %4118 = vset.pattern.permute.xlu0 0
      %4119 = vperm.xlu0 %4118, %v4049
      %v4120 = vpop.permute.xlu0 %4119
      %4123 = vset.pattern.permute.xlu0 0
      %4124 = vperm.xlu0 %4123, %v4050
      %v4125 = vpop.permute.xlu0 %4124
      %4128 = vset.pattern.permute.xlu0 0
      %4129 = vperm.xlu0 %4128, %v4051
      %v4130 = vpop.permute.xlu0 %4129
      %4133 = vset.pattern.permute.xlu0 0
      %4134 = vperm.xlu0 %4133, %v4052
      %v4135 = vpop.permute.xlu0 %4134
      %4138 = vset.pattern.permute.xlu0 0
      %4139 = vperm.xlu0 %4138, %v4053
      %v4140 = vpop.permute.xlu0 %4139
      %4143 = vset.pattern.permute.xlu0 0
      %4144 = vperm.xlu0 %4143, %v4054
      %v4145 = vpop.permute.xlu0 %4144
      %4148 = vset.pattern.permute.xlu0 0
      %4149 = vperm.xlu0 %4148, %v4055
      %v4150 = vpop.permute.xlu0 %4149
      %4153 = vset.pattern.permute.xlu0 0
      %4154 = vperm.xlu0 %4153, %v4056
      %v4155 = vpop.permute.xlu0 %4154
      %v4157 = vadd.f32 %v4017, %v4060
      %v4158 = vadd.f32 %v4018, %v4065
      %v4159 = vadd.f32 %v4019, %v4070
      %v4160 = vadd.f32 %v4020, %v4075
      %v4161 = vadd.f32 %v4021, %v4080
      %v4162 = vadd.f32 %v4022, %v4085
      %v4163 = vadd.f32 %v4023, %v4090
      %v4164 = vadd.f32 %v4024, %v4095
      %v4165 = vadd.f32 %v4025, %v4100
      %v4166 = vadd.f32 %v4026, %v4105
      %v4167 = vadd.f32 %v4027, %v4110
      %v4168 = vadd.f32 %v4028, %v4115
      %v4169 = vadd.f32 %v4029, %v4120
      %v4170 = vadd.f32 %v4030, %v4125
      %v4171 = vadd.f32 %v4031, %v4130
      %v4172 = vadd.f32 %v4032, %v4135
      %v4173 = vadd.f32 %v4033, %v4140
      %v4174 = vadd.f32 %v4034, %v4145
      %v4175 = vadd.f32 %v4035, %v4150
      %v4176 = vadd.f32 %v4036, %v4155
      %4197 = vrot.lane.b32.xlu0 %v4157, 124
      %v4198 = vpop.permute.xlu0 %4197
      %4199 = vrot.lane.b32.xlu0 %v4158, 124
      %v4200 = vpop.permute.xlu0 %4199
      %4201 = vrot.lane.b32.xlu0 %v4159, 124
      %v4202 = vpop.permute.xlu0 %4201
      %4203 = vrot.lane.b32.xlu0 %v4160, 124
      %v4204 = vpop.permute.xlu0 %4203
      %4205 = vrot.lane.b32.xlu0 %v4161, 124
      %v4206 = vpop.permute.xlu0 %4205
      %4207 = vrot.lane.b32.xlu0 %v4162, 124
      %v4208 = vpop.permute.xlu0 %4207
      %4209 = vrot.lane.b32.xlu0 %v4163, 124
      %v4210 = vpop.permute.xlu0 %4209
      %4211 = vrot.lane.b32.xlu0 %v4164, 124
      %v4212 = vpop.permute.xlu0 %4211
      %4213 = vrot.lane.b32.xlu0 %v4165, 124
      %v4214 = vpop.permute.xlu0 %4213
      %4215 = vrot.lane.b32.xlu0 %v4166, 124
      %v4216 = vpop.permute.xlu0 %4215
      %4217 = vrot.lane.b32.xlu0 %v4167, 124
      %v4218 = vpop.permute.xlu0 %4217
      %4219 = vrot.lane.b32.xlu0 %v4168, 124
      %v4220 = vpop.permute.xlu0 %4219
      %4221 = vrot.lane.b32.xlu0 %v4169, 124
      %v4222 = vpop.permute.xlu0 %4221
      %4223 = vrot.lane.b32.xlu0 %v4170, 124
      %v4224 = vpop.permute.xlu0 %4223
      %4225 = vrot.lane.b32.xlu0 %v4171, 124
      %v4226 = vpop.permute.xlu0 %4225
      %4227 = vrot.lane.b32.xlu0 %v4172, 124
      %v4228 = vpop.permute.xlu0 %4227
      %4229 = vrot.lane.b32.xlu0 %v4173, 124
      %v4230 = vpop.permute.xlu0 %4229
      %4231 = vrot.lane.b32.xlu0 %v4174, 124
      %v4232 = vpop.permute.xlu0 %4231
      %4233 = vrot.lane.b32.xlu0 %v4175, 124
      %v4234 = vpop.permute.xlu0 %4233
      %4235 = vrot.lane.b32.xlu0 %v4176, 124
      %v4236 = vpop.permute.xlu0 %4235
      %v4257 = vmax.f32 %v4157, %v4198
      %v4258 = vmax.f32 %v4158, %v4200
      %v4259 = vmax.f32 %v4159, %v4202
      %v4260 = vmax.f32 %v4160, %v4204
      %v4261 = vmax.f32 %v4161, %v4206
      %v4262 = vmax.f32 %v4162, %v4208
      %v4263 = vmax.f32 %v4163, %v4210
      %v4264 = vmax.f32 %v4164, %v4212
      %v4265 = vmax.f32 %v4165, %v4214
      %v4266 = vmax.f32 %v4166, %v4216
      %v4267 = vmax.f32 %v4167, %v4218
      %v4268 = vmax.f32 %v4168, %v4220
      %v4269 = vmax.f32 %v4169, %v4222
      %v4270 = vmax.f32 %v4170, %v4224
      %v4271 = vmax.f32 %v4171, %v4226
      %v4272 = vmax.f32 %v4172, %v4228
      %v4273 = vmax.f32 %v4173, %v4230
      %v4274 = vmax.f32 %v4174, %v4232
      %v4275 = vmax.f32 %v4175, %v4234
      %v4276 = vmax.f32 %v4176, %v4236
      %4297 = vrot.lane.b32.xlu0 %v4257, 120
      %v4298 = vpop.permute.xlu0 %4297
      %4299 = vrot.lane.b32.xlu0 %v4258, 120
      %v4300 = vpop.permute.xlu0 %4299
      %4301 = vrot.lane.b32.xlu0 %v4259, 120
      %v4302 = vpop.permute.xlu0 %4301
      %4303 = vrot.lane.b32.xlu0 %v4260, 120
      %v4304 = vpop.permute.xlu0 %4303
      %4305 = vrot.lane.b32.xlu0 %v4261, 120
      %v4306 = vpop.permute.xlu0 %4305
      %4307 = vrot.lane.b32.xlu0 %v4262, 120
      %v4308 = vpop.permute.xlu0 %4307
      %4309 = vrot.lane.b32.xlu0 %v4263, 120
      %v4310 = vpop.permute.xlu0 %4309
      %4311 = vrot.lane.b32.xlu0 %v4264, 120
      %v4312 = vpop.permute.xlu0 %4311
      %4313 = vrot.lane.b32.xlu0 %v4265, 120
      %v4314 = vpop.permute.xlu0 %4313
      %4315 = vrot.lane.b32.xlu0 %v4266, 120
      %v4316 = vpop.permute.xlu0 %4315
      %4317 = vrot.lane.b32.xlu0 %v4267, 120
      %v4318 = vpop.permute.xlu0 %4317
      %4319 = vrot.lane.b32.xlu0 %v4268, 120
      %v4320 = vpop.permute.xlu0 %4319
      %4321 = vrot.lane.b32.xlu0 %v4269, 120
      %v4322 = vpop.permute.xlu0 %4321
      %4323 = vrot.lane.b32.xlu0 %v4270, 120
      %v4324 = vpop.permute.xlu0 %4323
      %4325 = vrot.lane.b32.xlu0 %v4271, 120
      %v4326 = vpop.permute.xlu0 %4325
      %4327 = vrot.lane.b32.xlu0 %v4272, 120
      %v4328 = vpop.permute.xlu0 %4327
      %4329 = vrot.lane.b32.xlu0 %v4273, 120
      %v4330 = vpop.permute.xlu0 %4329
      %4331 = vrot.lane.b32.xlu0 %v4274, 120
      %v4332 = vpop.permute.xlu0 %4331
      %4333 = vrot.lane.b32.xlu0 %v4275, 120
      %v4334 = vpop.permute.xlu0 %4333
      %4335 = vrot.lane.b32.xlu0 %v4276, 120
      %v4336 = vpop.permute.xlu0 %4335
      %4357 = vrot.lane.b32.xlu0 %v4257, 112
      %v4358 = vpop.permute.xlu0 %4357
      %4359 = vrot.lane.b32.xlu0 %v4258, 112
      %v4360 = vpop.permute.xlu0 %4359
      %4361 = vrot.lane.b32.xlu0 %v4259, 112
      %v4362 = vpop.permute.xlu0 %4361
      %4363 = vrot.lane.b32.xlu0 %v4260, 112
      %v4364 = vpop.permute.xlu0 %4363
      %4365 = vrot.lane.b32.xlu0 %v4261, 112
      %v4366 = vpop.permute.xlu0 %4365
      %4367 = vrot.lane.b32.xlu0 %v4262, 112
      %v4368 = vpop.permute.xlu0 %4367
      %4369 = vrot.lane.b32.xlu0 %v4263, 112
      %v4370 = vpop.permute.xlu0 %4369
      %4371 = vrot.lane.b32.xlu0 %v4264, 112
      %v4372 = vpop.permute.xlu0 %4371
      %4373 = vrot.lane.b32.xlu0 %v4265, 112
      %v4374 = vpop.permute.xlu0 %4373
      %4375 = vrot.lane.b32.xlu0 %v4266, 112
      %v4376 = vpop.permute.xlu0 %4375
      %4377 = vrot.lane.b32.xlu0 %v4267, 112
      %v4378 = vpop.permute.xlu0 %4377
      %4379 = vrot.lane.b32.xlu0 %v4268, 112
      %v4380 = vpop.permute.xlu0 %4379
      %4381 = vrot.lane.b32.xlu0 %v4269, 112
      %v4382 = vpop.permute.xlu0 %4381
      %4383 = vrot.lane.b32.xlu0 %v4270, 112
      %v4384 = vpop.permute.xlu0 %4383
      %4385 = vrot.lane.b32.xlu0 %v4271, 112
      %v4386 = vpop.permute.xlu0 %4385
      %4387 = vrot.lane.b32.xlu0 %v4272, 112
      %v4388 = vpop.permute.xlu0 %4387
      %4389 = vrot.lane.b32.xlu0 %v4273, 112
      %v4390 = vpop.permute.xlu0 %4389
      %4391 = vrot.lane.b32.xlu0 %v4274, 112
      %v4392 = vpop.permute.xlu0 %4391
      %4393 = vrot.lane.b32.xlu0 %v4275, 112
      %v4394 = vpop.permute.xlu0 %4393
      %4395 = vrot.lane.b32.xlu0 %v4276, 112
      %v4396 = vpop.permute.xlu0 %4395
      %4417 = vrot.lane.b32.xlu0 %v4257, 104
      %v4418 = vpop.permute.xlu0 %4417
      %4419 = vrot.lane.b32.xlu0 %v4258, 104
      %v4420 = vpop.permute.xlu0 %4419
      %4421 = vrot.lane.b32.xlu0 %v4259, 104
      %v4422 = vpop.permute.xlu0 %4421
      %4423 = vrot.lane.b32.xlu0 %v4260, 104
      %v4424 = vpop.permute.xlu0 %4423
      %4425 = vrot.lane.b32.xlu0 %v4261, 104
      %v4426 = vpop.permute.xlu0 %4425
      %4427 = vrot.lane.b32.xlu0 %v4262, 104
      %v4428 = vpop.permute.xlu0 %4427
      %4429 = vrot.lane.b32.xlu0 %v4263, 104
      %v4430 = vpop.permute.xlu0 %4429
      %4431 = vrot.lane.b32.xlu0 %v4264, 104
      %v4432 = vpop.permute.xlu0 %4431
      %4433 = vrot.lane.b32.xlu0 %v4265, 104
      %v4434 = vpop.permute.xlu0 %4433
      %4435 = vrot.lane.b32.xlu0 %v4266, 104
      %v4436 = vpop.permute.xlu0 %4435
      %4437 = vrot.lane.b32.xlu0 %v4267, 104
      %v4438 = vpop.permute.xlu0 %4437
      %4439 = vrot.lane.b32.xlu0 %v4268, 104
      %v4440 = vpop.permute.xlu0 %4439
      %4441 = vrot.lane.b32.xlu0 %v4269, 104
      %v4442 = vpop.permute.xlu0 %4441
      %4443 = vrot.lane.b32.xlu0 %v4270, 104
      %v4444 = vpop.permute.xlu0 %4443
      %4445 = vrot.lane.b32.xlu0 %v4271, 104
      %v4446 = vpop.permute.xlu0 %4445
      %4447 = vrot.lane.b32.xlu0 %v4272, 104
      %v4448 = vpop.permute.xlu0 %4447
      %4449 = vrot.lane.b32.xlu0 %v4273, 104
      %v4450 = vpop.permute.xlu0 %4449
      %4451 = vrot.lane.b32.xlu0 %v4274, 104
      %v4452 = vpop.permute.xlu0 %4451
      %4453 = vrot.lane.b32.xlu0 %v4275, 104
      %v4454 = vpop.permute.xlu0 %4453
      %4455 = vrot.lane.b32.xlu0 %v4276, 104
      %v4456 = vpop.permute.xlu0 %4455
      %v4477 = vrot.slane %v4257, 1
      %v4478 = vrot.slane %v4258, 1
      %v4479 = vrot.slane %v4259, 1
      %v4480 = vrot.slane %v4260, 1
      %v4481 = vrot.slane %v4261, 1
      %v4482 = vrot.slane %v4262, 1
      %v4483 = vrot.slane %v4263, 1
      %v4484 = vrot.slane %v4264, 1
      %v4485 = vrot.slane %v4265, 1
      %v4486 = vrot.slane %v4266, 1
      %v4487 = vrot.slane %v4267, 1
      %v4488 = vrot.slane %v4268, 1
      %v4489 = vrot.slane %v4269, 1
      %v4490 = vrot.slane %v4270, 1
      %v4491 = vrot.slane %v4271, 1
      %v4492 = vrot.slane %v4272, 1
      %v4493 = vrot.slane %v4273, 1
      %v4494 = vrot.slane %v4274, 1
      %v4495 = vrot.slane %v4275, 1
      %v4496 = vrot.slane %v4276, 1
      %v4497 = vrot.slane %v4298, 1
      %v4498 = vrot.slane %v4300, 1
      %v4499 = vrot.slane %v4302, 1
      %v4500 = vrot.slane %v4304, 1
      %v4501 = vrot.slane %v4306, 1
      %v4502 = vrot.slane %v4308, 1
      %v4503 = vrot.slane %v4310, 1
      %v4504 = vrot.slane %v4312, 1
      %v4505 = vrot.slane %v4314, 1
      %v4506 = vrot.slane %v4316, 1
      %v4507 = vrot.slane %v4318, 1
      %v4508 = vrot.slane %v4320, 1
      %v4509 = vrot.slane %v4322, 1
      %v4510 = vrot.slane %v4324, 1
      %v4511 = vrot.slane %v4326, 1
      %v4512 = vrot.slane %v4328, 1
      %v4513 = vrot.slane %v4330, 1
      %v4514 = vrot.slane %v4332, 1
      %v4515 = vrot.slane %v4334, 1
      %v4516 = vrot.slane %v4336, 1
      %v4517 = vrot.slane %v4358, 1
      %v4518 = vrot.slane %v4360, 1
      %v4519 = vrot.slane %v4362, 1
      %v4520 = vrot.slane %v4364, 1
      %v4521 = vrot.slane %v4366, 1
      %v4522 = vrot.slane %v4368, 1
      %v4523 = vrot.slane %v4370, 1
      %v4524 = vrot.slane %v4372, 1
      %v4525 = vrot.slane %v4374, 1
      %v4526 = vrot.slane %v4376, 1
      %v4527 = vrot.slane %v4378, 1
      %v4528 = vrot.slane %v4380, 1
      %v4529 = vrot.slane %v4382, 1
      %v4530 = vrot.slane %v4384, 1
      %v4531 = vrot.slane %v4386, 1
      %v4532 = vrot.slane %v4388, 1
      %v4533 = vrot.slane %v4390, 1
      %v4534 = vrot.slane %v4392, 1
      %v4535 = vrot.slane %v4394, 1
      %v4536 = vrot.slane %v4396, 1
      %v4537 = vrot.slane %v4418, 1
      %v4538 = vrot.slane %v4420, 1
      %v4539 = vrot.slane %v4422, 1
      %v4540 = vrot.slane %v4424, 1
      %v4541 = vrot.slane %v4426, 1
      %v4542 = vrot.slane %v4428, 1
      %v4543 = vrot.slane %v4430, 1
      %v4544 = vrot.slane %v4432, 1
      %v4545 = vrot.slane %v4434, 1
      %v4546 = vrot.slane %v4436, 1
      %v4547 = vrot.slane %v4438, 1
      %v4548 = vrot.slane %v4440, 1
      %v4549 = vrot.slane %v4442, 1
      %v4550 = vrot.slane %v4444, 1
      %v4551 = vrot.slane %v4446, 1
      %v4552 = vrot.slane %v4448, 1
      %v4553 = vrot.slane %v4450, 1
      %v4554 = vrot.slane %v4452, 1
      %v4555 = vrot.slane %v4454, 1
      %v4556 = vrot.slane %v4456, 1
      %v4557 = vsel %vm2406, %v4555, %v4556
      %v4558 = vsel %vm2406, %v4554, %v4555
      %v4559 = vsel %vm2406, %v4553, %v4554
      %v4560 = vsel %vm2406, %v4552, %v4553
      %v4561 = vsel %vm2406, %v4551, %v4552
      %v4562 = vsel %vm2406, %v4550, %v4551
      %v4563 = vsel %vm2406, %v4549, %v4550
      %v4564 = vsel %vm2406, %v4548, %v4549
      %v4565 = vsel %vm2406, %v4547, %v4548
      %v4566 = vsel %vm2406, %v4546, %v4547
      %v4567 = vsel %vm2406, %v4545, %v4546
      %v4568 = vsel %vm2406, %v4544, %v4545
      %v4569 = vsel %vm2406, %v4543, %v4544
      %v4570 = vsel %vm2406, %v4542, %v4543
      %v4571 = vsel %vm2406, %v4541, %v4542
      %v4572 = vsel %vm2406, %v4540, %v4541
      %v4573 = vsel %vm2406, %v4539, %v4540
      %v4574 = vsel %vm2406, %v4538, %v4539
      %v4575 = vsel %vm2406, %v4537, %v4538
      %v4576 = vsel %vm2406, %v4536, %v4537
      %v4577 = vsel %vm2406, %v4535, %v4536
      %v4578 = vsel %vm2406, %v4534, %v4535
      %v4579 = vsel %vm2406, %v4533, %v4534
      %v4580 = vsel %vm2406, %v4532, %v4533
      %v4581 = vsel %vm2406, %v4531, %v4532
      %v4582 = vsel %vm2406, %v4530, %v4531
      %v4583 = vsel %vm2406, %v4529, %v4530
      %v4584 = vsel %vm2406, %v4528, %v4529
      %v4585 = vsel %vm2406, %v4527, %v4528
      %v4586 = vsel %vm2406, %v4526, %v4527
      %v4587 = vsel %vm2406, %v4525, %v4526
      %v4588 = vsel %vm2406, %v4524, %v4525
      %v4589 = vsel %vm2406, %v4523, %v4524
      %v4590 = vsel %vm2406, %v4522, %v4523
      %v4591 = vsel %vm2406, %v4521, %v4522
      %v4592 = vsel %vm2406, %v4520, %v4521
      %v4593 = vsel %vm2406, %v4519, %v4520
      %v4594 = vsel %vm2406, %v4518, %v4519
      %v4595 = vsel %vm2406, %v4517, %v4518
      %v4596 = vsel %vm2406, %v4516, %v4517
      %v4597 = vsel %vm2406, %v4515, %v4516
      %v4598 = vsel %vm2406, %v4514, %v4515
      %v4599 = vsel %vm2406, %v4513, %v4514
      %v4600 = vsel %vm2406, %v4512, %v4513
      %v4601 = vsel %vm2406, %v4511, %v4512
      %v4602 = vsel %vm2406, %v4510, %v4511
      %v4603 = vsel %vm2406, %v4509, %v4510
      %v4604 = vsel %vm2406, %v4508, %v4509
      %v4605 = vsel %vm2406, %v4507, %v4508
      %v4606 = vsel %vm2406, %v4506, %v4507
      %v4607 = vsel %vm2406, %v4505, %v4506
      %v4608 = vsel %vm2406, %v4504, %v4505
      %v4609 = vsel %vm2406, %v4503, %v4504
      %v4610 = vsel %vm2406, %v4502, %v4503
      %v4611 = vsel %vm2406, %v4501, %v4502
      %v4612 = vsel %vm2406, %v4500, %v4501
      %v4613 = vsel %vm2406, %v4499, %v4500
      %v4614 = vsel %vm2406, %v4498, %v4499
      %v4615 = vsel %vm2406, %v4497, %v4498
      %v4616 = vsel %vm2406, %v4496, %v4497
      %v4617 = vsel %vm2406, %v4495, %v4496
      %v4618 = vsel %vm2406, %v4494, %v4495
      %v4619 = vsel %vm2406, %v4493, %v4494
      %v4620 = vsel %vm2406, %v4492, %v4493
      %v4621 = vsel %vm2406, %v4491, %v4492
      %v4622 = vsel %vm2406, %v4490, %v4491
      %v4623 = vsel %vm2406, %v4489, %v4490
      %v4624 = vsel %vm2406, %v4488, %v4489
      %v4625 = vsel %vm2406, %v4487, %v4488
      %v4626 = vsel %vm2406, %v4486, %v4487
      %v4627 = vsel %vm2406, %v4485, %v4486
      %v4628 = vsel %vm2406, %v4484, %v4485
      %v4629 = vsel %vm2406, %v4483, %v4484
      %v4630 = vsel %vm2406, %v4482, %v4483
      %v4631 = vsel %vm2406, %v4481, %v4482
      %v4632 = vsel %vm2406, %v4480, %v4481
      %v4633 = vsel %vm2406, %v4479, %v4480
      %v4634 = vsel %vm2406, %v4478, %v4479
      %v4635 = vsel %vm2406, %v4477, %v4478
      %v4636 = vsel %vm2406, %v4556, %v4477
      %v4637 = vmax.f32 %v4257, %v4635
      %v4638 = vmax.f32 %v4258, %v4634
      %v4639 = vmax.f32 %v4259, %v4633
      %v4640 = vmax.f32 %v4260, %v4632
      %v4641 = vmax.f32 %v4261, %v4631
      %v4642 = vmax.f32 %v4262, %v4630
      %v4643 = vmax.f32 %v4263, %v4629
      %v4644 = vmax.f32 %v4264, %v4628
      %v4645 = vmax.f32 %v4265, %v4627
      %v4646 = vmax.f32 %v4266, %v4626
      %v4647 = vmax.f32 %v4267, %v4625
      %v4648 = vmax.f32 %v4268, %v4624
      %v4649 = vmax.f32 %v4269, %v4623
      %v4650 = vmax.f32 %v4270, %v4622
      %v4651 = vmax.f32 %v4271, %v4621
      %v4652 = vmax.f32 %v4272, %v4620
      %v4653 = vmax.f32 %v4273, %v4619
      %v4654 = vmax.f32 %v4274, %v4618
      %v4655 = vmax.f32 %v4275, %v4617
      %v4656 = vmax.f32 %v4276, %v4616
      %v4657 = vmax.f32 %v4298, %v4615
      %v4658 = vmax.f32 %v4300, %v4614
      %v4659 = vmax.f32 %v4302, %v4613
      %v4660 = vmax.f32 %v4304, %v4612
      %v4661 = vmax.f32 %v4306, %v4611
      %v4662 = vmax.f32 %v4308, %v4610
      %v4663 = vmax.f32 %v4310, %v4609
      %v4664 = vmax.f32 %v4312, %v4608
      %v4665 = vmax.f32 %v4314, %v4607
      %v4666 = vmax.f32 %v4316, %v4606
      %v4667 = vmax.f32 %v4318, %v4605
      %v4668 = vmax.f32 %v4320, %v4604
      %v4669 = vmax.f32 %v4322, %v4603
      %v4670 = vmax.f32 %v4324, %v4602
      %v4671 = vmax.f32 %v4326, %v4601
      %v4672 = vmax.f32 %v4328, %v4600
      %v4673 = vmax.f32 %v4330, %v4599
      %v4674 = vmax.f32 %v4332, %v4598
      %v4675 = vmax.f32 %v4334, %v4597
      %v4676 = vmax.f32 %v4336, %v4596
      %v4677 = vmax.f32 %v4358, %v4595
      %v4678 = vmax.f32 %v4360, %v4594
      %v4679 = vmax.f32 %v4362, %v4593
      %v4680 = vmax.f32 %v4364, %v4592
      %v4681 = vmax.f32 %v4366, %v4591
      %v4682 = vmax.f32 %v4368, %v4590
      %v4683 = vmax.f32 %v4370, %v4589
      %v4684 = vmax.f32 %v4372, %v4588
      %v4685 = vmax.f32 %v4374, %v4587
      %v4686 = vmax.f32 %v4376, %v4586
      %v4687 = vmax.f32 %v4378, %v4585
      %v4688 = vmax.f32 %v4380, %v4584
      %v4689 = vmax.f32 %v4382, %v4583
      %v4690 = vmax.f32 %v4384, %v4582
      %v4691 = vmax.f32 %v4386, %v4581
      %v4692 = vmax.f32 %v4388, %v4580
      %v4693 = vmax.f32 %v4390, %v4579
      %v4694 = vmax.f32 %v4392, %v4578
      %v4695 = vmax.f32 %v4394, %v4577
      %v4696 = vmax.f32 %v4396, %v4576
      %v4697 = vmax.f32 %v4418, %v4575
      %v4698 = vmax.f32 %v4420, %v4574
      %v4699 = vmax.f32 %v4422, %v4573
      %v4700 = vmax.f32 %v4424, %v4572
      %v4701 = vmax.f32 %v4426, %v4571
      %v4702 = vmax.f32 %v4428, %v4570
      %v4703 = vmax.f32 %v4430, %v4569
      %v4704 = vmax.f32 %v4432, %v4568
      %v4705 = vmax.f32 %v4434, %v4567
      %v4706 = vmax.f32 %v4436, %v4566
      %v4707 = vmax.f32 %v4438, %v4565
      %v4708 = vmax.f32 %v4440, %v4564
      %v4709 = vmax.f32 %v4442, %v4563
      %v4710 = vmax.f32 %v4444, %v4562
      %v4711 = vmax.f32 %v4446, %v4561
      %v4712 = vmax.f32 %v4448, %v4560
      %v4713 = vmax.f32 %v4450, %v4559
      %v4714 = vmax.f32 %v4452, %v4558
      %v4715 = vmax.f32 %v4454, %v4557
      %v4716 = vmax.f32 %v4456, %v4636
      %v4717 = vmax.f32 %v4637, 0.0
      %v4718 = vmax.f32 %v4638, 0.0
      %v4719 = vmax.f32 %v4639, 0.0
      %v4720 = vmax.f32 %v4640, 0.0
      %v4721 = vmax.f32 %v4641, 0.0
      %v4722 = vmax.f32 %v4642, 0.0
      %v4723 = vmax.f32 %v4643, 0.0
      %v4724 = vmax.f32 %v4644, 0.0
      %v4725 = vmax.f32 %v4645, 0.0
      %v4726 = vmax.f32 %v4646, 0.0
      %v4727 = vmax.f32 %v4647, 0.0
      %v4728 = vmax.f32 %v4648, 0.0
      %v4729 = vmax.f32 %v4649, 0.0
      %v4730 = vmax.f32 %v4650, 0.0
      %v4731 = vmax.f32 %v4651, 0.0
      %v4732 = vmax.f32 %v4652, 0.0
      %v4733 = vmax.f32 %v4653, 0.0
      %v4734 = vmax.f32 %v4654, 0.0
      %v4735 = vmax.f32 %v4655, 0.0
      %v4736 = vmax.f32 %v4656, 0.0
      %v4737 = vmax.f32 %v4657, 0.0
      %v4738 = vmax.f32 %v4658, 0.0
      %v4739 = vmax.f32 %v4659, 0.0
      %v4740 = vmax.f32 %v4660, 0.0
      %v4741 = vmax.f32 %v4661, 0.0
      %v4742 = vmax.f32 %v4662, 0.0
      %v4743 = vmax.f32 %v4663, 0.0
      %v4744 = vmax.f32 %v4664, 0.0
      %v4745 = vmax.f32 %v4665, 0.0
      %v4746 = vmax.f32 %v4666, 0.0
      %v4747 = vmax.f32 %v4667, 0.0
      %v4748 = vmax.f32 %v4668, 0.0
      %v4749 = vmax.f32 %v4669, 0.0
      %v4750 = vmax.f32 %v4670, 0.0
      %v4751 = vmax.f32 %v4671, 0.0
      %v4752 = vmax.f32 %v4672, 0.0
      %v4753 = vmax.f32 %v4673, 0.0
      %v4754 = vmax.f32 %v4674, 0.0
      %v4755 = vmax.f32 %v4675, 0.0
      %v4756 = vmax.f32 %v4676, 0.0
      %v4757 = vmax.f32 %v4677, 0.0
      %v4758 = vmax.f32 %v4678, 0.0
      %v4759 = vmax.f32 %v4679, 0.0
      %v4760 = vmax.f32 %v4680, 0.0
      %v4761 = vmax.f32 %v4681, 0.0
      %v4762 = vmax.f32 %v4682, 0.0
      %v4763 = vmax.f32 %v4683, 0.0
      %v4764 = vmax.f32 %v4684, 0.0
      %v4765 = vmax.f32 %v4685, 0.0
      %v4766 = vmax.f32 %v4686, 0.0
      %v4767 = vmax.f32 %v4687, 0.0
      %v4768 = vmax.f32 %v4688, 0.0
      %v4769 = vmax.f32 %v4689, 0.0
      %v4770 = vmax.f32 %v4690, 0.0
      %v4771 = vmax.f32 %v4691, 0.0
      %v4772 = vmax.f32 %v4692, 0.0
      %v4773 = vmax.f32 %v4693, 0.0
      %v4774 = vmax.f32 %v4694, 0.0
      %v4775 = vmax.f32 %v4695, 0.0
      %v4776 = vmax.f32 %v4696, 0.0
      %v4777 = vmax.f32 %v4697, 0.0
      %v4778 = vmax.f32 %v4698, 0.0
      %v4779 = vmax.f32 %v4699, 0.0
      %v4780 = vmax.f32 %v4700, 0.0
      %v4781 = vmax.f32 %v4701, 0.0
      %v4782 = vmax.f32 %v4702, 0.0
      %v4783 = vmax.f32 %v4703, 0.0
      %v4784 = vmax.f32 %v4704, 0.0
      %v4785 = vmax.f32 %v4705, 0.0
      %v4786 = vmax.f32 %v4706, 0.0
      %v4787 = vmax.f32 %v4707, 0.0
      %v4788 = vmax.f32 %v4708, 0.0
      %v4789 = vmax.f32 %v4709, 0.0
      %v4790 = vmax.f32 %v4710, 0.0
      %v4791 = vmax.f32 %v4711, 0.0
      %v4792 = vmax.f32 %v4712, 0.0
      %v4793 = vmax.f32 %v4713, 0.0
      %v4794 = vmax.f32 %v4714, 0.0
      %v4795 = vmax.f32 %v4715, 0.0
      %v4796 = vmax.f32 %v4716, 0.0
      %v4797 = vpack.c.bf16 %v4718, %v4717
      %v4798 = vpack.c.bf16 %v4720, %v4719
      %v4799 = vpack.c.bf16 %v4722, %v4721
      %v4800 = vpack.c.bf16 %v4724, %v4723
      %v4801 = vpack.c.bf16 %v4726, %v4725
      %v4802 = vpack.c.bf16 %v4728, %v4727
      %v4803 = vpack.c.bf16 %v4730, %v4729
      %v4804 = vpack.c.bf16 %v4732, %v4731
      %v4805 = vpack.c.bf16 %v4734, %v4733
      %v4806 = vpack.c.bf16 %v4736, %v4735
      %v4807 = vpack.c.bf16 %v4738, %v4737
      %v4808 = vpack.c.bf16 %v4740, %v4739
      %v4809 = vpack.c.bf16 %v4742, %v4741
      %v4810 = vpack.c.bf16 %v4744, %v4743
      %v4811 = vpack.c.bf16 %v4746, %v4745
      %v4812 = vpack.c.bf16 %v4748, %v4747
      %v4813 = vpack.c.bf16 %v4750, %v4749
      %v4814 = vpack.c.bf16 %v4752, %v4751
      %v4815 = vpack.c.bf16 %v4754, %v4753
      %v4816 = vpack.c.bf16 %v4756, %v4755
      %v4817 = vpack.c.bf16 %v4758, %v4757
      %v4818 = vpack.c.bf16 %v4760, %v4759
      %v4819 = vpack.c.bf16 %v4762, %v4761
      %v4820 = vpack.c.bf16 %v4764, %v4763
      %v4821 = vpack.c.bf16 %v4766, %v4765
      %v4822 = vpack.c.bf16 %v4768, %v4767
      %v4823 = vpack.c.bf16 %v4770, %v4769
      %v4824 = vpack.c.bf16 %v4772, %v4771
      %v4825 = vpack.c.bf16 %v4774, %v4773
      %v4826 = vpack.c.bf16 %v4776, %v4775
      %v4827 = vpack.c.bf16 %v4778, %v4777
      %v4828 = vpack.c.bf16 %v4780, %v4779
      %v4829 = vpack.c.bf16 %v4782, %v4781
      %v4830 = vpack.c.bf16 %v4784, %v4783
      %v4831 = vpack.c.bf16 %v4786, %v4785
      %v4832 = vpack.c.bf16 %v4788, %v4787
      %v4833 = vpack.c.bf16 %v4790, %v4789
      %v4834 = vpack.c.bf16 %v4792, %v4791
      %v4835 = vpack.c.bf16 %v4794, %v4793
      %v4836 = vpack.c.bf16 %v4796, %v4795
      %v4837 = vld [vmem:[%s5] sm:$0xff]
      %v4838 = vld [vmem:[%s5 + $0x8] sm:$0xff]
      %v4839 = vld [vmem:[%s5 + $0x10] sm:$0xf]
      %v4840 = vld [vmem:[%s5 + $0x14] sm:$0x11]
      %v4841 = vld [vmem:[%s5 + $0x1c] sm:$0x11]
      %v4842 = vld [vmem:[%s5 + $0x24] sm:$0x1]
      %v4843 = vld [vmem:[%s6] sm:$0xff]
      %v4844 = vld [vmem:[%s6 + $0x8] sm:$0x3]
      %4846 = vset.pattern.permute.xlu0 0
      %4847 = vperm.xlu0 %4846, %v4843
      %v4848 = vpop.permute.xlu0 %4847
      %4851 = vset.pattern.permute.xlu0 0
      %4852 = vperm.xlu0 %4851, %v4844
      %v4853 = vpop.permute.xlu0 %4852
      %v4861 = vunpack.c.l.b16 %v4837
      %v4862 = vunpack.c.h.b16 %v4837
      %v4863 = vunpack.c.l.b16 %v4838
      %v4864 = vunpack.c.h.b16 %v4838
      %v4865 = vunpack.c.l.b16 %v4839
      %v4866 = vunpack.c.l.b16 %v4840
      %v4867 = vunpack.c.h.b16 %v4840
      %v4868 = vunpack.c.l.b16 %v4841
      %v4869 = vunpack.c.h.b16 %v4841
      %v4870 = vunpack.c.l.b16 %v4842
      %v4871 = vpack.c.b16 %v4866, %v4861
      %v4872 = vpack.c.b16 %v4867, %v4862
      %v4873 = vpack.c.b16 %v4868, %v4863
      %v4874 = vpack.c.b16 %v4869, %v4864
      %v4875 = vpack.c.b16 %v4870, %v4865
      %4881 = vmatprep.subr.bf16.mxu0 0
      %4882 = vmatpush1.bf16.msra.mxu0 %v4797
      %4883 = vmatprep.subr.bf16.mxu0 0
      %4884 = vmatpush1.bf16.msra.mxu0 %v4798
      %4885 = vmatprep.subr.bf16.mxu0 0
      %4886 = vmatpush1.bf16.msra.mxu0 %v4799
      %4887 = vmatprep.subr.bf16.mxu0 0
      %4888 = vmatpush1.bf16.msra.mxu0 %v4800
      %4889 = vmatprep.subr.bf16.mxu0 0
      %4890 = vmatpush1.bf16.msra.mxu0 %v4801
      %4891 = vmatprep.subr.bf16.mxu0 0
      %4892 = vmatpush1.bf16.msra.mxu0 %v4802
      %4893 = vmatprep.subr.bf16.mxu0 0
      %4894 = vmatpush1.bf16.msra.mxu0 %v4803
      %4895 = vmatprep.subr.bf16.mxu0 0
      %4896 = vmatpush1.bf16.msra.mxu0 %v4804
      %4897 = vmatprep.subr.bf16.mxu0 0
      %4898 = vmatpush1.bf16.msra.mxu0 %v4805
      %4899 = vmatprep.subr.bf16.mxu0 0
      %4900 = vmatpush1.bf16.msra.mxu0 %v4806
      %4901 = vmatprep.subr.bf16.mxu0 0
      %4902 = vmatpush1.bf16.msra.mxu0 %v4807
      %4903 = vmatprep.subr.bf16.mxu0 0
      %4904 = vmatpush1.bf16.msra.mxu0 %v4808
      %4905 = vmatprep.subr.bf16.mxu0 0
      %4906 = vmatpush1.bf16.msra.mxu0 %v4809
      %4907 = vmatprep.subr.bf16.mxu0 0
      %4908 = vmatpush1.bf16.msra.mxu0 %v4810
      %4909 = vmatprep.subr.bf16.mxu0 0
      %4910 = vmatpush1.bf16.msra.mxu0 %v4811
      %4911 = vmatprep.subr.bf16.mxu0 0
      %4912 = vmatpush1.bf16.msra.mxu0 %v4812
      %4913 = vmatprep.mubr.bf16.mxu0 %v4872
      %4914 = vmatmul.mubr.bf16.gmra.mrb[0].mxu0 %v4871
      %v4915 = vpop.f32.mrb[0].mxu0
      %v4916 = vadd.f32 %v4848, %v4915
      %v4917 = vpop.f32.mrb[0].mxu0
      %v4918 = vpop.f32.mrb[0].mxu0
      %v4919 = vadd.f32 %v4853, %v4918
      %v4920 = vpop.f32.mrb[0].mxu0
      %4921 = vdwg.mxu0
      %4922 = vmatprep.subr.bf16.mxu0 0
      %4923 = vmatpush1.bf16.msra.mxu0 %v4813
      %4924 = vmatprep.subr.bf16.mxu0 0
      %4925 = vmatpush1.bf16.msra.mxu0 %v4814
      %4926 = vmatprep.subr.bf16.mxu0 0
      %4927 = vmatpush1.bf16.msra.mxu0 %v4815
      %4928 = vmatprep.subr.bf16.mxu0 0
      %4929 = vmatpush1.bf16.msra.mxu0 %v4816
      %4930 = vmatprep.subr.bf16.mxu0 0
      %4931 = vmatpush1.bf16.msra.mxu0 %v4817
      %4932 = vmatprep.subr.bf16.mxu0 0
      %4933 = vmatpush1.bf16.msra.mxu0 %v4818
      %4934 = vmatprep.subr.bf16.mxu0 0
      %4935 = vmatpush1.bf16.msra.mxu0 %v4819
      %4936 = vmatprep.subr.bf16.mxu0 0
      %4937 = vmatpush1.bf16.msra.mxu0 %v4820
      %4938 = vmatprep.subr.bf16.mxu0 0
      %4939 = vmatpush1.bf16.msra.mxu0 %v4821
      %4940 = vmatprep.subr.bf16.mxu0 0
      %4941 = vmatpush1.bf16.msra.mxu0 %v4822
      %4942 = vmatprep.subr.bf16.mxu0 0
      %4943 = vmatpush1.bf16.msra.mxu0 %v4823
      %4944 = vmatprep.subr.bf16.mxu0 0
      %4945 = vmatpush1.bf16.msra.mxu0 %v4824
      %4946 = vmatprep.subr.bf16.mxu0 0
      %4947 = vmatpush1.bf16.msra.mxu0 %v4825
      %4948 = vmatprep.subr.bf16.mxu0 0
      %4949 = vmatpush1.bf16.msra.mxu0 %v4826
      %4950 = vmatprep.subr.bf16.mxu0 0
      %4951 = vmatpush1.bf16.msra.mxu0 %v4827
      %4952 = vmatprep.subr.bf16.mxu0 0
      %4953 = vmatpush1.bf16.msra.mxu0 %v4828
      %4954 = vmatprep.mubr.bf16.mxu0 %v4874
      %4955 = vmatmul.mubr.bf16.gmra.mrb[0].mxu0 %v4873
      %v4956 = vpop.f32.mrb[0].mxu0
      %v4957 = vadd.f32 %v4916, %v4956
      %v4958 = vpop.f32.mrb[0].mxu0
      %v4959 = vpop.f32.mrb[0].mxu0
      %v4960 = vadd.f32 %v4919, %v4959
      %v4961 = vpop.f32.mrb[0].mxu0
      %4962 = vdwg.mxu0
      %4963 = vmatprep.subr.bf16.mxu0 0
      %4964 = vmatpush1.bf16.msra.mxu0 %v4829
      %4965 = vmatprep.subr.bf16.mxu0 0
      %4966 = vmatpush1.bf16.msra.mxu0 %v4830
      %4967 = vmatprep.subr.bf16.mxu0 0
      %4968 = vmatpush1.bf16.msra.mxu0 %v4831
      %4969 = vmatprep.subr.bf16.mxu0 0
      %4970 = vmatpush1.bf16.msra.mxu0 %v4832
      %4971 = vmatprep.subr.bf16.mxu0 0
      %4972 = vmatpush1.bf16.msra.mxu0 %v4833
      %4973 = vmatprep.subr.bf16.mxu0 0
      %4974 = vmatpush1.bf16.msra.mxu0 %v4834
      %4975 = vmatprep.subr.bf16.mxu0 0
      %4976 = vmatpush1.bf16.msra.mxu0 %v4835
      %4977 = vmatprep.subr.bf16.mxu0 0
      %4978 = vmatpush1.bf16.msra.mxu0 %v4836
      %4979 = vmatprep.subr.bf16.mxu0 0
      %4980 = vmatpush1.bf16.msra.mxu0 0
      %4981 = vmatprep.subr.bf16.mxu0 0
      %4982 = vmatpush1.bf16.msra.mxu0 0
      %4983 = vmatprep.subr.bf16.mxu0 0
      %4984 = vmatpush1.bf16.msra.mxu0 0
      %4985 = vmatprep.subr.bf16.mxu0 0
      %4986 = vmatpush1.bf16.msra.mxu0 0
      %4987 = vmatprep.subr.bf16.mxu0 0
      %4988 = vmatpush1.bf16.msra.mxu0 0
      %4989 = vmatprep.subr.bf16.mxu0 0
      %4990 = vmatpush1.bf16.msra.mxu0 0
      %4991 = vmatprep.subr.bf16.mxu0 0
      %4992 = vmatpush1.bf16.msra.mxu0 0
      %4993 = vmatprep.subr.bf16.mxu0 0
      %4994 = vmatpush1.bf16.msra.mxu0 0
      %4995 = vmatprep.mubr.bf16.mxu0 0
      %4996 = vmatmul.mubr.bf16.gmra.mrb[0].mxu0 %v4875
      %v4997 = vpop.f32.mrb[0].mxu0
      %v4998 = vadd.f32 %v4957, %v4997
      %v4999 = vpop.f32.mrb[0].mxu0
      %v5000 = vpop.f32.mrb[0].mxu0
      %v5001 = vadd.f32 %v4960, %v5000
      %v5002 = vpop.f32.mrb[0].mxu0
      %5003 = vdwg.mxu0
      %5004 = vst.msk [vmem:[%s278] sm:$0xff] %vm2034, %v4998
      %vm5005 = vcmask 25600
      %5006 = vst.msk [vmem:[%s278 + $0x8] sm:$0x3] %vm5005, %v5001
      %p5007 = scmp.lt.s32.totalorder %s18, 1
      %s5008 = scalar_select %p5007, %s18, 1
      %s5009 = smul.addr %s5008, 2
      %s5010 = smul.addr %s5009, 8
      %s5011 = scalar_lea.vmem %s7, %s5010
      // Predicated region
      $region49: #{_lambda_.1} parent=47 // pred_check
        %p5012 = pneg %p188
      $region50: #{_lambda_.1} parent=47 // pred_check_branch
        %5014 = sbr.rel (%p5012) target = $region52
      $region51: #{_lambda_.1} parent=47 // pred_region
        _
      $region52: #{_lambda_.1} parent=47 // pred_fallthru
        _
    $region48: #{_lambda_.1} parent=5 // pred_fallthru
      _
    %p5015 = scmp.le.s32.totalorder 2, %s13
    // Predicated region
    $region53: #{_lambda_.1} parent=5 // pred_check
      %p5016 = pneg %p5015
    $region54: #{_lambda_.1} parent=5 // pred_check_branch
      %5018 = sbr.rel (%p5016) target = $region56
    $region55: #{_lambda_.1} parent=5 // pred_region
      %s5019 = ssub.s32 %s13, 2
      // Predicated region
      $region57: #{_lambda_.1} parent=55 // pred_check
        %p5020 = pneg %p194
      $region58: #{_lambda_.1} parent=55 // pred_check_branch
        %5022 = sbr.rel (%p5020) target = $region60
      $region59: #{_lambda_.1} parent=55 // pred_region
        %p5023 = scmp.lt.s32.totalorder %s19, 1
        %s5024 = scalar_select %p5023, %s19, 1
        %s5025 = smul.addr %s5024, 2
        %s5026 = smul.addr %s5025, 8
        %s5027 = scalar_lea.vmem %s7, %s5026
      $region60: #{_lambda_.1} parent=55 // pred_fallthru
        _
    $region56: #{_lambda_.1} parent=5 // pred_fallthru
      _
  $region6: #{_lambda_.1} parent=0 // loop_footer
    %s17 = sadd.s32 1, %s13
  $region7: #{_lambda_.1} parent=0 // loop_footer_branch
    %12 = sbr.rel target = $region3
  $region8: #{_lambda_.1} parent=0 // loop_exit
    _

</llo_original>
